<compile_context>
chip_gen: v7x
topology: tpu7x:2x2x1
jax: 0.10.0
libtpu: 0.0.40
codegen_flags: <defaults>
</compile_context>

<pallas_src>
import functools

import numpy as np

import jax
import jax.numpy as jnp
from jax import lax
from jax.experimental import pallas as pl
from jax.experimental.pallas import tpu as pltpu

_VMEM_LIMIT = 32 * 1024 * 1024  # >= default scoped VMEM on v5e/v6e/v7x


# ---------------------------------------------------------------------------
# PyTorch-style bilinear (align_corners=False) interpolation coefficients
# ---------------------------------------------------------------------------
def _interp_coeffs(in_size, out_size):
    scale = (in_size / out_size) if out_size > 1 else 0.0
    dst = np.arange(out_size, dtype=np.float64)
    src = np.maximum(scale * (dst + 0.5) - 0.5, 0.0)
    i0 = np.minimum(np.floor(src).astype(np.int64), in_size - 1)
    i1 = np.minimum(i0 + 1, in_size - 1)
    w1 = src - i0
    w0 = 1.0 - w1
    return i0, i1, w0, w1


def _interp_matrix(in_size, out_size):
    i0, i1, w0, w1 = _interp_coeffs(in_size, out_size)
    m = np.zeros((out_size, in_size), dtype=np.float64)
    rows = np.arange(out_size)
    np.add.at(m, (rows, i0), w0)
    np.add.at(m, (rows, i1), w1)
    return m.astype(np.float32)


def _pick_hw_tile(hw, cap=2048):
    """Largest spatial tile <= cap that divides hw (keeps 16-row alignment)."""
    if hw <= cap:
        return hw
    for t in range(cap, 15, -1):
        if hw % t == 0 and t % 16 == 0:
            return t
    return hw


# ---------------------------------------------------------------------------
# Kernel 1: 1x1 conv as channels-last matmul (+ bias), HW-tiled, bf16 operands
# ---------------------------------------------------------------------------
def _conv1x1_kernel(x_ref, w_ref, b_ref, o_ref):
    o_ref[0] = (jnp.dot(x_ref[0], w_ref[...],
                        preferred_element_type=jnp.float32) + b_ref[...])


# ---------------------------------------------------------------------------
# Kernel 2: left matmul  out = A @ X  (separable bilinear interpolation step)
# ---------------------------------------------------------------------------
def _left_matmul_kernel(a_ref, x_ref, o_ref):
    o_ref[0] = jnp.dot(a_ref[...], x_ref[0], preferred_element_type=jnp.float32)


# ---------------------------------------------------------------------------
# Kernel 3 (fused spatial path):
#   latlayer1 1x1 conv + bias, add upsampled temporal map, smooth2 3x3 conv
#   (+ bias).  The 3x3 conv is 9 accumulated matmuls over rolled views of the
#   fused map; image-boundary taps are masked via row/col index inputs.
# ---------------------------------------------------------------------------
def _fused_spatial_kernel(r_ref, c_ref, xs_ref, up_ref, wlat_ref, blat_ref,
                          wsm_ref, bsm_ref, o_ref, *, hs, ws, cout):
    hw = hs * ws

    # latlayer1: 1x1 conv (bf16 operands, f32 accumulation) + bias, then add up
    s = jnp.dot(xs_ref[0], wlat_ref[...], preferred_element_type=jnp.float32)
    fuse = s + blat_ref[...] + up_ref[0]              # (HW, Cmid) f32

    r = r_ref[...]                                    # (HW, 1) int32 row index
    c = c_ref[...]                                    # (HW, 1) int32 col index

    acc = jnp.zeros((hw, cout), dtype=jnp.float32)
    for k in range(9):
        dy, dx = divmod(k, 3)
        off = (dy - 1) * ws + (dx - 1)                # flat offset of this tap
        x_k = fuse if off == 0 else pltpu.roll(fuse, (-off) % hw, axis=0)

        conds = []
        if dy == 0:
            conds.append(r >= 1)
        if dy == 2:
            conds.append(r < hs - 1)
        if dx == 0:
            conds.append(c >= 1)
        if dx == 2:
            conds.append(c < ws - 1)
        if conds:
            m = conds[0]
            for extra in conds[1:]:
                m = jnp.logical_and(m, extra)
            x_k = jnp.where(m, x_k, 0.0)

        acc = acc + jnp.dot(x_k.astype(jnp.bfloat16), wsm_ref[k],
                            preferred_element_type=jnp.float32)

    o_ref[0] = acc + bsm_ref[...]


# ---------------------------------------------------------------------------
# Forward wrapper
# ---------------------------------------------------------------------------
@jax.jit
def simple_fpn_forward(x_spatial, x_temporal,
                       w_top, b_top, w_lat, b_lat, w_sm, b_sm):
    n, cin_t, ht, wt = x_temporal.shape
    _, cin_s, hs, ws = x_spatial.shape
    cmid = w_top.shape[0]
    cout = w_sm.shape[0]
    hw_t, hw_s = ht * wt, hs * ws

    # ---- glue: channels-last layouts, bf16 matmul operands ----
    xt = (jnp.transpose(x_temporal, (0, 2, 3, 1))
             .reshape(n, hw_t, cin_t).astype(jnp.bfloat16))
    xs = (jnp.transpose(x_spatial, (0, 2, 3, 1))
             .reshape(n, hw_s, cin_s).astype(jnp.bfloat16))
    wtop_m = jnp.transpose(w_top.reshape(cmid, cin_t)).astype(jnp.bfloat16)
    wlat_m = jnp.transpose(w_lat.reshape(cmid, cin_s)).astype(jnp.bfloat16)
    wsm_m = (jnp.transpose(w_sm, (2, 3, 1, 0))
                .reshape(9, cmid, cout).astype(jnp.bfloat16))
    btop2 = b_top.reshape(1, cmid).astype(jnp.float32)
    blat2 = b_lat.reshape(1, cmid).astype(jnp.float32)
    bsm2 = b_sm.reshape(1, cout).astype(jnp.float32)

    ah = jnp.asarray(_interp_matrix(ht, hs))          # (Hs, Ht)
    aw = jnp.asarray(_interp_matrix(wt, ws))          # (Ws, Wt)

    rr = jnp.asarray(np.repeat(np.arange(hs, dtype=np.int32), ws)
                       .reshape(hw_s, 1))
    cc = jnp.asarray(np.tile(np.arange(ws, dtype=np.int32), hs)
                       .reshape(hw_s, 1))

    params1 = pltpu.CompilerParams(dimension_semantics=("parallel",),
                                   vmem_limit_bytes=_VMEM_LIMIT)

    # ---- Pallas 1: toplayer 1x1 conv on the temporal branch, HW-tiled ----
    thw = _pick_hw_tile(hw_t)
    t_flat = pl.pallas_call(
        _conv1x1_kernel,
        out_shape=jax.ShapeDtypeStruct((n, hw_t, cmid), jnp.float32),
        grid_spec=pltpu.PrefetchScalarGridSpec(
            num_scalar_prefetch=0,
            grid=(n, hw_t // thw),
            in_specs=[
                pl.BlockSpec((1, thw, cin_t), lambda b, i: (b, i, 0)),
                pl.BlockSpec((cin_t, cmid), lambda b, i: (0, 0)),
                pl.BlockSpec((1, cmid), lambda b, i: (0, 0)),
            ],
            out_specs=pl.BlockSpec((1, thw, cmid), lambda b, i: (b, i, 0))),
        compiler_params=pltpu.CompilerParams(
            dimension_semantics=("parallel", "parallel"),
            vmem_limit_bytes=_VMEM_LIMIT),
    )(xt, wtop_m, btop2)

    # ---- Pallas 2: bilinear row (H) interpolation: Ah @ T ----
    t2 = t_flat.reshape(n, ht, wt * cmid)
    u1 = pl.pallas_call(
        _left_matmul_kernel,
        out_shape=jax.ShapeDtypeStruct((n, hs, wt * cmid), jnp.float32),
        grid_spec=pltpu.PrefetchScalarGridSpec(
            num_scalar_prefetch=0,
            grid=(n,),
            in_specs=[
                pl.BlockSpec((hs, ht), lambda b: (0, 0)),
                pl.BlockSpec((1, ht, wt * cmid), lambda b: (b, 0, 0)),
            ],
            out_specs=pl.BlockSpec((1, hs, wt * cmid), lambda b: (b, 0, 0))),
        compiler_params=params1,
    )(ah, t2)

    # ---- Pallas 3: bilinear column (W) interpolation: Aw @ U1' ----
    u1_r = (u1.reshape(n, hs, wt, cmid).transpose(0, 2, 1, 3)
              .reshape(n, wt, hs * cmid))
    u2 = pl.pallas_call(
        _left_matmul_kernel,
        out_shape=jax.ShapeDtypeStruct((n, ws, hs * cmid), jnp.float32),
        grid_spec=pltpu.PrefetchScalarGridSpec(
            num_scalar_prefetch=0,
            grid=(n,),
            in_specs=[
                pl.BlockSpec((ws, wt), lambda b: (0, 0)),
                pl.BlockSpec((1, wt, hs * cmid), lambda b: (b, 0, 0)),
            ],
            out_specs=pl.BlockSpec((1, ws, hs * cmid), lambda b: (b, 0, 0))),
        compiler_params=params1,
    )(aw, u1_r)

    up = (u2.reshape(n, ws, hs, cmid).transpose(0, 2, 1, 3)
            .reshape(n, hw_s, cmid))                   # (N, Hs*Ws, Cmid) f32

    # ---- Pallas 4: fused spatial path (lat 1x1 + add + 3x3 smooth) ----
    # TODO(synk): halo-tile H*W inside this kernel for resolutions where one
    # full (Hs*Ws, C) image no longer fits the per-generation VMEM budget.
    out_flat = pl.pallas_call(
        functools.partial(_fused_spatial_kernel, hs=hs, ws=ws, cout=cout),
        out_shape=jax.ShapeDtypeStruct((n, hw_s, cout), jnp.float32),
        grid_spec=pltpu.PrefetchScalarGridSpec(
            num_scalar_prefetch=0,
            grid=(n,),
            in_specs=[
                pl.BlockSpec((hw_s, 1), lambda b: (0, 0)),
                pl.BlockSpec((hw_s, 1), lambda b: (0, 0)),
                pl.BlockSpec((1, hw_s, cin_s), lambda b: (b, 0, 0)),
                pl.BlockSpec((1, hw_s, cmid), lambda b: (b, 0, 0)),
                pl.BlockSpec((cin_s, cmid), lambda b: (0, 0)),
                pl.BlockSpec((1, cmid), lambda b: (0, 0)),
                pl.BlockSpec((9, cmid, cout), lambda b: (0, 0, 0)),
                pl.BlockSpec((1, cout), lambda b: (0, 0)),
            ],
            out_specs=pl.BlockSpec((1, hw_s, cout), lambda b: (b, 0, 0))),
        compiler_params=params1,
    )(rr, cc, xs, up, wlat_m, blat2, wsm_m, bsm2)

    out = out_flat.reshape(n, hs, ws, cout)
    return jnp.transpose(out, (0, 3, 1, 2))            # NCHW


# ---------------------------------------------------------------------------
# Pure-JAX f32 reference (PyTorch-faithful) for the correctness check
# ---------------------------------------------------------------------------
def simple_fpn_reference(x_spatial, x_temporal,
                         w_top, b_top, w_lat, b_lat, w_sm, b_sm):
    f32 = jnp.float32
    dn = ("NCHW", "OIHW", "NCHW")

    t = lax.conv_general_dilated(
        x_temporal.astype(f32), w_top.astype(f32), (1, 1), "VALID",
        dimension_numbers=dn) + b_top.reshape(1, -1, 1, 1)

    ht, wt = x_temporal.shape[2], x_temporal.shape[3]
    hs, ws = x_spatial.shape[2], x_spatial.shape[3]
    y0, y1, wy0, wy1 = _interp_coeffs(ht, hs)
    x0, x1, wx0, wx1 = _interp_coeffs(wt, ws)
    wy0 = jnp.asarray(wy0, f32)[None, None, :, None]
    wy1 = jnp.asarray(wy1, f32)[None, None, :, None]
    wx0 = jnp.asarray(wx0, f32)[None, None, None, :]
    wx1 = jnp.asarray(wx1, f32)[None, None, None, :]
    rows = t[:, :, y0, :] * wy0 + t[:, :, y1, :] * wy1
    up = rows[:, :, :, x0] * wx0 + rows[:, :, :, x1] * wx1

    s = lax.conv_general_dilated(
        x_spatial.astype(f32), w_lat.astype(f32), (1, 1), "VALID",
        dimension_numbers=dn) + b_lat.reshape(1, -1, 1, 1)

    fuse = up + s
    out = lax.conv_general_dilated(
        fuse, w_sm.astype(f32), (1, 1), ((1, 1), (1, 1)),
        dimension_numbers=dn) + b_sm.reshape(1, -1, 1, 1)
    return out


if __name__ == "__main__":
    key = jax.random.PRNGKey(0)
    ks = jax.random.split(key, 8)

    N = 2
    IN_CH = 8        # in_channels  (x_temporal channels)
    OUT_CH = 8       # out_channels (x_spatial channels and output channels)
    MID = IN_CH // 2
    HS, WS = 16, 16  # spatial branch resolution
    HT, WT = 8, 8    # temporal branch resolution (bilinearly upsampled 2x)

    x_spatial = jax.random.normal(ks[0], (N, OUT_CH, HS, WS), dtype=jnp.float32)
    x_temporal = jax.random.normal(ks[1], (N, IN_CH, HT, WT), dtype=jnp.float32)

    # nn.Conv2d parameters (all three convs have bias=True by default)
    w_top = jax.random.normal(ks[2], (MID, IN_CH, 1, 1), dtype=jnp.float32) * 0.1
    b_top = jax.random.normal(ks[3], (MID,), dtype=jnp.float32) * 0.1
    w_lat = jax.random.normal(ks[4], (MID, OUT_CH, 1, 1), dtype=jnp.float32) * 0.1
    b_lat = jax.random.normal(ks[5], (MID,), dtype=jnp.float32) * 0.1
    w_sm = jax.random.normal(ks[6], (OUT_CH, MID, 3, 3), dtype=jnp.float32) * 0.1
    b_sm = jax.random.normal(ks[7], (OUT_CH,), dtype=jnp.float32) * 0.1

    out = simple_fpn_forward(x_spatial, x_temporal,
                             w_top, b_top, w_lat, b_lat, w_sm, b_sm)
    out = jax.block_until_ready(out)

    ref = simple_fpn_reference(x_spatial, x_temporal,
                               w_top, b_top, w_lat, b_lat, w_sm, b_sm)

    assert out.shape == (N, OUT_CH, HS, WS)
    max_err = float(jnp.max(jnp.abs(out - ref)))
    # bf16 MXU operands vs. the f32 reference -> modest tolerance
    assert jnp.allclose(out, ref, rtol=2e-2, atol=2e-2), (
        f"mismatch vs reference (max abs err {max_err:.4e})")
    print("KERNEL_OK")
</pallas_src>

<mosaic_0001>
module attributes {stable_mosaic.version = 11 : i64} {
  func.func @_left_matmul_kernel(%arg0: i32, %arg1: memref<16x8xf32, #tpu.memory_space<vmem>>, %arg2: memref<1x8x32xf32, #tpu.memory_space<vmem>>, %arg3: memref<1x16x32xf32, #tpu.memory_space<vmem>>) attributes {dimension_semantics = [#tpu.dimension_semantics<parallel>], iteration_bounds = array<i64: 2>, scalar_prefetch = 0 : i64, scratch_operands = 0 : i64, tpu.core_type = #tpu.core_type<tc>, window_params = [{pipeline_mode = #tpu.pipeline_mode<synchronous>, transform_indices = @transform_0, window_bounds = array<i64: 16, 8>}, {transform_indices = @transform_1, window_bounds = array<i64: 1, 8, 32>}, {transform_indices = @transform_2, window_bounds = array<i64: 1, 16, 32>}]} {
    %c0 = arith.constant 0 : index
    %c0_0 = arith.constant 0 : index
    %0 = vector.load %arg1[%c0, %c0_0] : memref<16x8xf32, #tpu.memory_space<vmem>>, vector<16x8xf32>
    %c0_1 = arith.constant 0 : index
    %c0_2 = arith.constant 0 : index
    %c0_3 = arith.constant 0 : index
    %1 = vector.load %arg2[%c0_1, %c0_2, %c0_3] : memref<1x8x32xf32, #tpu.memory_space<vmem>>, vector<1x8x32xf32>
    %2 = vector.shape_cast %1 : vector<1x8x32xf32> to vector<8x32xf32>
    %cst = arith.constant dense<0.000000e+00> : vector<16x32xf32>
    %3 = tpu.matmul %0, %2, %cst {dimension_numbers = #tpu.dot_dimension_numbers<[1], [0], [0], [1], [0, 0, 1, 1], [], []>} : vector<16x8xf32>, vector<8x32xf32>, vector<16x32xf32> -> vector<16x32xf32>
    %c0_4 = arith.constant 0 : index
    %c0_5 = arith.constant 0 : index
    %c0_6 = arith.constant 0 : index
    %4 = vector.load %arg3[%c0_4, %c0_5, %c0_6] : memref<1x16x32xf32, #tpu.memory_space<vmem>>, vector<1x16x32xf32>
    %5 = vector.shape_cast %4 : vector<1x16x32xf32> to vector<16x32xf32>
    %6 = vector.shape_cast %3 : vector<16x32xf32> to vector<1x16x32xf32>
    tpu.vector_store %arg3[%c0_4, %c0_5, %c0_6], %6 {strides = array<i32>} : memref<1x16x32xf32, #tpu.memory_space<vmem>>, vector<1x16x32xf32>,
    return
  }
  func.func @transform_0(%arg0: i32) -> (i32, i32) {
    %c0_i32 = arith.constant 0 : i32
    %c0_i32_0 = arith.constant 0 : i32
    %c0_i32_1 = arith.constant 0 : i32
    return %c0_i32, %c0_i32_0 : i32, i32
  }
  func.func @transform_1(%arg0: i32) -> (i32, i32, i32) {
    %c0_i32 = arith.constant 0 : i32
    %c0_i32_0 = arith.constant 0 : i32
    %c0_i32_1 = arith.constant 0 : i32
    return %arg0, %c0_i32, %c0_i32_0 : i32, i32, i32
  }
  func.func @transform_2(%arg0: i32) -> (i32, i32, i32) {
    %c0_i32 = arith.constant 0 : i32
    %c0_i32_0 = arith.constant 0 : i32
    %c0_i32_1 = arith.constant 0 : i32
    return %arg0, %c0_i32, %c0_i32_0 : i32, i32, i32
  }
}

module attributes {stable_mosaic.version = 11 : i64} {
  func.func @_conv1x1_kernel(%arg0: i32, %arg1: i32, %arg2: memref<1x64x8xbf16, #tpu.memory_space<vmem>>, %arg3: memref<8x4xbf16, #tpu.memory_space<vmem>>, %arg4: memref<1x4xf32, #tpu.memory_space<vmem>>, %arg5: memref<1x64x4xf32, #tpu.memory_space<vmem>>) attributes {dimension_semantics = [#tpu.dimension_semantics<parallel>, #tpu.dimension_semantics<parallel>], iteration_bounds = array<i64: 2, 1>, scalar_prefetch = 0 : i64, scratch_operands = 0 : i64, tpu.core_type = #tpu.core_type<tc>, window_params = [{transform_indices = @transform_0, window_bounds = array<i64: 1, 64, 8>}, {pipeline_mode = #tpu.pipeline_mode<synchronous>, transform_indices = @transform_1, window_bounds = array<i64: 8, 4>}, {pipeline_mode = #tpu.pipeline_mode<synchronous>, transform_indices = @transform_2, window_bounds = array<i64: 1, 4>}, {transform_indices = @transform_3, window_bounds = array<i64: 1, 64, 4>}]} {
    %c0 = arith.constant 0 : index
    %c0_0 = arith.constant 0 : index
    %c0_1 = arith.constant 0 : index
    %0 = vector.load %arg2[%c0, %c0_0, %c0_1] : memref<1x64x8xbf16, #tpu.memory_space<vmem>>, vector<1x64x8xbf16>
    %1 = vector.shape_cast %0 : vector<1x64x8xbf16> to vector<64x8xbf16>
    %c0_2 = arith.constant 0 : index
    %c0_3 = arith.constant 0 : index
    %2 = vector.load %arg3[%c0_2, %c0_3] : memref<8x4xbf16, #tpu.memory_space<vmem>>, vector<8x4xbf16>
    %cst = arith.constant dense<0.000000e+00> : vector<64x4xf32>
    %3 = tpu.matmul %1, %2, %cst {dimension_numbers = #tpu.dot_dimension_numbers<[1], [0], [0], [1], [0, 0, 1, 1], [], []>} : vector<64x8xbf16>, vector<8x4xbf16>, vector<64x4xf32> -> vector<64x4xf32>
    %c0_4 = arith.constant 0 : index
    %c0_5 = arith.constant 0 : index
    %4 = vector.load %arg4[%c0_4, %c0_5] : memref<1x4xf32, #tpu.memory_space<vmem>>, vector<1x4xf32>
    %5 = vector.broadcast %4 : vector<1x4xf32> to vector<64x4xf32>
    %6 = arith.addf %3, %5 : vector<64x4xf32>
    %c0_6 = arith.constant 0 : index
    %c0_7 = arith.constant 0 : index
    %c0_8 = arith.constant 0 : index
    %7 = vector.load %arg5[%c0_6, %c0_7, %c0_8] : memref<1x64x4xf32, #tpu.memory_space<vmem>>, vector<1x64x4xf32>
    %8 = vector.shape_cast %7 : vector<1x64x4xf32> to vector<64x4xf32>
    %9 = vector.shape_cast %6 : vector<64x4xf32> to vector<1x64x4xf32>
    tpu.vector_store %arg5[%c0_6, %c0_7, %c0_8], %9 {strides = array<i32>} : memref<1x64x4xf32, #tpu.memory_space<vmem>>, vector<1x64x4xf32>,
    return
  }
  func.func @transform_0(%arg0: i32, %arg1: i32) -> (i32, i32, i32) {
    %c0_i32 = arith.constant 0 : i32
    %c0_i32_0 = arith.constant 0 : i32
    return %arg0, %arg1, %c0_i32 : i32, i32, i32
  }
  func.func @transform_1(%arg0: i32, %arg1: i32) -> (i32, i32) {
    %c0_i32 = arith.constant 0 : i32
    %c0_i32_0 = arith.constant 0 : i32
    %c0_i32_1 = arith.constant 0 : i32
    return %c0_i32, %c0_i32_0 : i32, i32
  }
  func.func @transform_2(%arg0: i32, %arg1: i32) -> (i32, i32) {
    %c0_i32 = arith.constant 0 : i32
    %c0_i32_0 = arith.constant 0 : i32
    %c0_i32_1 = arith.constant 0 : i32
    return %c0_i32, %c0_i32_0 : i32, i32
  }
  func.func @transform_3(%arg0: i32, %arg1: i32) -> (i32, i32, i32) {
    %c0_i32 = arith.constant 0 : i32
    %c0_i32_0 = arith.constant 0 : i32
    return %arg0, %arg1, %c0_i32 : i32, i32, i32
  }
}

module attributes {stable_mosaic.version = 11 : i64} {
  func.func @_left_matmul_kernel(%arg0: i32, %arg1: memref<16x8xf32, #tpu.memory_space<vmem>>, %arg2: memref<1x8x64xf32, #tpu.memory_space<vmem>>, %arg3: memref<1x16x64xf32, #tpu.memory_space<vmem>>) attributes {dimension_semantics = [#tpu.dimension_semantics<parallel>], iteration_bounds = array<i64: 2>, scalar_prefetch = 0 : i64, scratch_operands = 0 : i64, tpu.core_type = #tpu.core_type<tc>, window_params = [{pipeline_mode = #tpu.pipeline_mode<synchronous>, transform_indices = @transform_0, window_bounds = array<i64: 16, 8>}, {transform_indices = @transform_1, window_bounds = array<i64: 1, 8, 64>}, {transform_indices = @transform_2, window_bounds = array<i64: 1, 16, 64>}]} {
    %c0 = arith.constant 0 : index
    %c0_0 = arith.constant 0 : index
    %0 = vector.load %arg1[%c0, %c0_0] : memref<16x8xf32, #tpu.memory_space<vmem>>, vector<16x8xf32>
    %c0_1 = arith.constant 0 : index
    %c0_2 = arith.constant 0 : index
    %c0_3 = arith.constant 0 : index
    %1 = vector.load %arg2[%c0_1, %c0_2, %c0_3] : memref<1x8x64xf32, #tpu.memory_space<vmem>>, vector<1x8x64xf32>
    %2 = vector.shape_cast %1 : vector<1x8x64xf32> to vector<8x64xf32>
    %cst = arith.constant dense<0.000000e+00> : vector<16x64xf32>
    %3 = tpu.matmul %0, %2, %cst {dimension_numbers = #tpu.dot_dimension_numbers<[1], [0], [0], [1], [0, 0, 1, 1], [], []>} : vector<16x8xf32>, vector<8x64xf32>, vector<16x64xf32> -> vector<16x64xf32>
    %c0_4 = arith.constant 0 : index
    %c0_5 = arith.constant 0 : index
    %c0_6 = arith.constant 0 : index
    %4 = vector.load %arg3[%c0_4, %c0_5, %c0_6] : memref<1x16x64xf32, #tpu.memory_space<vmem>>, vector<1x16x64xf32>
    %5 = vector.shape_cast %4 : vector<1x16x64xf32> to vector<16x64xf32>
    %6 = vector.shape_cast %3 : vector<16x64xf32> to vector<1x16x64xf32>
    tpu.vector_store %arg3[%c0_4, %c0_5, %c0_6], %6 {strides = array<i32>} : memref<1x16x64xf32, #tpu.memory_space<vmem>>, vector<1x16x64xf32>,
    return
  }
  func.func @transform_0(%arg0: i32) -> (i32, i32) {
    %c0_i32 = arith.constant 0 : i32
    %c0_i32_0 = arith.constant 0 : i32
    %c0_i32_1 = arith.constant 0 : i32
    return %c0_i32, %c0_i32_0 : i32, i32
  }
  func.func @transform_1(%arg0: i32) -> (i32, i32, i32) {
    %c0_i32 = arith.constant 0 : i32
    %c0_i32_0 = arith.constant 0 : i32
    %c0_i32_1 = arith.constant 0 : i32
    return %arg0, %c0_i32, %c0_i32_0 : i32, i32, i32
  }
  func.func @transform_2(%arg0: i32) -> (i32, i32, i32) {
    %c0_i32 = arith.constant 0 : i32
    %c0_i32_0 = arith.constant 0 : i32
    %c0_i32_1 = arith.constant 0 : i32
    return %arg0, %c0_i32, %c0_i32_0 : i32, i32, i32
  }
}

module attributes {stable_mosaic.version = 11 : i64} {
  func.func @_fused_spatial_kernel(%arg0: i32, %arg1: memref<256x1xi32, #tpu.memory_space<vmem>>, %arg2: memref<256x1xi32, #tpu.memory_space<vmem>>, %arg3: memref<1x256x8xbf16, #tpu.memory_space<vmem>>, %arg4: memref<1x256x4xf32, #tpu.memory_space<vmem>>, %arg5: memref<8x4xbf16, #tpu.memory_space<vmem>>, %arg6: memref<1x4xf32, #tpu.memory_space<vmem>>, %arg7: memref<9x4x8xbf16, #tpu.memory_space<vmem>>, %arg8: memref<1x8xf32, #tpu.memory_space<vmem>>, %arg9: memref<1x256x8xf32, #tpu.memory_space<vmem>>) attributes {dimension_semantics = [#tpu.dimension_semantics<parallel>], iteration_bounds = array<i64: 2>, scalar_prefetch = 0 : i64, scratch_operands = 0 : i64, tpu.core_type = #tpu.core_type<tc>, window_params = [{pipeline_mode = #tpu.pipeline_mode<synchronous>, transform_indices = @transform_0, window_bounds = array<i64: 256, 1>}, {pipeline_mode = #tpu.pipeline_mode<synchronous>, transform_indices = @transform_1, window_bounds = array<i64: 256, 1>}, {transform_indices = @transform_2, window_bounds = array<i64: 1, 256, 8>}, {transform_indices = @transform_3, window_bounds = array<i64: 1, 256, 4>}, {pipeline_mode = #tpu.pipeline_mode<synchronous>, transform_indices = @transform_4, window_bounds = array<i64: 8, 4>}, {pipeline_mode = #tpu.pipeline_mode<synchronous>, transform_indices = @transform_5, window_bounds = array<i64: 1, 4>}, {pipeline_mode = #tpu.pipeline_mode<synchronous>, transform_indices = @transform_6, window_bounds = array<i64: 9, 4, 8>}, {pipeline_mode = #tpu.pipeline_mode<synchronous>, transform_indices = @transform_7, window_bounds = array<i64: 1, 8>}, {transform_indices = @transform_8, window_bounds = array<i64: 1, 256, 8>}]} {
    %c0 = arith.constant 0 : index
    %c0_0 = arith.constant 0 : index
    %c0_1 = arith.constant 0 : index
    %0 = vector.load %arg3[%c0, %c0_0, %c0_1] : memref<1x256x8xbf16, #tpu.memory_space<vmem>>, vector<1x256x8xbf16>
    %1 = vector.shape_cast %0 : vector<1x256x8xbf16> to vector<256x8xbf16>
    %c0_2 = arith.constant 0 : index
    %c0_3 = arith.constant 0 : index
    %2 = vector.load %arg5[%c0_2, %c0_3] : memref<8x4xbf16, #tpu.memory_space<vmem>>, vector<8x4xbf16>
    %cst = arith.constant dense<0.000000e+00> : vector<256x4xf32>
    %3 = tpu.matmul %1, %2, %cst {dimension_numbers = #tpu.dot_dimension_numbers<[1], [0], [0], [1], [0, 0, 1, 1], [], []>} : vector<256x8xbf16>, vector<8x4xbf16>, vector<256x4xf32> -> vector<256x4xf32>
    %c0_4 = arith.constant 0 : index
    %c0_5 = arith.constant 0 : index
    %4 = vector.load %arg6[%c0_4, %c0_5] : memref<1x4xf32, #tpu.memory_space<vmem>>, vector<1x4xf32>
    %5 = vector.broadcast %4 : vector<1x4xf32> to vector<256x4xf32>
    %6 = arith.addf %3, %5 : vector<256x4xf32>
    %c0_6 = arith.constant 0 : index
    %c0_7 = arith.constant 0 : index
    %c0_8 = arith.constant 0 : index
    %7 = vector.load %arg4[%c0_6, %c0_7, %c0_8] : memref<1x256x4xf32, #tpu.memory_space<vmem>>, vector<1x256x4xf32>
    %8 = vector.shape_cast %7 : vector<1x256x4xf32> to vector<256x4xf32>
    %9 = arith.addf %6, %8 : vector<256x4xf32>
    %c0_9 = arith.constant 0 : index
    %c0_10 = arith.constant 0 : index
    %10 = vector.load %arg1[%c0_9, %c0_10] : memref<256x1xi32, #tpu.memory_space<vmem>>, vector<256x1xi32>
    %c0_11 = arith.constant 0 : index
    %c0_12 = arith.constant 0 : index
    %11 = vector.load %arg2[%c0_11, %c0_12] : memref<256x1xi32, #tpu.memory_space<vmem>>, vector<256x1xi32>
    %cst_13 = arith.constant 0.000000e+00 : f32
    %12 = vector.broadcast %cst_13 : f32 to vector<256x8xf32>
    %c17_i32 = arith.constant 17 : i32
    %13 = tpu.dynamic_rotate %9 by %c17_i32 dim 0 : vector<256x4xf32>, i32 -> vector<256x4xf32>
    %c1_i32 = arith.constant 1 : i32
    %14 = vector.broadcast %c1_i32 : i32 to vector<256x1xi32>
    %15 = arith.cmpi sge, %10, %14 : vector<256x1xi32>
    %c1_i32_14 = arith.constant 1 : i32
    %16 = vector.broadcast %c1_i32_14 : i32 to vector<256x1xi32>
    %17 = arith.cmpi sge, %11, %16 : vector<256x1xi32>
    %18 = arith.andi %15, %17 : vector<256x1xi1>
    %cst_15 = arith.constant 0.000000e+00 : f32
    %19 = vector.shape_cast %18 : vector<256x1xi1> to vector<256x1xi1>
    %20 = vector.broadcast %19 : vector<256x1xi1> to vector<256x4xi1>
    %21 = vector.broadcast %cst_15 : f32 to vector<256x4xf32>
    %22 = arith.select %20, %13, %21 : vector<256x4xi1>, vector<256x4xf32>
    %23 = arith.truncf %22 : vector<256x4xf32> to vector<256x4xbf16>
    %c0_16 = arith.constant 0 : index
    %c0_17 = arith.constant 0 : index
    %c0_18 = arith.constant 0 : index
    %24 = vector.load %arg7[%c0_16, %c0_17, %c0_18] : memref<9x4x8xbf16, #tpu.memory_space<vmem>>, vector<1x4x8xbf16>
    %25 = vector.shape_cast %24 : vector<1x4x8xbf16> to vector<4x8xbf16>
    %cst_19 = arith.constant dense<0.000000e+00> : vector<256x8xf32>
    %26 = tpu.matmul %23, %25, %cst_19 {dimension_numbers = #tpu.dot_dimension_numbers<[1], [0], [0], [1], [0, 0, 1, 1], [], []>} : vector<256x4xbf16>, vector<4x8xbf16>, vector<256x8xf32> -> vector<256x8xf32>
    %27 = arith.addf %12, %26 : vector<256x8xf32>
    %c16_i32 = arith.constant 16 : i32
    %28 = tpu.dynamic_rotate %9 by %c16_i32 dim 0 : vector<256x4xf32>, i32 -> vector<256x4xf32>
    %c1_i32_20 = arith.constant 1 : i32
    %29 = vector.broadcast %c1_i32_20 : i32 to vector<256x1xi32>
    %30 = arith.cmpi sge, %10, %29 : vector<256x1xi32>
    %cst_21 = arith.constant 0.000000e+00 : f32
    %31 = vector.shape_cast %30 : vector<256x1xi1> to vector<256x1xi1>
    %32 = vector.broadcast %31 : vector<256x1xi1> to vector<256x4xi1>
    %33 = vector.broadcast %cst_21 : f32 to vector<256x4xf32>
    %34 = arith.select %32, %28, %33 : vector<256x4xi1>, vector<256x4xf32>
    %35 = arith.truncf %34 : vector<256x4xf32> to vector<256x4xbf16>
    %c1 = arith.constant 1 : index
    %c0_22 = arith.constant 0 : index
    %c0_23 = arith.constant 0 : index
    %36 = vector.load %arg7[%c1, %c0_22, %c0_23] : memref<9x4x8xbf16, #tpu.memory_space<vmem>>, vector<1x4x8xbf16>
    %37 = vector.shape_cast %36 : vector<1x4x8xbf16> to vector<4x8xbf16>
    %cst_24 = arith.constant dense<0.000000e+00> : vector<256x8xf32>
    %38 = tpu.matmul %35, %37, %cst_24 {dimension_numbers = #tpu.dot_dimension_numbers<[1], [0], [0], [1], [0, 0, 1, 1], [], []>} : vector<256x4xbf16>, vector<4x8xbf16>, vector<256x8xf32> -> vector<256x8xf32>
    %39 = arith.addf %27, %38 : vector<256x8xf32>
    %c15_i32 = arith.constant 15 : i32
    %40 = tpu.dynamic_rotate %9 by %c15_i32 dim 0 : vector<256x4xf32>, i32 -> vector<256x4xf32>
    %c1_i32_25 = arith.constant 1 : i32
    %41 = vector.broadcast %c1_i32_25 : i32 to vector<256x1xi32>
    %42 = arith.cmpi sge, %10, %41 : vector<256x1xi32>
    %c15_i32_26 = arith.constant 15 : i32
    %43 = vector.broadcast %c15_i32_26 : i32 to vector<256x1xi32>
    %44 = arith.cmpi slt, %11, %43 : vector<256x1xi32>
    %45 = arith.andi %42, %44 : vector<256x1xi1>
    %cst_27 = arith.constant 0.000000e+00 : f32
    %46 = vector.shape_cast %45 : vector<256x1xi1> to vector<256x1xi1>
    %47 = vector.broadcast %46 : vector<256x1xi1> to vector<256x4xi1>
    %48 = vector.broadcast %cst_27 : f32 to vector<256x4xf32>
    %49 = arith.select %47, %40, %48 : vector<256x4xi1>, vector<256x4xf32>
    %50 = arith.truncf %49 : vector<256x4xf32> to vector<256x4xbf16>
    %c2 = arith.constant 2 : index
    %c0_28 = arith.constant 0 : index
    %c0_29 = arith.constant 0 : index
    %51 = vector.load %arg7[%c2, %c0_28, %c0_29] : memref<9x4x8xbf16, #tpu.memory_space<vmem>>, vector<1x4x8xbf16>
    %52 = vector.shape_cast %51 : vector<1x4x8xbf16> to vector<4x8xbf16>
    %cst_30 = arith.constant dense<0.000000e+00> : vector<256x8xf32>
    %53 = tpu.matmul %50, %52, %cst_30 {dimension_numbers = #tpu.dot_dimension_numbers<[1], [0], [0], [1], [0, 0, 1, 1], [], []>} : vector<256x4xbf16>, vector<4x8xbf16>, vector<256x8xf32> -> vector<256x8xf32>
    %54 = arith.addf %39, %53 : vector<256x8xf32>
    %c1_i32_31 = arith.constant 1 : i32
    %55 = tpu.dynamic_rotate %9 by %c1_i32_31 dim 0 : vector<256x4xf32>, i32 -> vector<256x4xf32>
    %c1_i32_32 = arith.constant 1 : i32
    %56 = vector.broadcast %c1_i32_32 : i32 to vector<256x1xi32>
    %57 = arith.cmpi sge, %11, %56 : vector<256x1xi32>
    %cst_33 = arith.constant 0.000000e+00 : f32
    %58 = vector.shape_cast %57 : vector<256x1xi1> to vector<256x1xi1>
    %59 = vector.broadcast %58 : vector<256x1xi1> to vector<256x4xi1>
    %60 = vector.broadcast %cst_33 : f32 to vector<256x4xf32>
    %61 = arith.select %59, %55, %60 : vector<256x4xi1>, vector<256x4xf32>
    %62 = arith.truncf %61 : vector<256x4xf32> to vector<256x4xbf16>
    %c3 = arith.constant 3 : index
    %c0_34 = arith.constant 0 : index
    %c0_35 = arith.constant 0 : index
    %63 = vector.load %arg7[%c3, %c0_34, %c0_35] : memref<9x4x8xbf16, #tpu.memory_space<vmem>>, vector<1x4x8xbf16>
    %64 = vector.shape_cast %63 : vector<1x4x8xbf16> to vector<4x8xbf16>
    %cst_36 = arith.constant dense<0.000000e+00> : vector<256x8xf32>
    %65 = tpu.matmul %62, %64, %cst_36 {dimension_numbers = #tpu.dot_dimension_numbers<[1], [0], [0], [1], [0, 0, 1, 1], [], []>} : vector<256x4xbf16>, vector<4x8xbf16>, vector<256x8xf32> -> vector<256x8xf32>
    %66 = arith.addf %54, %65 : vector<256x8xf32>
    %67 = arith.truncf %9 : vector<256x4xf32> to vector<256x4xbf16>
    %c4 = arith.constant 4 : index
    %c0_37 = arith.constant 0 : index
    %c0_38 = arith.constant 0 : index
    %68 = vector.load %arg7[%c4, %c0_37, %c0_38] : memref<9x4x8xbf16, #tpu.memory_space<vmem>>, vector<1x4x8xbf16>
    %69 = vector.shape_cast %68 : vector<1x4x8xbf16> to vector<4x8xbf16>
    %cst_39 = arith.constant dense<0.000000e+00> : vector<256x8xf32>
    %70 = tpu.matmul %67, %69, %cst_39 {dimension_numbers = #tpu.dot_dimension_numbers<[1], [0], [0], [1], [0, 0, 1, 1], [], []>} : vector<256x4xbf16>, vector<4x8xbf16>, vector<256x8xf32> -> vector<256x8xf32>
    %71 = arith.addf %66, %70 : vector<256x8xf32>
    %c255_i32 = arith.constant 255 : i32
    %72 = tpu.dynamic_rotate %9 by %c255_i32 dim 0 : vector<256x4xf32>, i32 -> vector<256x4xf32>
    %c15_i32_40 = arith.constant 15 : i32
    %73 = vector.broadcast %c15_i32_40 : i32 to vector<256x1xi32>
    %74 = arith.cmpi slt, %11, %73 : vector<256x1xi32>
    %cst_41 = arith.constant 0.000000e+00 : f32
    %75 = vector.shape_cast %74 : vector<256x1xi1> to vector<256x1xi1>
    %76 = vector.broadcast %75 : vector<256x1xi1> to vector<256x4xi1>
    %77 = vector.broadcast %cst_41 : f32 to vector<256x4xf32>
    %78 = arith.select %76, %72, %77 : vector<256x4xi1>, vector<256x4xf32>
    %79 = arith.truncf %78 : vector<256x4xf32> to vector<256x4xbf16>
    %c5 = arith.constant 5 : index
    %c0_42 = arith.constant 0 : index
    %c0_43 = arith.constant 0 : index
    %80 = vector.load %arg7[%c5, %c0_42, %c0_43] : memref<9x4x8xbf16, #tpu.memory_space<vmem>>, vector<1x4x8xbf16>
    %81 = vector.shape_cast %80 : vector<1x4x8xbf16> to vector<4x8xbf16>
    %cst_44 = arith.constant dense<0.000000e+00> : vector<256x8xf32>
    %82 = tpu.matmul %79, %81, %cst_44 {dimension_numbers = #tpu.dot_dimension_numbers<[1], [0], [0], [1], [0, 0, 1, 1], [], []>} : vector<256x4xbf16>, vector<4x8xbf16>, vector<256x8xf32> -> vector<256x8xf32>
    %83 = arith.addf %71, %82 : vector<256x8xf32>
    %c241_i32 = arith.constant 241 : i32
    %84 = tpu.dynamic_rotate %9 by %c241_i32 dim 0 : vector<256x4xf32>, i32 -> vector<256x4xf32>
    %c15_i32_45 = arith.constant 15 : i32
    %85 = vector.broadcast %c15_i32_45 : i32 to vector<256x1xi32>
    %86 = arith.cmpi slt, %10, %85 : vector<256x1xi32>
    %c1_i32_46 = arith.constant 1 : i32
    %87 = vector.broadcast %c1_i32_46 : i32 to vector<256x1xi32>
    %88 = arith.cmpi sge, %11, %87 : vector<256x1xi32>
    %89 = arith.andi %86, %88 : vector<256x1xi1>
    %cst_47 = arith.constant 0.000000e+00 : f32
    %90 = vector.shape_cast %89 : vector<256x1xi1> to vector<256x1xi1>
    %91 = vector.broadcast %90 : vector<256x1xi1> to vector<256x4xi1>
    %92 = vector.broadcast %cst_47 : f32 to vector<256x4xf32>
    %93 = arith.select %91, %84, %92 : vector<256x4xi1>, vector<256x4xf32>
    %94 = arith.truncf %93 : vector<256x4xf32> to vector<256x4xbf16>
    %c6 = arith.constant 6 : index
    %c0_48 = arith.constant 0 : index
    %c0_49 = arith.constant 0 : index
    %95 = vector.load %arg7[%c6, %c0_48, %c0_49] : memref<9x4x8xbf16, #tpu.memory_space<vmem>>, vector<1x4x8xbf16>
    %96 = vector.shape_cast %95 : vector<1x4x8xbf16> to vector<4x8xbf16>
    %cst_50 = arith.constant dense<0.000000e+00> : vector<256x8xf32>
    %97 = tpu.matmul %94, %96, %cst_50 {dimension_numbers = #tpu.dot_dimension_numbers<[1], [0], [0], [1], [0, 0, 1, 1], [], []>} : vector<256x4xbf16>, vector<4x8xbf16>, vector<256x8xf32> -> vector<256x8xf32>
    %98 = arith.addf %83, %97 : vector<256x8xf32>
    %c240_i32 = arith.constant 240 : i32
    %99 = tpu.dynamic_rotate %9 by %c240_i32 dim 0 : vector<256x4xf32>, i32 -> vector<256x4xf32>
    %c15_i32_51 = arith.constant 15 : i32
    %100 = vector.broadcast %c15_i32_51 : i32 to vector<256x1xi32>
    %101 = arith.cmpi slt, %10, %100 : vector<256x1xi32>
    %cst_52 = arith.constant 0.000000e+00 : f32
    %102 = vector.shape_cast %101 : vector<256x1xi1> to vector<256x1xi1>
    %103 = vector.broadcast %102 : vector<256x1xi1> to vector<256x4xi1>
    %104 = vector.broadcast %cst_52 : f32 to vector<256x4xf32>
    %105 = arith.select %103, %99, %104 : vector<256x4xi1>, vector<256x4xf32>
    %106 = arith.truncf %105 : vector<256x4xf32> to vector<256x4xbf16>
    %c7 = arith.constant 7 : index
    %c0_53 = arith.constant 0 : index
    %c0_54 = arith.constant 0 : index
    %107 = vector.load %arg7[%c7, %c0_53, %c0_54] : memref<9x4x8xbf16, #tpu.memory_space<vmem>>, vector<1x4x8xbf16>
    %108 = vector.shape_cast %107 : vector<1x4x8xbf16> to vector<4x8xbf16>
    %cst_55 = arith.constant dense<0.000000e+00> : vector<256x8xf32>
    %109 = tpu.matmul %106, %108, %cst_55 {dimension_numbers = #tpu.dot_dimension_numbers<[1], [0], [0], [1], [0, 0, 1, 1], [], []>} : vector<256x4xbf16>, vector<4x8xbf16>, vector<256x8xf32> -> vector<256x8xf32>
    %110 = arith.addf %98, %109 : vector<256x8xf32>
    %c239_i32 = arith.constant 239 : i32
    %111 = tpu.dynamic_rotate %9 by %c239_i32 dim 0 : vector<256x4xf32>, i32 -> vector<256x4xf32>
    %c15_i32_56 = arith.constant 15 : i32
    %112 = vector.broadcast %c15_i32_56 : i32 to vector<256x1xi32>
    %113 = arith.cmpi slt, %10, %112 : vector<256x1xi32>
    %c15_i32_57 = arith.constant 15 : i32
    %114 = vector.broadcast %c15_i32_57 : i32 to vector<256x1xi32>
    %115 = arith.cmpi slt, %11, %114 : vector<256x1xi32>
    %116 = arith.andi %113, %115 : vector<256x1xi1>
    %cst_58 = arith.constant 0.000000e+00 : f32
    %117 = vector.shape_cast %116 : vector<256x1xi1> to vector<256x1xi1>
    %118 = vector.broadcast %117 : vector<256x1xi1> to vector<256x4xi1>
    %119 = vector.broadcast %cst_58 : f32 to vector<256x4xf32>
    %120 = arith.select %118, %111, %119 : vector<256x4xi1>, vector<256x4xf32>
    %121 = arith.truncf %120 : vector<256x4xf32> to vector<256x4xbf16>
    %c8 = arith.constant 8 : index
    %c0_59 = arith.constant 0 : index
    %c0_60 = arith.constant 0 : index
    %122 = vector.load %arg7[%c8, %c0_59, %c0_60] : memref<9x4x8xbf16, #tpu.memory_space<vmem>>, vector<1x4x8xbf16>
    %123 = vector.shape_cast %122 : vector<1x4x8xbf16> to vector<4x8xbf16>
    %cst_61 = arith.constant dense<0.000000e+00> : vector<256x8xf32>
    %124 = tpu.matmul %121, %123, %cst_61 {dimension_numbers = #tpu.dot_dimension_numbers<[1], [0], [0], [1], [0, 0, 1, 1], [], []>} : vector<256x4xbf16>, vector<4x8xbf16>, vector<256x8xf32> -> vector<256x8xf32>
    %125 = arith.addf %110, %124 : vector<256x8xf32>
    %c0_62 = arith.constant 0 : index
    %c0_63 = arith.constant 0 : index
    %126 = vector.load %arg8[%c0_62, %c0_63] : memref<1x8xf32, #tpu.memory_space<vmem>>, vector<1x8xf32>
    %127 = vector.broadcast %126 : vector<1x8xf32> to vector<256x8xf32>
    %128 = arith.addf %125, %127 : vector<256x8xf32>
    %c0_64 = arith.constant 0 : index
    %c0_65 = arith.constant 0 : index
    %c0_66 = arith.constant 0 : index
    %129 = vector.load %arg9[%c0_64, %c0_65, %c0_66] : memref<1x256x8xf32, #tpu.memory_space<vmem>>, vector<1x256x8xf32>
    %130 = vector.shape_cast %129 : vector<1x256x8xf32> to vector<256x8xf32>
    %131 = vector.shape_cast %128 : vector<256x8xf32> to vector<1x256x8xf32>
    tpu.vector_store %arg9[%c0_64, %c0_65, %c0_66], %131 {strides = array<i32>} : memref<1x256x8xf32, #tpu.memory_space<vmem>>, vector<1x256x8xf32>,
    return
  }
  func.func @transform_0(%arg0: i32) -> (i32, i32) {
    %c0_i32 = arith.constant 0 : i32
    %c0_i32_0 = arith.constant 0 : i32
    %c0_i32_1 = arith.constant 0 : i32
    return %c0_i32, %c0_i32_0 : i32, i32
  }
  func.func @transform_1(%arg0: i32) -> (i32, i32) {
    %c0_i32 = arith.constant 0 : i32
    %c0_i32_0 = arith.constant 0 : i32
    %c0_i32_1 = arith.constant 0 : i32
    return %c0_i32, %c0_i32_0 : i32, i32
  }
  func.func @transform_2(%arg0: i32) -> (i32, i32, i32) {
    %c0_i32 = arith.constant 0 : i32
    %c0_i32_0 = arith.constant 0 : i32
    %c0_i32_1 = arith.constant 0 : i32
    return %arg0, %c0_i32, %c0_i32_0 : i32, i32, i32
  }
  func.func @transform_3(%arg0: i32) -> (i32, i32, i32) {
    %c0_i32 = arith.constant 0 : i32
    %c0_i32_0 = arith.constant 0 : i32
    %c0_i32_1 = arith.constant 0 : i32
    return %arg0, %c0_i32, %c0_i32_0 : i32, i32, i32
  }
  func.func @transform_4(%arg0: i32) -> (i32, i32) {
    %c0_i32 = arith.constant 0 : i32
    %c0_i32_0 = arith.constant 0 : i32
    %c0_i32_1 = arith.constant 0 : i32
    return %c0_i32, %c0_i32_0 : i32, i32
  }
  func.func @transform_5(%arg0: i32) -> (i32, i32) {
    %c0_i32 = arith.constant 0 : i32
    %c0_i32_0 = arith.constant 0 : i32
    %c0_i32_1 = arith.constant 0 : i32
    return %c0_i32, %c0_i32_0 : i32, i32
  }
  func.func @transform_6(%arg0: i32) -> (i32, i32, i32) {
    %c0_i32 = arith.constant 0 : i32
    %c0_i32_0 = arith.constant 0 : i32
    %c0_i32_1 = arith.constant 0 : i32
    %c0_i32_2 = arith.constant 0 : i32
    return %c0_i32, %c0_i32_0, %c0_i32_1 : i32, i32, i32
  }
  func.func @transform_7(%arg0: i32) -> (i32, i32) {
    %c0_i32 = arith.constant 0 : i32
    %c0_i32_0 = arith.constant 0 : i32
    %c0_i32_1 = arith.constant 0 : i32
    return %c0_i32, %c0_i32_0 : i32, i32
  }
  func.func @transform_8(%arg0: i32) -> (i32, i32, i32) {
    %c0_i32 = arith.constant 0 : i32
    %c0_i32_0 = arith.constant 0 : i32
    %c0_i32_1 = arith.constant 0 : i32
    return %arg0, %c0_i32, %c0_i32_0 : i32, i32, i32
  }
}

</mosaic_0001>

<llo_original>
// kernel: simple_fpn_forward.5
$region0: #{simple_fpn_forward.5}
  #allocation0 [shape = 'u32[]', space=smem, size = 0x4, offset = 0x4, fixed_abs, tag = 'smem constant byte address 0x4 - core index']
  #allocation1 [shape = 'u32[144,128]{1,0:T(1,128)}', space=vmem, size = 0x12000, scoped, tag = 'internal scratch']
  %s0 = inlined_call_operand.vmem [shape: f32[16,8], index: 0, kind: input, shape index: {}]
  %s1 = inlined_call_operand.vmem [shape: f32[2,8,32], index: 1, kind: input, shape index: {}]
  %s2 = inlined_call_operand.vmem [shape: f32[2,16,32], index: 2, kind: output, shape index: {}]
  %s3 = sld [smem:[#allocation0]]
  $region41: #{simple_fpn_forward.5} parent=0
    _
  %s5 = ssub.s32 1, %s3
  %s6 = scalar_select 0, %s5, %s3
  loop: start=0, step=1, limit=4
  $region2: #{simple_fpn_forward.5} parent=0 // loop_pre_header
    _
  $region3: #{simple_fpn_forward.5} parent=0 // loop_header
    %s8 = sphi 0, %s12
    %p9 = scmp.ge.s32.totalorder %s8, 4
    %s16 = sphi 0, %s16
    %s18 = sphi 0, %s16
    %s19 = sphi 0, %s18
    %s33 = sphi 0, %s19
    %s39 = sphi 0, %s41
    %s42 = sphi 0, %s39
    %s43 = sphi 0, %s42
    %s59 = sphi 0, %s43
    %s65 = sphi 0, %s67
    %s68 = sphi 0, %s65
    %s69 = sphi 0, %s68
    %s85 = sphi 0, %s69
  $region4: #{simple_fpn_forward.5} parent=0 // loop_header_branch
    %11 = sbr.rel (%p9) target = $region8
  $region5: #{simple_fpn_forward.5} parent=0 // loop_body
    %s13 = ssub.s32 %s8, 1
    %s14 = ssub.s32 %s8, 2
    %s15 = sadd.s32 %s8, 1
    %s17 = sadd.s32 %s16, 1
    %p20 = scmp.eq.s32.totalorder %s8, 1
    %p21 = scmp.ne.s32.totalorder %s16, %s18
    %p22 = scmp.eq.s32.totalorder %s8, 0
    %p23 = por %p21, %p22
    %p24 = scmp.ne.s32.totalorder %s16, %s18
    %p25 = scmp.eq.s32.totalorder %s13, 1
    %p26 = por %p24, %p25
    %p27 = scmp.ne.s32.totalorder %s18, %s19
    %p28 = scmp.eq.s32.totalorder %s13, 0
    %p29 = por %p27, %p28
    %p30 = scmp.ne.s32.totalorder %s18, %s19
    %p31 = scmp.eq.s32.totalorder %s14, 1
    %p32 = por %p30, %p31
    %p34 = scmp.ne.s32.totalorder %s19, %s33
    %p35 = scmp.eq.s32.totalorder %s14, 0
    %p36 = por %p34, %p35
    %s37 = ssub.s32 %s8, %s15
    %p38 = scmp.eq.s32.totalorder %s37, 0
    %s40 = sadd.s32 %s39, 1
    %s41 = scalar_select %p38, %s39, %s40
    %p44 = pneg %p38
    %p45 = scmp.eq.s32.totalorder %s8, 1
    %p46 = por %p44, %p45
    %p47 = scmp.ne.s32.totalorder %s39, %s42
    %p48 = scmp.eq.s32.totalorder %s8, 0
    %p49 = por %p47, %p48
    %p50 = scmp.ne.s32.totalorder %s39, %s42
    %p51 = scmp.eq.s32.totalorder %s13, 1
    %p52 = por %p50, %p51
    %p53 = scmp.ne.s32.totalorder %s42, %s43
    %p54 = scmp.eq.s32.totalorder %s13, 0
    %p55 = por %p53, %p54
    %p56 = scmp.ne.s32.totalorder %s42, %s43
    %p57 = scmp.eq.s32.totalorder %s14, 1
    %p58 = por %p56, %p57
    %p60 = scmp.ne.s32.totalorder %s43, %s59
    %p61 = scmp.eq.s32.totalorder %s14, 0
    %p62 = por %p60, %p61
    %s63 = ssub.s32 %s8, %s15
    %p64 = scmp.eq.s32.totalorder %s63, 0
    %s66 = sadd.s32 %s65, 1
    %s67 = scalar_select %p64, %s65, %s66
    %p70 = pneg %p64
    %p71 = scmp.eq.s32.totalorder %s8, 1
    %p72 = por %p70, %p71
    %p73 = scmp.ne.s32.totalorder %s65, %s68
    %p74 = scmp.eq.s32.totalorder %s8, 0
    %p75 = por %p73, %p74
    %p76 = scmp.ne.s32.totalorder %s65, %s68
    %p77 = scmp.eq.s32.totalorder %s13, 1
    %p78 = por %p76, %p77
    %p79 = scmp.ne.s32.totalorder %s68, %s69
    %p80 = scmp.eq.s32.totalorder %s13, 0
    %p81 = por %p79, %p80
    %p82 = scmp.ne.s32.totalorder %s68, %s69
    %p83 = scmp.eq.s32.totalorder %s14, 1
    %p84 = por %p82, %p83
    %p86 = scmp.ne.s32.totalorder %s69, %s85
    %p87 = scmp.eq.s32.totalorder %s14, 0
    %p88 = por %p86, %p87
    %p89 = scmp.le.s32.totalorder 1, %s8
    %p90 = scmp.lt.s32.totalorder %s8, 3
    %p91 = pnand %p89, %p90
    %p92 = pneg %p91
    // Predicated region
    $region9: #{simple_fpn_forward.5} parent=5 // pred_check
      _
    $region10: #{simple_fpn_forward.5} parent=5 // pred_check_branch
      %94 = sbr.rel (%p91) target = $region12
    $region11: #{simple_fpn_forward.5} parent=5 // pred_region
      %s95 = ssub.s32 %s8, 1
      // Predicated region
      $region13: #{simple_fpn_forward.5} parent=11 // pred_check
        %p96 = pneg %p29
      $region14: #{simple_fpn_forward.5} parent=11 // pred_check_branch
        %98 = sbr.rel (%p96) target = $region16
      $region15: #{simple_fpn_forward.5} parent=11 // pred_region
        _
      $region16: #{simple_fpn_forward.5} parent=11 // pred_fallthru
        _
    $region12: #{simple_fpn_forward.5} parent=5 // pred_fallthru
      _
    %p99 = scmp.lt.s32.totalorder %s8, 2
    // Predicated region
    $region17: #{simple_fpn_forward.5} parent=5 // pred_check
      %p100 = pneg %p99
    $region18: #{simple_fpn_forward.5} parent=5 // pred_check_branch
      %102 = sbr.rel (%p100) target = $region20
    $region19: #{simple_fpn_forward.5} parent=5 // pred_region
      // Predicated region
      $region21: #{simple_fpn_forward.5} parent=19 // pred_check
        %p103 = pneg %p49
      $region22: #{simple_fpn_forward.5} parent=19 // pred_check_branch
        %105 = sbr.rel (%p103) target = $region24
      $region23: #{simple_fpn_forward.5} parent=19 // pred_region
        %p106 = scmp.lt.s32.totalorder %s8, 1
        %s107 = scalar_select %p106, %s8, 1
        %s108 = smul.addr %s107, 8
        %s109 = scalar_lea.vmem %s1, %s108
      $region24: #{simple_fpn_forward.5} parent=19 // pred_fallthru
        _
    $region20: #{simple_fpn_forward.5} parent=5 // pred_fallthru
      _
    %p110 = scmp.le.s32.totalorder 1, %s8
    %p111 = scmp.lt.s32.totalorder %s8, 3
    %p112 = pnand %p110, %p111
    %p113 = pneg %p112
    // Predicated region
    $region25: #{simple_fpn_forward.5} parent=5 // pred_check
      _
    $region26: #{simple_fpn_forward.5} parent=5 // pred_check_branch
      %115 = sbr.rel (%p112) target = $region28
    $region27: #{simple_fpn_forward.5} parent=5 // pred_region
      %s116 = ssub.s32 %s8, 1
      %p117 = pneg %p29
      %p118 = pneg %p26
      %p119 = scmp.lt.s32.totalorder %s13, 1
      %s120 = scalar_select %p119, %s13, 1
      %s121 = smul.addr %s120, 8
      %s122 = scalar_lea.vmem %s1, %s121
      %p123 = pneg %p55
      %p124 = pneg %p52
      %p125 = pneg %p81
      %p126 = pneg %p78
      %p127 = scmp.lt.s32.totalorder %s13, 1
      %s128 = scalar_select %p127, %s13, 1
      %s129 = smul.addr %s128, 2
      %s130 = smul.addr %s129, 8
      %s131 = scalar_lea.vmem %s2, %s130
      %p132 = scmp.lt.s32.totalorder %s13, 1
      %s133 = scalar_select %p132, %s13, 1
      %s134 = smul.addr %s133, 8
      %s135 = scalar_lea.vmem %s1, %s134
      %p136 = scmp.lt.s32.totalorder %s13, 1
      %s137 = scalar_select %p136, %s13, 1
      %s138 = smul.addr %s137, 2
      %s139 = smul.addr %s138, 8
      %s140 = scalar_lea.vmem %s2, %s139
      %v141 = vld [vmem:[%s0] sm:$0xff]
      %v142 = vld [vmem:[%s0 + $0x8] sm:$0xff]
      %v143 = vld [vmem:[%s135] sm:$0xff]
      %vm144 = vcmask 64512
      %v146 = vsel %vm144, %v141, 0
      %v149 = vsel %vm144, %v142, 0
      %151 = vmatprep.subr.mxu0 0.0
      %152 = vmatpush1.msra.mxu0 %v143
      %153 = vmatprep.subr.mxu0 0.0
      %154 = vmatpush1.msra.mxu0 0.0
      %155 = vmatprep.subr.mxu0 0.0
      %156 = vmatpush1.msra.mxu0 0.0
      %157 = vmatprep.subr.mxu0 0.0
      %158 = vmatpush1.msra.mxu0 0.0
      %159 = vmatprep.subr.mxu0 0.0
      %160 = vmatpush1.msra.mxu0 0.0
      %161 = vmatprep.subr.mxu0 0.0
      %162 = vmatpush1.msra.mxu0 0.0
      %163 = vmatprep.subr.mxu0 0.0
      %164 = vmatpush1.msra.mxu0 0.0
      %165 = vmatprep.subr.mxu0 0.0
      %166 = vmatpush1.msra.mxu0 0.0
      %167 = vmatprep.subr.mxu0 0.0
      %168 = vmatpush1.msra.mxu0 0.0
      %169 = vmatprep.subr.mxu0 0.0
      %170 = vmatpush1.msra.mxu0 0.0
      %171 = vmatprep.subr.mxu0 0.0
      %172 = vmatpush1.msra.mxu0 0.0
      %173 = vmatprep.subr.mxu0 0.0
      %174 = vmatpush1.msra.mxu0 0.0
      %175 = vmatprep.subr.mxu0 0.0
      %176 = vmatpush1.msra.mxu0 0.0
      %177 = vmatprep.subr.mxu0 0.0
      %178 = vmatpush1.msra.mxu0 0.0
      %179 = vmatprep.subr.mxu0 0.0
      %180 = vmatpush1.msra.mxu0 0.0
      %181 = vmatprep.subr.mxu0 0.0
      %182 = vmatpush1.msra.mxu0 0.0
      %183 = vmatprep.subr.mxu0 0.0
      %184 = vmatpush1.msra.mxu0 0.0
      %185 = vmatprep.subr.mxu0 0.0
      %186 = vmatpush1.msra.mxu0 0.0
      %187 = vmatprep.subr.mxu0 0.0
      %188 = vmatpush1.msra.mxu0 0.0
      %189 = vmatprep.subr.mxu0 0.0
      %190 = vmatpush1.msra.mxu0 0.0
      %191 = vmatprep.subr.mxu0 0.0
      %192 = vmatpush1.msra.mxu0 0.0
      %193 = vmatprep.subr.mxu0 0.0
      %194 = vmatpush1.msra.mxu0 0.0
      %195 = vmatprep.subr.mxu0 0.0
      %196 = vmatpush1.msra.mxu0 0.0
      %197 = vmatprep.subr.mxu0 0.0
      %198 = vmatpush1.msra.mxu0 0.0
      %199 = vmatprep.subr.mxu0 0.0
      %200 = vmatpush1.msra.mxu0 0.0
      %201 = vmatprep.subr.mxu0 0.0
      %202 = vmatpush1.msra.mxu0 0.0
      %203 = vmatprep.subr.mxu0 0.0
      %204 = vmatpush1.msra.mxu0 0.0
      %205 = vmatprep.subr.mxu0 0.0
      %206 = vmatpush1.msra.mxu0 0.0
      %207 = vmatprep.subr.mxu0 0.0
      %208 = vmatpush1.msra.mxu0 0.0
      %209 = vmatprep.subr.mxu0 0.0
      %210 = vmatpush1.msra.mxu0 0.0
      %211 = vmatprep.subr.mxu0 0.0
      %212 = vmatpush1.msra.mxu0 0.0
      %213 = vmatprep.subr.mxu0 0.0
      %214 = vmatpush1.msra.mxu0 0.0
      %215 = vmatprep.mubr.f32.mxu0 0.0
      %216 = vmatmul.mubr.f32.gmra.mrb[0].mxu0 %v146
      %v217 = vpop.f32.mrb[0].mxu0
      %v218 = vadd.f32 0.0, %v217
      %v219 = vpop.f32.mrb[0].mxu0
      %220 = vmatprep.mubr.f32.mxu0 0.0
      %221 = vmatmul.mubr.f32.gmra.mrb[0].mxu0 %v149
      %v222 = vpop.f32.mrb[0].mxu0
      %v223 = vadd.f32 0.0, %v222
      %v224 = vpop.f32.mrb[0].mxu0
      %225 = vdwg.mxu0
      %vm226 = vcmask 261120
      %227 = vst.msk [vmem:[%s140] sm:$0xff] %vm226, %v218
      %228 = vst.msk [vmem:[%s140 + $0x8] sm:$0xff] %vm226, %v223
      %p229 = scmp.lt.s32.totalorder %s13, 1
      %s230 = scalar_select %p229, %s13, 1
      %s231 = smul.addr %s230, 2
      %s232 = smul.addr %s231, 8
      %s233 = scalar_lea.vmem %s2, %s232
      // Predicated region
      $region29: #{simple_fpn_forward.5} parent=27 // pred_check
        %p234 = pneg %p78
      $region30: #{simple_fpn_forward.5} parent=27 // pred_check_branch
        %236 = sbr.rel (%p234) target = $region32
      $region31: #{simple_fpn_forward.5} parent=27 // pred_region
        _
      $region32: #{simple_fpn_forward.5} parent=27 // pred_fallthru
        _
    $region28: #{simple_fpn_forward.5} parent=5 // pred_fallthru
      _
    %p237 = scmp.le.s32.totalorder 2, %s8
    // Predicated region
    $region33: #{simple_fpn_forward.5} parent=5 // pred_check
      %p238 = pneg %p237
    $region34: #{simple_fpn_forward.5} parent=5 // pred_check_branch
      %240 = sbr.rel (%p238) target = $region36
    $region35: #{simple_fpn_forward.5} parent=5 // pred_region
      %s241 = ssub.s32 %s8, 2
      // Predicated region
      $region37: #{simple_fpn_forward.5} parent=35 // pred_check
        %p242 = pneg %p84
      $region38: #{simple_fpn_forward.5} parent=35 // pred_check_branch
        %244 = sbr.rel (%p242) target = $region40
      $region39: #{simple_fpn_forward.5} parent=35 // pred_region
        %p245 = scmp.lt.s32.totalorder %s14, 1
        %s246 = scalar_select %p245, %s14, 1
        %s247 = smul.addr %s246, 2
        %s248 = smul.addr %s247, 8
        %s249 = scalar_lea.vmem %s2, %s248
      $region40: #{simple_fpn_forward.5} parent=35 // pred_fallthru
        _
    $region36: #{simple_fpn_forward.5} parent=5 // pred_fallthru
      _
  $region6: #{simple_fpn_forward.5} parent=0 // loop_footer
    %s12 = sadd.s32 1, %s8
  $region7: #{simple_fpn_forward.5} parent=0 // loop_footer_branch
    %7 = sbr.rel target = $region3
  $region8: #{simple_fpn_forward.5} parent=0 // loop_exit
    _

// kernel: simple_fpn_forward.6
$region0: #{simple_fpn_forward.6}
  #allocation0 [shape = 'u32[]', space=smem, size = 0x4, offset = 0x4, fixed_abs, tag = 'smem constant byte address 0x4 - core index']
  #allocation1 [shape = 'u32[144,128]{1,0:T(1,128)}', space=vmem, size = 0x12000, scoped, tag = 'internal scratch']
  %s0 = inlined_call_operand.vmem [shape: f32[16,8], index: 0, kind: input, shape index: {}]
  %s1 = inlined_call_operand.vmem [shape: f32[2,8,64], index: 1, kind: input, shape index: {}]
  %s2 = inlined_call_operand.vmem [shape: f32[2,16,64], index: 2, kind: output, shape index: {}]
  %s3 = sld [smem:[#allocation0]]
  $region41: #{simple_fpn_forward.6} parent=0
    _
  %s5 = ssub.s32 1, %s3
  %s6 = scalar_select 0, %s5, %s3
  loop: start=0, step=1, limit=4
  $region2: #{simple_fpn_forward.6} parent=0 // loop_pre_header
    _
  $region3: #{simple_fpn_forward.6} parent=0 // loop_header
    %s8 = sphi 0, %s12
    %p9 = scmp.ge.s32.totalorder %s8, 4
    %s16 = sphi 0, %s16
    %s18 = sphi 0, %s16
    %s19 = sphi 0, %s18
    %s33 = sphi 0, %s19
    %s39 = sphi 0, %s41
    %s42 = sphi 0, %s39
    %s43 = sphi 0, %s42
    %s59 = sphi 0, %s43
    %s65 = sphi 0, %s67
    %s68 = sphi 0, %s65
    %s69 = sphi 0, %s68
    %s85 = sphi 0, %s69
  $region4: #{simple_fpn_forward.6} parent=0 // loop_header_branch
    %11 = sbr.rel (%p9) target = $region8
  $region5: #{simple_fpn_forward.6} parent=0 // loop_body
    %s13 = ssub.s32 %s8, 1
    %s14 = ssub.s32 %s8, 2
    %s15 = sadd.s32 %s8, 1
    %s17 = sadd.s32 %s16, 1
    %p20 = scmp.eq.s32.totalorder %s8, 1
    %p21 = scmp.ne.s32.totalorder %s16, %s18
    %p22 = scmp.eq.s32.totalorder %s8, 0
    %p23 = por %p21, %p22
    %p24 = scmp.ne.s32.totalorder %s16, %s18
    %p25 = scmp.eq.s32.totalorder %s13, 1
    %p26 = por %p24, %p25
    %p27 = scmp.ne.s32.totalorder %s18, %s19
    %p28 = scmp.eq.s32.totalorder %s13, 0
    %p29 = por %p27, %p28
    %p30 = scmp.ne.s32.totalorder %s18, %s19
    %p31 = scmp.eq.s32.totalorder %s14, 1
    %p32 = por %p30, %p31
    %p34 = scmp.ne.s32.totalorder %s19, %s33
    %p35 = scmp.eq.s32.totalorder %s14, 0
    %p36 = por %p34, %p35
    %s37 = ssub.s32 %s8, %s15
    %p38 = scmp.eq.s32.totalorder %s37, 0
    %s40 = sadd.s32 %s39, 1
    %s41 = scalar_select %p38, %s39, %s40
    %p44 = pneg %p38
    %p45 = scmp.eq.s32.totalorder %s8, 1
    %p46 = por %p44, %p45
    %p47 = scmp.ne.s32.totalorder %s39, %s42
    %p48 = scmp.eq.s32.totalorder %s8, 0
    %p49 = por %p47, %p48
    %p50 = scmp.ne.s32.totalorder %s39, %s42
    %p51 = scmp.eq.s32.totalorder %s13, 1
    %p52 = por %p50, %p51
    %p53 = scmp.ne.s32.totalorder %s42, %s43
    %p54 = scmp.eq.s32.totalorder %s13, 0
    %p55 = por %p53, %p54
    %p56 = scmp.ne.s32.totalorder %s42, %s43
    %p57 = scmp.eq.s32.totalorder %s14, 1
    %p58 = por %p56, %p57
    %p60 = scmp.ne.s32.totalorder %s43, %s59
    %p61 = scmp.eq.s32.totalorder %s14, 0
    %p62 = por %p60, %p61
    %s63 = ssub.s32 %s8, %s15
    %p64 = scmp.eq.s32.totalorder %s63, 0
    %s66 = sadd.s32 %s65, 1
    %s67 = scalar_select %p64, %s65, %s66
    %p70 = pneg %p64
    %p71 = scmp.eq.s32.totalorder %s8, 1
    %p72 = por %p70, %p71
    %p73 = scmp.ne.s32.totalorder %s65, %s68
    %p74 = scmp.eq.s32.totalorder %s8, 0
    %p75 = por %p73, %p74
    %p76 = scmp.ne.s32.totalorder %s65, %s68
    %p77 = scmp.eq.s32.totalorder %s13, 1
    %p78 = por %p76, %p77
    %p79 = scmp.ne.s32.totalorder %s68, %s69
    %p80 = scmp.eq.s32.totalorder %s13, 0
    %p81 = por %p79, %p80
    %p82 = scmp.ne.s32.totalorder %s68, %s69
    %p83 = scmp.eq.s32.totalorder %s14, 1
    %p84 = por %p82, %p83
    %p86 = scmp.ne.s32.totalorder %s69, %s85
    %p87 = scmp.eq.s32.totalorder %s14, 0
    %p88 = por %p86, %p87
    %p89 = scmp.le.s32.totalorder 1, %s8
    %p90 = scmp.lt.s32.totalorder %s8, 3
    %p91 = pnand %p89, %p90
    %p92 = pneg %p91
    // Predicated region
    $region9: #{simple_fpn_forward.6} parent=5 // pred_check
      _
    $region10: #{simple_fpn_forward.6} parent=5 // pred_check_branch
      %94 = sbr.rel (%p91) target = $region12
    $region11: #{simple_fpn_forward.6} parent=5 // pred_region
      %s95 = ssub.s32 %s8, 1
      // Predicated region
      $region13: #{simple_fpn_forward.6} parent=11 // pred_check
        %p96 = pneg %p29
      $region14: #{simple_fpn_forward.6} parent=11 // pred_check_branch
        %98 = sbr.rel (%p96) target = $region16
      $region15: #{simple_fpn_forward.6} parent=11 // pred_region
        _
      $region16: #{simple_fpn_forward.6} parent=11 // pred_fallthru
        _
    $region12: #{simple_fpn_forward.6} parent=5 // pred_fallthru
      _
    %p99 = scmp.lt.s32.totalorder %s8, 2
    // Predicated region
    $region17: #{simple_fpn_forward.6} parent=5 // pred_check
      %p100 = pneg %p99
    $region18: #{simple_fpn_forward.6} parent=5 // pred_check_branch
      %102 = sbr.rel (%p100) target = $region20
    $region19: #{simple_fpn_forward.6} parent=5 // pred_region
      // Predicated region
      $region21: #{simple_fpn_forward.6} parent=19 // pred_check
        %p103 = pneg %p49
      $region22: #{simple_fpn_forward.6} parent=19 // pred_check_branch
        %105 = sbr.rel (%p103) target = $region24
      $region23: #{simple_fpn_forward.6} parent=19 // pred_region
        %p106 = scmp.lt.s32.totalorder %s8, 1
        %s107 = scalar_select %p106, %s8, 1
        %s108 = smul.addr %s107, 8
        %s109 = scalar_lea.vmem %s1, %s108
      $region24: #{simple_fpn_forward.6} parent=19 // pred_fallthru
        _
    $region20: #{simple_fpn_forward.6} parent=5 // pred_fallthru
      _
    %p110 = scmp.le.s32.totalorder 1, %s8
    %p111 = scmp.lt.s32.totalorder %s8, 3
    %p112 = pnand %p110, %p111
    %p113 = pneg %p112
    // Predicated region
    $region25: #{simple_fpn_forward.6} parent=5 // pred_check
      _
    $region26: #{simple_fpn_forward.6} parent=5 // pred_check_branch
      %115 = sbr.rel (%p112) target = $region28
    $region27: #{simple_fpn_forward.6} parent=5 // pred_region
      %s116 = ssub.s32 %s8, 1
      %p117 = pneg %p29
      %p118 = pneg %p26
      %p119 = scmp.lt.s32.totalorder %s13, 1
      %s120 = scalar_select %p119, %s13, 1
      %s121 = smul.addr %s120, 8
      %s122 = scalar_lea.vmem %s1, %s121
      %p123 = pneg %p55
      %p124 = pneg %p52
      %p125 = pneg %p81
      %p126 = pneg %p78
      %p127 = scmp.lt.s32.totalorder %s13, 1
      %s128 = scalar_select %p127, %s13, 1
      %s129 = smul.addr %s128, 2
      %s130 = smul.addr %s129, 8
      %s131 = scalar_lea.vmem %s2, %s130
      %p132 = scmp.lt.s32.totalorder %s13, 1
      %s133 = scalar_select %p132, %s13, 1
      %s134 = smul.addr %s133, 8
      %s135 = scalar_lea.vmem %s1, %s134
      %p136 = scmp.lt.s32.totalorder %s13, 1
      %s137 = scalar_select %p136, %s13, 1
      %s138 = smul.addr %s137, 2
      %s139 = smul.addr %s138, 8
      %s140 = scalar_lea.vmem %s2, %s139
      %v141 = vld [vmem:[%s0] sm:$0xff]
      %v142 = vld [vmem:[%s0 + $0x8] sm:$0xff]
      %v143 = vld [vmem:[%s135] sm:$0xff]
      %vm144 = vcmask 64512
      %v146 = vsel %vm144, %v141, 0
      %v149 = vsel %vm144, %v142, 0
      %151 = vmatprep.subr.mxu0 0.0
      %152 = vmatpush1.msra.mxu0 %v143
      %153 = vmatprep.subr.mxu0 0.0
      %154 = vmatpush1.msra.mxu0 0.0
      %155 = vmatprep.subr.mxu0 0.0
      %156 = vmatpush1.msra.mxu0 0.0
      %157 = vmatprep.subr.mxu0 0.0
      %158 = vmatpush1.msra.mxu0 0.0
      %159 = vmatprep.subr.mxu0 0.0
      %160 = vmatpush1.msra.mxu0 0.0
      %161 = vmatprep.subr.mxu0 0.0
      %162 = vmatpush1.msra.mxu0 0.0
      %163 = vmatprep.subr.mxu0 0.0
      %164 = vmatpush1.msra.mxu0 0.0
      %165 = vmatprep.subr.mxu0 0.0
      %166 = vmatpush1.msra.mxu0 0.0
      %167 = vmatprep.subr.mxu0 0.0
      %168 = vmatpush1.msra.mxu0 0.0
      %169 = vmatprep.subr.mxu0 0.0
      %170 = vmatpush1.msra.mxu0 0.0
      %171 = vmatprep.subr.mxu0 0.0
      %172 = vmatpush1.msra.mxu0 0.0
      %173 = vmatprep.subr.mxu0 0.0
      %174 = vmatpush1.msra.mxu0 0.0
      %175 = vmatprep.subr.mxu0 0.0
      %176 = vmatpush1.msra.mxu0 0.0
      %177 = vmatprep.subr.mxu0 0.0
      %178 = vmatpush1.msra.mxu0 0.0
      %179 = vmatprep.subr.mxu0 0.0
      %180 = vmatpush1.msra.mxu0 0.0
      %181 = vmatprep.subr.mxu0 0.0
      %182 = vmatpush1.msra.mxu0 0.0
      %183 = vmatprep.subr.mxu0 0.0
      %184 = vmatpush1.msra.mxu0 0.0
      %185 = vmatprep.subr.mxu0 0.0
      %186 = vmatpush1.msra.mxu0 0.0
      %187 = vmatprep.subr.mxu0 0.0
      %188 = vmatpush1.msra.mxu0 0.0
      %189 = vmatprep.subr.mxu0 0.0
      %190 = vmatpush1.msra.mxu0 0.0
      %191 = vmatprep.subr.mxu0 0.0
      %192 = vmatpush1.msra.mxu0 0.0
      %193 = vmatprep.subr.mxu0 0.0
      %194 = vmatpush1.msra.mxu0 0.0
      %195 = vmatprep.subr.mxu0 0.0
      %196 = vmatpush1.msra.mxu0 0.0
      %197 = vmatprep.subr.mxu0 0.0
      %198 = vmatpush1.msra.mxu0 0.0
      %199 = vmatprep.subr.mxu0 0.0
      %200 = vmatpush1.msra.mxu0 0.0
      %201 = vmatprep.subr.mxu0 0.0
      %202 = vmatpush1.msra.mxu0 0.0
      %203 = vmatprep.subr.mxu0 0.0
      %204 = vmatpush1.msra.mxu0 0.0
      %205 = vmatprep.subr.mxu0 0.0
      %206 = vmatpush1.msra.mxu0 0.0
      %207 = vmatprep.subr.mxu0 0.0
      %208 = vmatpush1.msra.mxu0 0.0
      %209 = vmatprep.subr.mxu0 0.0
      %210 = vmatpush1.msra.mxu0 0.0
      %211 = vmatprep.subr.mxu0 0.0
      %212 = vmatpush1.msra.mxu0 0.0
      %213 = vmatprep.subr.mxu0 0.0
      %214 = vmatpush1.msra.mxu0 0.0
      %215 = vmatprep.mubr.f32.mxu0 0.0
      %216 = vmatmul.mubr.f32.gmra.mrb[0].mxu0 %v146
      %v217 = vpop.f32.mrb[0].mxu0
      %v218 = vadd.f32 0.0, %v217
      %v219 = vpop.f32.mrb[0].mxu0
      %220 = vmatprep.mubr.f32.mxu0 0.0
      %221 = vmatmul.mubr.f32.gmra.mrb[0].mxu0 %v149
      %v222 = vpop.f32.mrb[0].mxu0
      %v223 = vadd.f32 0.0, %v222
      %v224 = vpop.f32.mrb[0].mxu0
      %225 = vdwg.mxu0
      %vm226 = vcmask 523264
      %227 = vst.msk [vmem:[%s140] sm:$0xff] %vm226, %v218
      %228 = vst.msk [vmem:[%s140 + $0x8] sm:$0xff] %vm226, %v223
      %p229 = scmp.lt.s32.totalorder %s13, 1
      %s230 = scalar_select %p229, %s13, 1
      %s231 = smul.addr %s230, 2
      %s232 = smul.addr %s231, 8
      %s233 = scalar_lea.vmem %s2, %s232
      // Predicated region
      $region29: #{simple_fpn_forward.6} parent=27 // pred_check
        %p234 = pneg %p78
      $region30: #{simple_fpn_forward.6} parent=27 // pred_check_branch
        %236 = sbr.rel (%p234) target = $region32
      $region31: #{simple_fpn_forward.6} parent=27 // pred_region
        _
      $region32: #{simple_fpn_forward.6} parent=27 // pred_fallthru
        _
    $region28: #{simple_fpn_forward.6} parent=5 // pred_fallthru
      _
    %p237 = scmp.le.s32.totalorder 2, %s8
    // Predicated region
    $region33: #{simple_fpn_forward.6} parent=5 // pred_check
      %p238 = pneg %p237
    $region34: #{simple_fpn_forward.6} parent=5 // pred_check_branch
      %240 = sbr.rel (%p238) target = $region36
    $region35: #{simple_fpn_forward.6} parent=5 // pred_region
      %s241 = ssub.s32 %s8, 2
      // Predicated region
      $region37: #{simple_fpn_forward.6} parent=35 // pred_check
        %p242 = pneg %p84
      $region38: #{simple_fpn_forward.6} parent=35 // pred_check_branch
        %244 = sbr.rel (%p242) target = $region40
      $region39: #{simple_fpn_forward.6} parent=35 // pred_region
        %p245 = scmp.lt.s32.totalorder %s14, 1
        %s246 = scalar_select %p245, %s14, 1
        %s247 = smul.addr %s246, 2
        %s248 = smul.addr %s247, 8
        %s249 = scalar_lea.vmem %s2, %s248
      $region40: #{simple_fpn_forward.6} parent=35 // pred_fallthru
        _
    $region36: #{simple_fpn_forward.6} parent=5 // pred_fallthru
      _
  $region6: #{simple_fpn_forward.6} parent=0 // loop_footer
    %s12 = sadd.s32 1, %s8
  $region7: #{simple_fpn_forward.6} parent=0 // loop_footer_branch
    %7 = sbr.rel target = $region3
  $region8: #{simple_fpn_forward.6} parent=0 // loop_exit
    _

// kernel: simple_fpn_forward.4
$region0: #{simple_fpn_forward.4}
  #allocation0 [shape = 'u32[]', space=smem, size = 0x4, offset = 0x4, fixed_abs, tag = 'smem constant byte address 0x4 - core index']
  #allocation1 [shape = 'u32[144,128]{1,0:T(1,128)}', space=vmem, size = 0x12000, scoped, tag = 'internal scratch']
  %s0 = inlined_call_operand.vmem [shape: bf16[2,64,8], index: 0, kind: input, shape index: {}]
  %s1 = inlined_call_operand.vmem [shape: bf16[8,4], index: 1, kind: input, shape index: {}]
  %s2 = inlined_call_operand.vmem [shape: f32[1,4], index: 2, kind: input, shape index: {}]
  %s3 = inlined_call_operand.vmem [shape: f32[2,64,4], index: 3, kind: output, shape index: {}]
  %s4 = sld [smem:[#allocation0]]
  $region45: #{simple_fpn_forward.4} parent=0
    _
  %s6 = ssub.s32 1, %s4
  %s7 = scalar_select 0, %s6, %s4
  loop: start=0, step=1, limit=4
  $region2: #{simple_fpn_forward.4} parent=0 // loop_pre_header
    _
  $region3: #{simple_fpn_forward.4} parent=0 // loop_header
    %s9 = sphi 0, %s13
    %p10 = scmp.ge.s32.totalorder %s9, 4
    %s16 = sphi 0, %s28
    %s17 = sphi 0, %s24
    %s18 = sphi 0, %s16
    %s19 = sphi 0, %s17
    %s20 = sphi 0, %s18
    %s21 = sphi 0, %s19
    %s33 = sphi 0, %s35
    %s36 = sphi 0, %s33
    %s37 = sphi 0, %s36
    %s53 = sphi 0, %s37
    %s57 = sphi 0, %s57
    %s59 = sphi 0, %s57
    %s60 = sphi 0, %s59
    %s74 = sphi 0, %s60
    %s78 = sphi 0, %s78
    %s80 = sphi 0, %s78
    %s81 = sphi 0, %s80
    %s95 = sphi 0, %s81
    %s103 = sphi 0, %s105
    %s106 = sphi 0, %s103
    %s107 = sphi 0, %s106
    %s123 = sphi 0, %s107
  $region4: #{simple_fpn_forward.4} parent=0 // loop_header_branch
    %12 = sbr.rel (%p10) target = $region8
  $region5: #{simple_fpn_forward.4} parent=0 // loop_body
    %s14 = ssub.s32 %s9, 1
    %s15 = ssub.s32 %s9, 2
    %s22 = sadd.s32 1, %s17
    %p23 = scmp.ge.s32.totalorder %s22, 1
    %s24 = scalar_select %p23, 0, %s22
    %s25 = sadd.s32 1, %s16
    %s26 = scalar_select %p23, %s25, %s16
    %p27 = scmp.ge.s32.totalorder %s26, 2
    %s28 = scalar_select %p27, 0, %s26
    %s29 = ssub.s32 %s16, %s28
    %s30 = ssub.s32 %s17, %s24
    %s31 = sor.u32 %s29, %s30
    %p32 = scmp.eq.s32.totalorder %s31, 0
    %s34 = sadd.s32 %s33, 1
    %s35 = scalar_select %p32, %s33, %s34
    %p38 = pneg %p32
    %p39 = scmp.eq.s32.totalorder %s9, 1
    %p40 = por %p38, %p39
    %p41 = scmp.ne.s32.totalorder %s33, %s36
    %p42 = scmp.eq.s32.totalorder %s9, 0
    %p43 = por %p41, %p42
    %p44 = scmp.ne.s32.totalorder %s33, %s36
    %p45 = scmp.eq.s32.totalorder %s14, 1
    %p46 = por %p44, %p45
    %p47 = scmp.ne.s32.totalorder %s36, %s37
    %p48 = scmp.eq.s32.totalorder %s14, 0
    %p49 = por %p47, %p48
    %p50 = scmp.ne.s32.totalorder %s36, %s37
    %p51 = scmp.eq.s32.totalorder %s15, 1
    %p52 = por %p50, %p51
    %p54 = scmp.ne.s32.totalorder %s37, %s53
    %p55 = scmp.eq.s32.totalorder %s15, 0
    %p56 = por %p54, %p55
    %s58 = sadd.s32 %s57, 1
    %p61 = scmp.eq.s32.totalorder %s9, 1
    %p62 = scmp.ne.s32.totalorder %s57, %s59
    %p63 = scmp.eq.s32.totalorder %s9, 0
    %p64 = por %p62, %p63
    %p65 = scmp.ne.s32.totalorder %s57, %s59
    %p66 = scmp.eq.s32.totalorder %s14, 1
    %p67 = por %p65, %p66
    %p68 = scmp.ne.s32.totalorder %s59, %s60
    %p69 = scmp.eq.s32.totalorder %s14, 0
    %p70 = por %p68, %p69
    %p71 = scmp.ne.s32.totalorder %s59, %s60
    %p72 = scmp.eq.s32.totalorder %s15, 1
    %p73 = por %p71, %p72
    %p75 = scmp.ne.s32.totalorder %s60, %s74
    %p76 = scmp.eq.s32.totalorder %s15, 0
    %p77 = por %p75, %p76
    %s79 = sadd.s32 %s78, 1
    %p82 = scmp.eq.s32.totalorder %s9, 1
    %p83 = scmp.ne.s32.totalorder %s78, %s80
    %p84 = scmp.eq.s32.totalorder %s9, 0
    %p85 = por %p83, %p84
    %p86 = scmp.ne.s32.totalorder %s78, %s80
    %p87 = scmp.eq.s32.totalorder %s14, 1
    %p88 = por %p86, %p87
    %p89 = scmp.ne.s32.totalorder %s80, %s81
    %p90 = scmp.eq.s32.totalorder %s14, 0
    %p91 = por %p89, %p90
    %p92 = scmp.ne.s32.totalorder %s80, %s81
    %p93 = scmp.eq.s32.totalorder %s15, 1
    %p94 = por %p92, %p93
    %p96 = scmp.ne.s32.totalorder %s81, %s95
    %p97 = scmp.eq.s32.totalorder %s15, 0
    %p98 = por %p96, %p97
    %s99 = ssub.s32 %s16, %s28
    %s100 = ssub.s32 %s17, %s24
    %s101 = sor.u32 %s99, %s100
    %p102 = scmp.eq.s32.totalorder %s101, 0
    %s104 = sadd.s32 %s103, 1
    %s105 = scalar_select %p102, %s103, %s104
    %p108 = pneg %p102
    %p109 = scmp.eq.s32.totalorder %s9, 1
    %p110 = por %p108, %p109
    %p111 = scmp.ne.s32.totalorder %s103, %s106
    %p112 = scmp.eq.s32.totalorder %s9, 0
    %p113 = por %p111, %p112
    %p114 = scmp.ne.s32.totalorder %s103, %s106
    %p115 = scmp.eq.s32.totalorder %s14, 1
    %p116 = por %p114, %p115
    %p117 = scmp.ne.s32.totalorder %s106, %s107
    %p118 = scmp.eq.s32.totalorder %s14, 0
    %p119 = por %p117, %p118
    %p120 = scmp.ne.s32.totalorder %s106, %s107
    %p121 = scmp.eq.s32.totalorder %s15, 1
    %p122 = por %p120, %p121
    %p124 = scmp.ne.s32.totalorder %s107, %s123
    %p125 = scmp.eq.s32.totalorder %s15, 0
    %p126 = por %p124, %p125
    %p127 = scmp.le.s32.totalorder 1, %s9
    %p128 = scmp.lt.s32.totalorder %s9, 3
    %p129 = pnand %p127, %p128
    %p130 = pneg %p129
    // Predicated region
    $region9: #{simple_fpn_forward.4} parent=5 // pred_check
      _
    $region10: #{simple_fpn_forward.4} parent=5 // pred_check_branch
      %132 = sbr.rel (%p129) target = $region12
    $region11: #{simple_fpn_forward.4} parent=5 // pred_region
      %s133 = ssub.s32 %s9, 1
      // Predicated region
      $region13: #{simple_fpn_forward.4} parent=11 // pred_check
        %p134 = pneg %p70
      $region14: #{simple_fpn_forward.4} parent=11 // pred_check_branch
        %136 = sbr.rel (%p134) target = $region16
      $region15: #{simple_fpn_forward.4} parent=11 // pred_region
        _
      $region16: #{simple_fpn_forward.4} parent=11 // pred_fallthru
        _
      // Predicated region
      $region17: #{simple_fpn_forward.4} parent=11 // pred_check
        %p137 = pneg %p91
      $region18: #{simple_fpn_forward.4} parent=11 // pred_check_branch
        %139 = sbr.rel (%p137) target = $region20
      $region19: #{simple_fpn_forward.4} parent=11 // pred_region
        _
      $region20: #{simple_fpn_forward.4} parent=11 // pred_fallthru
        _
    $region12: #{simple_fpn_forward.4} parent=5 // pred_fallthru
      _
    %p140 = scmp.lt.s32.totalorder %s9, 2
    // Predicated region
    $region21: #{simple_fpn_forward.4} parent=5 // pred_check
      %p141 = pneg %p140
    $region22: #{simple_fpn_forward.4} parent=5 // pred_check_branch
      %143 = sbr.rel (%p141) target = $region24
    $region23: #{simple_fpn_forward.4} parent=5 // pred_region
      // Predicated region
      $region25: #{simple_fpn_forward.4} parent=23 // pred_check
        %p144 = pneg %p43
      $region26: #{simple_fpn_forward.4} parent=23 // pred_check_branch
        %146 = sbr.rel (%p144) target = $region28
      $region27: #{simple_fpn_forward.4} parent=23 // pred_region
        %s147 = smul.u32 8, %s17
        %p148 = scmp.lt.s32.totalorder %s16, 1
        %s149 = scalar_select %p148, %s16, 1
        %p150 = scmp.lt.s32.totalorder %s147, 7
        %s151 = scalar_select %p150, %s147, 7
        %s152 = smul.addr %s149, 8
        %s153 = sadd.s32 %s151, %s152
        %s154 = smul.addr %s153, 4
        %s155 = scalar_lea.vmem %s0, %s154
        %s156 = smul.u32 8, %s17
      $region28: #{simple_fpn_forward.4} parent=23 // pred_fallthru
        _
    $region24: #{simple_fpn_forward.4} parent=5 // pred_fallthru
      _
    %p157 = scmp.le.s32.totalorder 1, %s9
    %p158 = scmp.lt.s32.totalorder %s9, 3
    %p159 = pnand %p157, %p158
    %p160 = pneg %p159
    // Predicated region
    $region29: #{simple_fpn_forward.4} parent=5 // pred_check
      _
    $region30: #{simple_fpn_forward.4} parent=5 // pred_check_branch
      %162 = sbr.rel (%p159) target = $region32
    $region31: #{simple_fpn_forward.4} parent=5 // pred_region
      %s163 = ssub.s32 %s9, 1
      %s164 = smul.u32 8, %s19
      %p165 = scmp.lt.s32.totalorder %s18, 1
      %s166 = scalar_select %p165, %s18, 1
      %p167 = scmp.lt.s32.totalorder %s164, 7
      %s168 = scalar_select %p167, %s164, 7
      %s169 = smul.addr %s166, 8
      %s170 = sadd.s32 %s168, %s169
      %s171 = smul.addr %s170, 4
      %s172 = scalar_lea.vmem %s0, %s171
      %p173 = pneg %p49
      %p174 = pneg %p46
      %p175 = pneg %p70
      %p176 = pneg %p67
      %p177 = pneg %p91
      %p178 = pneg %p88
      %p179 = pneg %p119
      %p180 = pneg %p116
      %s181 = smul.u32 8, %s19
      %p182 = scmp.lt.s32.totalorder %s18, 1
      %s183 = scalar_select %p182, %s18, 1
      %p184 = scmp.lt.s32.totalorder %s181, 7
      %s185 = scalar_select %p184, %s181, 7
      %s186 = smul.addr %s183, 8
      %s187 = sadd.s32 %s185, %s186
      %s188 = smul.addr %s187, 8
      %s189 = scalar_lea.vmem %s3, %s188
      %s190 = smul.u32 8, %s19
      %p191 = scmp.lt.s32.totalorder %s18, 1
      %s192 = scalar_select %p191, %s18, 1
      %p193 = scmp.lt.s32.totalorder %s190, 7
      %s194 = scalar_select %p193, %s190, 7
      %s195 = smul.addr %s192, 8
      %s196 = sadd.s32 %s194, %s195
      %s197 = smul.addr %s196, 4
      %s198 = scalar_lea.vmem %s0, %s197
      %s199 = smul.u32 8, %s19
      %s200 = smul.u32 8, %s19
      %p201 = scmp.lt.s32.totalorder %s18, 1
      %s202 = scalar_select %p201, %s18, 1
      %p203 = scmp.lt.s32.totalorder %s200, 7
      %s204 = scalar_select %p203, %s200, 7
      %s205 = smul.addr %s202, 8
      %s206 = sadd.s32 %s204, %s205
      %s207 = smul.addr %s206, 8
      %s208 = scalar_lea.vmem %s3, %s207
      %s209 = smul.u32 8, %s19
      %v211 = vld [vmem:[%s198] sm:$0xf]
      %v212 = vld [vmem:[%s198 + $0x4] sm:$0xf]
      %v213 = vld [vmem:[%s198 + $0x8] sm:$0xf]
      %v214 = vld [vmem:[%s198 + $0xc] sm:$0xf]
      %v215 = vld [vmem:[%s198 + $0x10] sm:$0xf]
      %v216 = vld [vmem:[%s198 + $0x14] sm:$0xf]
      %v217 = vld [vmem:[%s198 + $0x18] sm:$0xf]
      %v218 = vld [vmem:[%s198 + $0x1c] sm:$0xf]
      %v219 = vld [vmem:[%s1] sm:$0xf]
      %v220 = vld [vmem:[%s2] sm:$0x1]
      %v222 = vlaneseq
      %v223 = vshrl.u32 %v222, 7
      %v224 = vsub.s32 0, %v223
      %v225 = vrot.slane %v220, %v224
      %v235 = vunpack.c.l.b16 %v211
      %v236 = vunpack.c.l.b16 %v212
      %v237 = vunpack.c.l.b16 %v213
      %v238 = vunpack.c.l.b16 %v214
      %v239 = vunpack.c.l.b16 %v215
      %v240 = vunpack.c.l.b16 %v216
      %v241 = vunpack.c.l.b16 %v217
      %v242 = vunpack.c.l.b16 %v218
      %v243 = vpack.c.b16 %v236, %v235
      %v244 = vpack.c.b16 %v238, %v237
      %v245 = vpack.c.b16 %v240, %v239
      %v246 = vpack.c.b16 %v242, %v241
      %vm247 = vcmask 64512
      %v249 = vsel %vm247, %v243, 0
      %v252 = vsel %vm247, %v244, 0
      %v255 = vsel %vm247, %v245, 0
      %v258 = vsel %vm247, %v246, 0
      %vm260 = vcmask 1043456
      %v262 = vsel %vm260, %v219, 0
      %264 = vmatprep.subr.bf16.mxu0 0
      %265 = vmatpush1.bf16.msra.mxu0 %v262
      %266 = vmatprep.subr.bf16.mxu0 0
      %267 = vmatpush1.bf16.msra.mxu0 0
      %268 = vmatprep.subr.bf16.mxu0 0
      %269 = vmatpush1.bf16.msra.mxu0 0
      %270 = vmatprep.subr.bf16.mxu0 0
      %271 = vmatpush1.bf16.msra.mxu0 0
      %272 = vmatprep.subr.bf16.mxu0 0
      %273 = vmatpush1.bf16.msra.mxu0 0
      %274 = vmatprep.subr.bf16.mxu0 0
      %275 = vmatpush1.bf16.msra.mxu0 0
      %276 = vmatprep.subr.bf16.mxu0 0
      %277 = vmatpush1.bf16.msra.mxu0 0
      %278 = vmatprep.subr.bf16.mxu0 0
      %279 = vmatpush1.bf16.msra.mxu0 0
      %280 = vmatprep.subr.bf16.mxu0 0
      %281 = vmatpush1.bf16.msra.mxu0 0
      %282 = vmatprep.subr.bf16.mxu0 0
      %283 = vmatpush1.bf16.msra.mxu0 0
      %284 = vmatprep.subr.bf16.mxu0 0
      %285 = vmatpush1.bf16.msra.mxu0 0
      %286 = vmatprep.subr.bf16.mxu0 0
      %287 = vmatpush1.bf16.msra.mxu0 0
      %288 = vmatprep.subr.bf16.mxu0 0
      %289 = vmatpush1.bf16.msra.mxu0 0
      %290 = vmatprep.subr.bf16.mxu0 0
      %291 = vmatpush1.bf16.msra.mxu0 0
      %292 = vmatprep.subr.bf16.mxu0 0
      %293 = vmatpush1.bf16.msra.mxu0 0
      %294 = vmatprep.subr.bf16.mxu0 0
      %295 = vmatpush1.bf16.msra.mxu0 0
      %296 = vmatprep.mubr.bf16.mxu0 0
      %297 = vmatmul.mubr.bf16.gmra.mrb[0].mxu0 %v249
      %v298 = vpop.f32.mrb[0].mxu0
      %v299 = vadd.f32 %v225, %v298
      %v300 = vpop.f32.mrb[0].mxu0
      %v301 = vpop.f32.mrb[0].mxu0
      %v302 = vadd.f32 %v225, %v301
      %v303 = vpop.f32.mrb[0].mxu0
      %304 = vmatprep.mubr.bf16.mxu0 0
      %305 = vmatmul.mubr.bf16.gmra.mrb[0].mxu0 %v252
      %v306 = vpop.f32.mrb[0].mxu0
      %v307 = vadd.f32 %v225, %v306
      %v308 = vpop.f32.mrb[0].mxu0
      %v309 = vpop.f32.mrb[0].mxu0
      %v310 = vadd.f32 %v225, %v309
      %v311 = vpop.f32.mrb[0].mxu0
      %312 = vmatprep.mubr.bf16.mxu0 0
      %313 = vmatmul.mubr.bf16.gmra.mrb[0].mxu0 %v255
      %v314 = vpop.f32.mrb[0].mxu0
      %v315 = vadd.f32 %v225, %v314
      %v316 = vpop.f32.mrb[0].mxu0
      %v317 = vpop.f32.mrb[0].mxu0
      %v318 = vadd.f32 %v225, %v317
      %v319 = vpop.f32.mrb[0].mxu0
      %320 = vmatprep.mubr.bf16.mxu0 0
      %321 = vmatmul.mubr.bf16.gmra.mrb[0].mxu0 %v258
      %v322 = vpop.f32.mrb[0].mxu0
      %v323 = vadd.f32 %v225, %v322
      %v324 = vpop.f32.mrb[0].mxu0
      %v325 = vpop.f32.mrb[0].mxu0
      %v326 = vadd.f32 %v225, %v325
      %v327 = vpop.f32.mrb[0].mxu0
      %328 = vdwg.mxu0
      %vm329 = vcmask 31744
      %330 = vst.msk [vmem:[%s208] sm:$0xff] %vm329, %v299
      %331 = vst.msk [vmem:[%s208 + $0x8] sm:$0xff] %vm329, %v302
      %332 = vst.msk [vmem:[%s208 + $0x10] sm:$0xff] %vm329, %v307
      %333 = vst.msk [vmem:[%s208 + $0x18] sm:$0xff] %vm329, %v310
      %334 = vst.msk [vmem:[%s208 + $0x20] sm:$0xff] %vm329, %v315
      %335 = vst.msk [vmem:[%s208 + $0x28] sm:$0xff] %vm329, %v318
      %336 = vst.msk [vmem:[%s208 + $0x30] sm:$0xff] %vm329, %v323
      %337 = vst.msk [vmem:[%s208 + $0x38] sm:$0xff] %vm329, %v326
      %s338 = smul.u32 8, %s19
      %p339 = scmp.lt.s32.totalorder %s18, 1
      %s340 = scalar_select %p339, %s18, 1
      %p341 = scmp.lt.s32.totalorder %s338, 7
      %s342 = scalar_select %p341, %s338, 7
      %s343 = smul.addr %s340, 8
      %s344 = sadd.s32 %s342, %s343
      %s345 = smul.addr %s344, 8
      %s346 = scalar_lea.vmem %s3, %s345
      // Predicated region
      $region33: #{simple_fpn_forward.4} parent=31 // pred_check
        %p347 = pneg %p116
      $region34: #{simple_fpn_forward.4} parent=31 // pred_check_branch
        %349 = sbr.rel (%p347) target = $region36
      $region35: #{simple_fpn_forward.4} parent=31 // pred_region
        %s350 = smul.u32 8, %s19
      $region36: #{simple_fpn_forward.4} parent=31 // pred_fallthru
        _
    $region32: #{simple_fpn_forward.4} parent=5 // pred_fallthru
      _
    %p351 = scmp.le.s32.totalorder 2, %s9
    // Predicated region
    $region37: #{simple_fpn_forward.4} parent=5 // pred_check
      %p352 = pneg %p351
    $region38: #{simple_fpn_forward.4} parent=5 // pred_check_branch
      %354 = sbr.rel (%p352) target = $region40
    $region39: #{simple_fpn_forward.4} parent=5 // pred_region
      %s355 = ssub.s32 %s9, 2
      // Predicated region
      $region41: #{simple_fpn_forward.4} parent=39 // pred_check
        %p356 = pneg %p122
      $region42: #{simple_fpn_forward.4} parent=39 // pred_check_branch
        %358 = sbr.rel (%p356) target = $region44
      $region43: #{simple_fpn_forward.4} parent=39 // pred_region
        %s359 = smul.u32 8, %s21
        %p360 = scmp.lt.s32.totalorder %s20, 1
        %s361 = scalar_select %p360, %s20, 1
        %p362 = scmp.lt.s32.totalorder %s359, 7
        %s363 = scalar_select %p362, %s359, 7
        %s364 = smul.addr %s361, 8
        %s365 = sadd.s32 %s363, %s364
        %s366 = smul.addr %s365, 8
        %s367 = scalar_lea.vmem %s3, %s366
      $region44: #{simple_fpn_forward.4} parent=39 // pred_fallthru
        _
    $region40: #{simple_fpn_forward.4} parent=5 // pred_fallthru
      _
  $region6: #{simple_fpn_forward.4} parent=0 // loop_footer
    %s13 = sadd.s32 1, %s9
  $region7: #{simple_fpn_forward.4} parent=0 // loop_footer_branch
    %8 = sbr.rel target = $region3
  $region8: #{simple_fpn_forward.4} parent=0 // loop_exit
    _

// kernel: simple_fpn_forward.7
$region0: #{simple_fpn_forward.7}
  #allocation0 [shape = 'u32[]', space=smem, size = 0x4, offset = 0x4, fixed_abs, tag = 'smem constant byte address 0x4 - core index']
  #allocation1 [shape = 'u32[144,128]{1,0:T(1,128)}', space=vmem, size = 0x12000, scoped, tag = 'internal scratch']
  %s0 = inlined_call_operand.vmem [shape: s32[256,1], index: 0, kind: input, shape index: {}]
  %s1 = inlined_call_operand.vmem [shape: s32[256,1], index: 1, kind: input, shape index: {}]
  %s2 = inlined_call_operand.vmem [shape: bf16[2,256,8], index: 2, kind: input, shape index: {}]
  %s3 = inlined_call_operand.vmem [shape: f32[2,256,4], index: 3, kind: input, shape index: {}]
  %s4 = inlined_call_operand.vmem [shape: bf16[8,4], index: 4, kind: input, shape index: {}]
  %s5 = inlined_call_operand.vmem [shape: f32[1,4], index: 5, kind: input, shape index: {}]
  %s6 = inlined_call_operand.vmem [shape: bf16[9,4,8], index: 6, kind: input, shape index: {}]
  %s7 = inlined_call_operand.vmem [shape: f32[1,8], index: 7, kind: input, shape index: {}]
  %s8 = inlined_call_operand.vmem [shape: f32[2,256,8], index: 8, kind: output, shape index: {}]
  %s9 = sld [smem:[#allocation0]]
  $region65: #{simple_fpn_forward.7} parent=0
    _
  %s11 = ssub.s32 1, %s9
  %s12 = scalar_select 0, %s11, %s9
  loop: start=0, step=1, limit=4
  $region2: #{simple_fpn_forward.7} parent=0 // loop_pre_header
    _
  $region3: #{simple_fpn_forward.7} parent=0 // loop_header
    %s14 = sphi 0, %s18
    %p15 = scmp.ge.s32.totalorder %s14, 4
    %s22 = sphi 0, %s22
    %s24 = sphi 0, %s22
    %s25 = sphi 0, %s24
    %s39 = sphi 0, %s25
    %s43 = sphi 0, %s43
    %s45 = sphi 0, %s43
    %s46 = sphi 0, %s45
    %s60 = sphi 0, %s46
    %s66 = sphi 0, %s68
    %s69 = sphi 0, %s66
    %s70 = sphi 0, %s69
    %s86 = sphi 0, %s70
    %s92 = sphi 0, %s94
    %s95 = sphi 0, %s92
    %s96 = sphi 0, %s95
    %s112 = sphi 0, %s96
    %s116 = sphi 0, %s116
    %s118 = sphi 0, %s116
    %s119 = sphi 0, %s118
    %s133 = sphi 0, %s119
    %s137 = sphi 0, %s137
    %s139 = sphi 0, %s137
    %s140 = sphi 0, %s139
    %s154 = sphi 0, %s140
    %s158 = sphi 0, %s158
    %s160 = sphi 0, %s158
    %s161 = sphi 0, %s160
    %s175 = sphi 0, %s161
    %s179 = sphi 0, %s179
    %s181 = sphi 0, %s179
    %s182 = sphi 0, %s181
    %s196 = sphi 0, %s182
    %s202 = sphi 0, %s204
    %s205 = sphi 0, %s202
    %s206 = sphi 0, %s205
    %s222 = sphi 0, %s206
  $region4: #{simple_fpn_forward.7} parent=0 // loop_header_branch
    %17 = sbr.rel (%p15) target = $region8
  $region5: #{simple_fpn_forward.7} parent=0 // loop_body
    %s19 = ssub.s32 %s14, 1
    %s20 = ssub.s32 %s14, 2
    %s21 = sadd.s32 %s14, 1
    %s23 = sadd.s32 %s22, 1
    %p26 = scmp.eq.s32.totalorder %s14, 1
    %p27 = scmp.ne.s32.totalorder %s22, %s24
    %p28 = scmp.eq.s32.totalorder %s14, 0
    %p29 = por %p27, %p28
    %p30 = scmp.ne.s32.totalorder %s22, %s24
    %p31 = scmp.eq.s32.totalorder %s19, 1
    %p32 = por %p30, %p31
    %p33 = scmp.ne.s32.totalorder %s24, %s25
    %p34 = scmp.eq.s32.totalorder %s19, 0
    %p35 = por %p33, %p34
    %p36 = scmp.ne.s32.totalorder %s24, %s25
    %p37 = scmp.eq.s32.totalorder %s20, 1
    %p38 = por %p36, %p37
    %p40 = scmp.ne.s32.totalorder %s25, %s39
    %p41 = scmp.eq.s32.totalorder %s20, 0
    %p42 = por %p40, %p41
    %s44 = sadd.s32 %s43, 1
    %p47 = scmp.eq.s32.totalorder %s14, 1
    %p48 = scmp.ne.s32.totalorder %s43, %s45
    %p49 = scmp.eq.s32.totalorder %s14, 0
    %p50 = por %p48, %p49
    %p51 = scmp.ne.s32.totalorder %s43, %s45
    %p52 = scmp.eq.s32.totalorder %s19, 1
    %p53 = por %p51, %p52
    %p54 = scmp.ne.s32.totalorder %s45, %s46
    %p55 = scmp.eq.s32.totalorder %s19, 0
    %p56 = por %p54, %p55
    %p57 = scmp.ne.s32.totalorder %s45, %s46
    %p58 = scmp.eq.s32.totalorder %s20, 1
    %p59 = por %p57, %p58
    %p61 = scmp.ne.s32.totalorder %s46, %s60
    %p62 = scmp.eq.s32.totalorder %s20, 0
    %p63 = por %p61, %p62
    %s64 = ssub.s32 %s14, %s21
    %p65 = scmp.eq.s32.totalorder %s64, 0
    %s67 = sadd.s32 %s66, 1
    %s68 = scalar_select %p65, %s66, %s67
    %p71 = pneg %p65
    %p72 = scmp.eq.s32.totalorder %s14, 1
    %p73 = por %p71, %p72
    %p74 = scmp.ne.s32.totalorder %s66, %s69
    %p75 = scmp.eq.s32.totalorder %s14, 0
    %p76 = por %p74, %p75
    %p77 = scmp.ne.s32.totalorder %s66, %s69
    %p78 = scmp.eq.s32.totalorder %s19, 1
    %p79 = por %p77, %p78
    %p80 = scmp.ne.s32.totalorder %s69, %s70
    %p81 = scmp.eq.s32.totalorder %s19, 0
    %p82 = por %p80, %p81
    %p83 = scmp.ne.s32.totalorder %s69, %s70
    %p84 = scmp.eq.s32.totalorder %s20, 1
    %p85 = por %p83, %p84
    %p87 = scmp.ne.s32.totalorder %s70, %s86
    %p88 = scmp.eq.s32.totalorder %s20, 0
    %p89 = por %p87, %p88
    %s90 = ssub.s32 %s14, %s21
    %p91 = scmp.eq.s32.totalorder %s90, 0
    %s93 = sadd.s32 %s92, 1
    %s94 = scalar_select %p91, %s92, %s93
    %p97 = pneg %p91
    %p98 = scmp.eq.s32.totalorder %s14, 1
    %p99 = por %p97, %p98
    %p100 = scmp.ne.s32.totalorder %s92, %s95
    %p101 = scmp.eq.s32.totalorder %s14, 0
    %p102 = por %p100, %p101
    %p103 = scmp.ne.s32.totalorder %s92, %s95
    %p104 = scmp.eq.s32.totalorder %s19, 1
    %p105 = por %p103, %p104
    %p106 = scmp.ne.s32.totalorder %s95, %s96
    %p107 = scmp.eq.s32.totalorder %s19, 0
    %p108 = por %p106, %p107
    %p109 = scmp.ne.s32.totalorder %s95, %s96
    %p110 = scmp.eq.s32.totalorder %s20, 1
    %p111 = por %p109, %p110
    %p113 = scmp.ne.s32.totalorder %s96, %s112
    %p114 = scmp.eq.s32.totalorder %s20, 0
    %p115 = por %p113, %p114
    %s117 = sadd.s32 %s116, 1
    %p120 = scmp.eq.s32.totalorder %s14, 1
    %p121 = scmp.ne.s32.totalorder %s116, %s118
    %p122 = scmp.eq.s32.totalorder %s14, 0
    %p123 = por %p121, %p122
    %p124 = scmp.ne.s32.totalorder %s116, %s118
    %p125 = scmp.eq.s32.totalorder %s19, 1
    %p126 = por %p124, %p125
    %p127 = scmp.ne.s32.totalorder %s118, %s119
    %p128 = scmp.eq.s32.totalorder %s19, 0
    %p129 = por %p127, %p128
    %p130 = scmp.ne.s32.totalorder %s118, %s119
    %p131 = scmp.eq.s32.totalorder %s20, 1
    %p132 = por %p130, %p131
    %p134 = scmp.ne.s32.totalorder %s119, %s133
    %p135 = scmp.eq.s32.totalorder %s20, 0
    %p136 = por %p134, %p135
    %s138 = sadd.s32 %s137, 1
    %p141 = scmp.eq.s32.totalorder %s14, 1
    %p142 = scmp.ne.s32.totalorder %s137, %s139
    %p143 = scmp.eq.s32.totalorder %s14, 0
    %p144 = por %p142, %p143
    %p145 = scmp.ne.s32.totalorder %s137, %s139
    %p146 = scmp.eq.s32.totalorder %s19, 1
    %p147 = por %p145, %p146
    %p148 = scmp.ne.s32.totalorder %s139, %s140
    %p149 = scmp.eq.s32.totalorder %s19, 0
    %p150 = por %p148, %p149
    %p151 = scmp.ne.s32.totalorder %s139, %s140
    %p152 = scmp.eq.s32.totalorder %s20, 1
    %p153 = por %p151, %p152
    %p155 = scmp.ne.s32.totalorder %s140, %s154
    %p156 = scmp.eq.s32.totalorder %s20, 0
    %p157 = por %p155, %p156
    %s159 = sadd.s32 %s158, 1
    %p162 = scmp.eq.s32.totalorder %s14, 1
    %p163 = scmp.ne.s32.totalorder %s158, %s160
    %p164 = scmp.eq.s32.totalorder %s14, 0
    %p165 = por %p163, %p164
    %p166 = scmp.ne.s32.totalorder %s158, %s160
    %p167 = scmp.eq.s32.totalorder %s19, 1
    %p168 = por %p166, %p167
    %p169 = scmp.ne.s32.totalorder %s160, %s161
    %p170 = scmp.eq.s32.totalorder %s19, 0
    %p171 = por %p169, %p170
    %p172 = scmp.ne.s32.totalorder %s160, %s161
    %p173 = scmp.eq.s32.totalorder %s20, 1
    %p174 = por %p172, %p173
    %p176 = scmp.ne.s32.totalorder %s161, %s175
    %p177 = scmp.eq.s32.totalorder %s20, 0
    %p178 = por %p176, %p177
    %s180 = sadd.s32 %s179, 1
    %p183 = scmp.eq.s32.totalorder %s14, 1
    %p184 = scmp.ne.s32.totalorder %s179, %s181
    %p185 = scmp.eq.s32.totalorder %s14, 0
    %p186 = por %p184, %p185
    %p187 = scmp.ne.s32.totalorder %s179, %s181
    %p188 = scmp.eq.s32.totalorder %s19, 1
    %p189 = por %p187, %p188
    %p190 = scmp.ne.s32.totalorder %s181, %s182
    %p191 = scmp.eq.s32.totalorder %s19, 0
    %p192 = por %p190, %p191
    %p193 = scmp.ne.s32.totalorder %s181, %s182
    %p194 = scmp.eq.s32.totalorder %s20, 1
    %p195 = por %p193, %p194
    %p197 = scmp.ne.s32.totalorder %s182, %s196
    %p198 = scmp.eq.s32.totalorder %s20, 0
    %p199 = por %p197, %p198
    %s200 = ssub.s32 %s14, %s21
    %p201 = scmp.eq.s32.totalorder %s200, 0
    %s203 = sadd.s32 %s202, 1
    %s204 = scalar_select %p201, %s202, %s203
    %p207 = pneg %p201
    %p208 = scmp.eq.s32.totalorder %s14, 1
    %p209 = por %p207, %p208
    %p210 = scmp.ne.s32.totalorder %s202, %s205
    %p211 = scmp.eq.s32.totalorder %s14, 0
    %p212 = por %p210, %p211
    %p213 = scmp.ne.s32.totalorder %s202, %s205
    %p214 = scmp.eq.s32.totalorder %s19, 1
    %p215 = por %p213, %p214
    %p216 = scmp.ne.s32.totalorder %s205, %s206
    %p217 = scmp.eq.s32.totalorder %s19, 0
    %p218 = por %p216, %p217
    %p219 = scmp.ne.s32.totalorder %s205, %s206
    %p220 = scmp.eq.s32.totalorder %s20, 1
    %p221 = por %p219, %p220
    %p223 = scmp.ne.s32.totalorder %s206, %s222
    %p224 = scmp.eq.s32.totalorder %s20, 0
    %p225 = por %p223, %p224
    %p226 = scmp.le.s32.totalorder 1, %s14
    %p227 = scmp.lt.s32.totalorder %s14, 3
    %p228 = pnand %p226, %p227
    %p229 = pneg %p228
    // Predicated region
    $region9: #{simple_fpn_forward.7} parent=5 // pred_check
      _
    $region10: #{simple_fpn_forward.7} parent=5 // pred_check_branch
      %231 = sbr.rel (%p228) target = $region12
    $region11: #{simple_fpn_forward.7} parent=5 // pred_region
      %s232 = ssub.s32 %s14, 1
      // Predicated region
      $region13: #{simple_fpn_forward.7} parent=11 // pred_check
        %p233 = pneg %p35
      $region14: #{simple_fpn_forward.7} parent=11 // pred_check_branch
        %235 = sbr.rel (%p233) target = $region16
      $region15: #{simple_fpn_forward.7} parent=11 // pred_region
        _
      $region16: #{simple_fpn_forward.7} parent=11 // pred_fallthru
        _
      // Predicated region
      $region17: #{simple_fpn_forward.7} parent=11 // pred_check
        %p236 = pneg %p56
      $region18: #{simple_fpn_forward.7} parent=11 // pred_check_branch
        %238 = sbr.rel (%p236) target = $region20
      $region19: #{simple_fpn_forward.7} parent=11 // pred_region
        _
      $region20: #{simple_fpn_forward.7} parent=11 // pred_fallthru
        _
      // Predicated region
      $region21: #{simple_fpn_forward.7} parent=11 // pred_check
        %p239 = pneg %p129
      $region22: #{simple_fpn_forward.7} parent=11 // pred_check_branch
        %241 = sbr.rel (%p239) target = $region24
      $region23: #{simple_fpn_forward.7} parent=11 // pred_region
        _
      $region24: #{simple_fpn_forward.7} parent=11 // pred_fallthru
        _
      // Predicated region
      $region25: #{simple_fpn_forward.7} parent=11 // pred_check
        %p242 = pneg %p150
      $region26: #{simple_fpn_forward.7} parent=11 // pred_check_branch
        %244 = sbr.rel (%p242) target = $region28
      $region27: #{simple_fpn_forward.7} parent=11 // pred_region
        _
      $region28: #{simple_fpn_forward.7} parent=11 // pred_fallthru
        _
      // Predicated region
      $region29: #{simple_fpn_forward.7} parent=11 // pred_check
        %p245 = pneg %p171
      $region30: #{simple_fpn_forward.7} parent=11 // pred_check_branch
        %247 = sbr.rel (%p245) target = $region32
      $region31: #{simple_fpn_forward.7} parent=11 // pred_region
        _
      $region32: #{simple_fpn_forward.7} parent=11 // pred_fallthru
        _
      // Predicated region
      $region33: #{simple_fpn_forward.7} parent=11 // pred_check
        %p248 = pneg %p192
      $region34: #{simple_fpn_forward.7} parent=11 // pred_check_branch
        %250 = sbr.rel (%p248) target = $region36
      $region35: #{simple_fpn_forward.7} parent=11 // pred_region
        _
      $region36: #{simple_fpn_forward.7} parent=11 // pred_fallthru
        _
    $region12: #{simple_fpn_forward.7} parent=5 // pred_fallthru
      _
    %p251 = scmp.lt.s32.totalorder %s14, 2
    // Predicated region
    $region37: #{simple_fpn_forward.7} parent=5 // pred_check
      %p252 = pneg %p251
    $region38: #{simple_fpn_forward.7} parent=5 // pred_check_branch
      %254 = sbr.rel (%p252) target = $region40
    $region39: #{simple_fpn_forward.7} parent=5 // pred_region
      // Predicated region
      $region41: #{simple_fpn_forward.7} parent=39 // pred_check
        %p255 = pneg %p76
      $region42: #{simple_fpn_forward.7} parent=39 // pred_check_branch
        %257 = sbr.rel (%p255) target = $region44
      $region43: #{simple_fpn_forward.7} parent=39 // pred_region
        %p258 = scmp.lt.s32.totalorder %s14, 1
        %s259 = scalar_select %p258, %s14, 1
        %s260 = smul.addr %s259, 32
        %s261 = smul.addr %s260, 4
        %s262 = scalar_lea.vmem %s2, %s261
      $region44: #{simple_fpn_forward.7} parent=39 // pred_fallthru
        _
      // Predicated region
      $region45: #{simple_fpn_forward.7} parent=39 // pred_check
        %p263 = pneg %p102
      $region46: #{simple_fpn_forward.7} parent=39 // pred_check_branch
        %265 = sbr.rel (%p263) target = $region48
      $region47: #{simple_fpn_forward.7} parent=39 // pred_region
        %p266 = scmp.lt.s32.totalorder %s14, 1
        %s267 = scalar_select %p266, %s14, 1
        %s268 = smul.addr %s267, 32
        %s269 = smul.addr %s268, 8
        %s270 = scalar_lea.vmem %s3, %s269
      $region48: #{simple_fpn_forward.7} parent=39 // pred_fallthru
        _
    $region40: #{simple_fpn_forward.7} parent=5 // pred_fallthru
      _
    %p271 = scmp.le.s32.totalorder 1, %s14
    %p272 = scmp.lt.s32.totalorder %s14, 3
    %p273 = pnand %p271, %p272
    %p274 = pneg %p273
    // Predicated region
    $region49: #{simple_fpn_forward.7} parent=5 // pred_check
      _
    $region50: #{simple_fpn_forward.7} parent=5 // pred_check_branch
      %276 = sbr.rel (%p273) target = $region52
    $region51: #{simple_fpn_forward.7} parent=5 // pred_region
      %s277 = ssub.s32 %s14, 1
      %p278 = pneg %p35
      %p279 = pneg %p32
      %p280 = pneg %p56
      %p281 = pneg %p53
      %p282 = scmp.lt.s32.totalorder %s19, 1
      %s283 = scalar_select %p282, %s19, 1
      %s284 = smul.addr %s283, 32
      %s285 = smul.addr %s284, 4
      %s286 = scalar_lea.vmem %s2, %s285
      %p287 = pneg %p82
      %p288 = pneg %p79
      %p289 = scmp.lt.s32.totalorder %s19, 1
      %s290 = scalar_select %p289, %s19, 1
      %s291 = smul.addr %s290, 32
      %s292 = smul.addr %s291, 8
      %s293 = scalar_lea.vmem %s3, %s292
      %p294 = pneg %p108
      %p295 = pneg %p105
      %p296 = pneg %p129
      %p297 = pneg %p126
      %p298 = pneg %p150
      %p299 = pneg %p147
      %p300 = pneg %p171
      %p301 = pneg %p168
      %p302 = pneg %p192
      %p303 = pneg %p189
      %p304 = pneg %p218
      %p305 = pneg %p215
      %p306 = scmp.lt.s32.totalorder %s19, 1
      %s307 = scalar_select %p306, %s19, 1
      %s308 = smul.addr %s307, 32
      %s309 = smul.addr %s308, 8
      %s310 = scalar_lea.vmem %s8, %s309
      %p311 = scmp.lt.s32.totalorder %s19, 1
      %s312 = scalar_select %p311, %s19, 1
      %s313 = smul.addr %s312, 32
      %s314 = smul.addr %s313, 4
      %s315 = scalar_lea.vmem %s2, %s314
      %p316 = scmp.lt.s32.totalorder %s19, 1
      %s317 = scalar_select %p316, %s19, 1
      %s318 = smul.addr %s317, 32
      %s319 = smul.addr %s318, 8
      %s320 = scalar_lea.vmem %s3, %s319
      %p321 = scmp.lt.s32.totalorder %s19, 1
      %s322 = scalar_select %p321, %s19, 1
      %s323 = smul.addr %s322, 32
      %s324 = smul.addr %s323, 8
      %s325 = scalar_lea.vmem %s8, %s324
      %v327 = vld [vmem:[%s315] sm:$0xf]
      %v328 = vld [vmem:[%s315 + $0x4] sm:$0xf]
      %v329 = vld [vmem:[%s315 + $0x8] sm:$0xf]
      %v330 = vld [vmem:[%s315 + $0xc] sm:$0xf]
      %v331 = vld [vmem:[%s315 + $0x10] sm:$0xf]
      %v332 = vld [vmem:[%s315 + $0x14] sm:$0xf]
      %v333 = vld [vmem:[%s315 + $0x18] sm:$0xf]
      %v334 = vld [vmem:[%s315 + $0x1c] sm:$0xf]
      %v335 = vld [vmem:[%s315 + $0x20] sm:$0xf]
      %v336 = vld [vmem:[%s315 + $0x24] sm:$0xf]
      %v337 = vld [vmem:[%s315 + $0x28] sm:$0xf]
      %v338 = vld [vmem:[%s315 + $0x2c] sm:$0xf]
      %v339 = vld [vmem:[%s315 + $0x30] sm:$0xf]
      %v340 = vld [vmem:[%s315 + $0x34] sm:$0xf]
      %v341 = vld [vmem:[%s315 + $0x38] sm:$0xf]
      %v342 = vld [vmem:[%s315 + $0x3c] sm:$0xf]
      %v343 = vld [vmem:[%s315 + $0x40] sm:$0xf]
      %v344 = vld [vmem:[%s315 + $0x44] sm:$0xf]
      %v345 = vld [vmem:[%s315 + $0x48] sm:$0xf]
      %v346 = vld [vmem:[%s315 + $0x4c] sm:$0xf]
      %v347 = vld [vmem:[%s315 + $0x50] sm:$0xf]
      %v348 = vld [vmem:[%s315 + $0x54] sm:$0xf]
      %v349 = vld [vmem:[%s315 + $0x58] sm:$0xf]
      %v350 = vld [vmem:[%s315 + $0x5c] sm:$0xf]
      %v351 = vld [vmem:[%s315 + $0x60] sm:$0xf]
      %v352 = vld [vmem:[%s315 + $0x64] sm:$0xf]
      %v353 = vld [vmem:[%s315 + $0x68] sm:$0xf]
      %v354 = vld [vmem:[%s315 + $0x6c] sm:$0xf]
      %v355 = vld [vmem:[%s315 + $0x70] sm:$0xf]
      %v356 = vld [vmem:[%s315 + $0x74] sm:$0xf]
      %v357 = vld [vmem:[%s315 + $0x78] sm:$0xf]
      %v358 = vld [vmem:[%s315 + $0x7c] sm:$0xf]
      %v359 = vld [vmem:[%s4] sm:$0xf]
      %v360 = vld [vmem:[%s5] sm:$0x1]
      %v362 = vlaneseq
      %v363 = vshrl.u32 %v362, 7
      %v364 = vsub.s32 0, %v363
      %v365 = vrot.slane %v360, %v364
      %v399 = vunpack.c.l.b16 %v327
      %v400 = vunpack.c.l.b16 %v328
      %v401 = vunpack.c.l.b16 %v329
      %v402 = vunpack.c.l.b16 %v330
      %v403 = vunpack.c.l.b16 %v331
      %v404 = vunpack.c.l.b16 %v332
      %v405 = vunpack.c.l.b16 %v333
      %v406 = vunpack.c.l.b16 %v334
      %v407 = vunpack.c.l.b16 %v335
      %v408 = vunpack.c.l.b16 %v336
      %v409 = vunpack.c.l.b16 %v337
      %v410 = vunpack.c.l.b16 %v338
      %v411 = vunpack.c.l.b16 %v339
      %v412 = vunpack.c.l.b16 %v340
      %v413 = vunpack.c.l.b16 %v341
      %v414 = vunpack.c.l.b16 %v342
      %v415 = vunpack.c.l.b16 %v343
      %v416 = vunpack.c.l.b16 %v344
      %v417 = vunpack.c.l.b16 %v345
      %v418 = vunpack.c.l.b16 %v346
      %v419 = vunpack.c.l.b16 %v347
      %v420 = vunpack.c.l.b16 %v348
      %v421 = vunpack.c.l.b16 %v349
      %v422 = vunpack.c.l.b16 %v350
      %v423 = vunpack.c.l.b16 %v351
      %v424 = vunpack.c.l.b16 %v352
      %v425 = vunpack.c.l.b16 %v353
      %v426 = vunpack.c.l.b16 %v354
      %v427 = vunpack.c.l.b16 %v355
      %v428 = vunpack.c.l.b16 %v356
      %v429 = vunpack.c.l.b16 %v357
      %v430 = vunpack.c.l.b16 %v358
      %v431 = vpack.c.b16 %v400, %v399
      %v432 = vpack.c.b16 %v402, %v401
      %v433 = vpack.c.b16 %v404, %v403
      %v434 = vpack.c.b16 %v406, %v405
      %v435 = vpack.c.b16 %v408, %v407
      %v436 = vpack.c.b16 %v410, %v409
      %v437 = vpack.c.b16 %v412, %v411
      %v438 = vpack.c.b16 %v414, %v413
      %v439 = vpack.c.b16 %v416, %v415
      %v440 = vpack.c.b16 %v418, %v417
      %v441 = vpack.c.b16 %v420, %v419
      %v442 = vpack.c.b16 %v422, %v421
      %v443 = vpack.c.b16 %v424, %v423
      %v444 = vpack.c.b16 %v426, %v425
      %v445 = vpack.c.b16 %v428, %v427
      %v446 = vpack.c.b16 %v430, %v429
      %vm447 = vcmask 64512
      %v449 = vsel %vm447, %v431, 0
      %v452 = vsel %vm447, %v432, 0
      %v455 = vsel %vm447, %v433, 0
      %v458 = vsel %vm447, %v434, 0
      %v461 = vsel %vm447, %v435, 0
      %v464 = vsel %vm447, %v436, 0
      %v467 = vsel %vm447, %v437, 0
      %v470 = vsel %vm447, %v438, 0
      %v473 = vsel %vm447, %v439, 0
      %v476 = vsel %vm447, %v440, 0
      %v479 = vsel %vm447, %v441, 0
      %v482 = vsel %vm447, %v442, 0
      %v485 = vsel %vm447, %v443, 0
      %v488 = vsel %vm447, %v444, 0
      %v491 = vsel %vm447, %v445, 0
      %v494 = vsel %vm447, %v446, 0
      %vm496 = vcmask 1043456
      %v498 = vsel %vm496, %v359, 0
      %500 = vmatprep.subr.bf16.mxu0 0
      %501 = vmatpush1.bf16.msra.mxu0 %v498
      %502 = vmatprep.subr.bf16.mxu0 0
      %503 = vmatpush1.bf16.msra.mxu0 0
      %504 = vmatprep.subr.bf16.mxu0 0
      %505 = vmatpush1.bf16.msra.mxu0 0
      %506 = vmatprep.subr.bf16.mxu0 0
      %507 = vmatpush1.bf16.msra.mxu0 0
      %508 = vmatprep.subr.bf16.mxu0 0
      %509 = vmatpush1.bf16.msra.mxu0 0
      %510 = vmatprep.subr.bf16.mxu0 0
      %511 = vmatpush1.bf16.msra.mxu0 0
      %512 = vmatprep.subr.bf16.mxu0 0
      %513 = vmatpush1.bf16.msra.mxu0 0
      %514 = vmatprep.subr.bf16.mxu0 0
      %515 = vmatpush1.bf16.msra.mxu0 0
      %516 = vmatprep.subr.bf16.mxu0 0
      %517 = vmatpush1.bf16.msra.mxu0 0
      %518 = vmatprep.subr.bf16.mxu0 0
      %519 = vmatpush1.bf16.msra.mxu0 0
      %520 = vmatprep.subr.bf16.mxu0 0
      %521 = vmatpush1.bf16.msra.mxu0 0
      %522 = vmatprep.subr.bf16.mxu0 0
      %523 = vmatpush1.bf16.msra.mxu0 0
      %524 = vmatprep.subr.bf16.mxu0 0
      %525 = vmatpush1.bf16.msra.mxu0 0
      %526 = vmatprep.subr.bf16.mxu0 0
      %527 = vmatpush1.bf16.msra.mxu0 0
      %528 = vmatprep.subr.bf16.mxu0 0
      %529 = vmatpush1.bf16.msra.mxu0 0
      %530 = vmatprep.subr.bf16.mxu0 0
      %531 = vmatpush1.bf16.msra.mxu0 0
      %532 = vmatprep.mubr.bf16.mxu0 0
      %533 = vmatmul.mubr.bf16.gmra.mrb[0].mxu0 %v449
      %v534 = vpop.f32.mrb[0].mxu0
      %v535 = vadd.f32 %v365, %v534
      %v536 = vpop.f32.mrb[0].mxu0
      %v537 = vpop.f32.mrb[0].mxu0
      %v538 = vadd.f32 %v365, %v537
      %v539 = vpop.f32.mrb[0].mxu0
      %540 = vmatprep.mubr.bf16.mxu0 0
      %541 = vmatmul.mubr.bf16.gmra.mrb[0].mxu0 %v452
      %v542 = vpop.f32.mrb[0].mxu0
      %v543 = vadd.f32 %v365, %v542
      %v544 = vpop.f32.mrb[0].mxu0
      %v545 = vpop.f32.mrb[0].mxu0
      %v546 = vadd.f32 %v365, %v545
      %v547 = vpop.f32.mrb[0].mxu0
      %548 = vmatprep.mubr.bf16.mxu0 0
      %549 = vmatmul.mubr.bf16.gmra.mrb[0].mxu0 %v455
      %v550 = vpop.f32.mrb[0].mxu0
      %v551 = vadd.f32 %v365, %v550
      %v552 = vpop.f32.mrb[0].mxu0
      %v553 = vpop.f32.mrb[0].mxu0
      %v554 = vadd.f32 %v365, %v553
      %v555 = vpop.f32.mrb[0].mxu0
      %556 = vmatprep.mubr.bf16.mxu0 0
      %557 = vmatmul.mubr.bf16.gmra.mrb[0].mxu0 %v458
      %v558 = vpop.f32.mrb[0].mxu0
      %v559 = vadd.f32 %v365, %v558
      %v560 = vpop.f32.mrb[0].mxu0
      %v561 = vpop.f32.mrb[0].mxu0
      %v562 = vadd.f32 %v365, %v561
      %v563 = vpop.f32.mrb[0].mxu0
      %564 = vmatprep.mubr.bf16.mxu0 0
      %565 = vmatmul.mubr.bf16.gmra.mrb[0].mxu0 %v461
      %v566 = vpop.f32.mrb[0].mxu0
      %v567 = vadd.f32 %v365, %v566
      %v568 = vpop.f32.mrb[0].mxu0
      %v569 = vpop.f32.mrb[0].mxu0
      %v570 = vadd.f32 %v365, %v569
      %v571 = vpop.f32.mrb[0].mxu0
      %572 = vmatprep.mubr.bf16.mxu0 0
      %573 = vmatmul.mubr.bf16.gmra.mrb[0].mxu0 %v464
      %v574 = vpop.f32.mrb[0].mxu0
      %v575 = vadd.f32 %v365, %v574
      %v576 = vpop.f32.mrb[0].mxu0
      %v577 = vpop.f32.mrb[0].mxu0
      %v578 = vadd.f32 %v365, %v577
      %v579 = vpop.f32.mrb[0].mxu0
      %580 = vmatprep.mubr.bf16.mxu0 0
      %581 = vmatmul.mubr.bf16.gmra.mrb[0].mxu0 %v467
      %v582 = vpop.f32.mrb[0].mxu0
      %v583 = vadd.f32 %v365, %v582
      %v584 = vpop.f32.mrb[0].mxu0
      %v585 = vpop.f32.mrb[0].mxu0
      %v586 = vadd.f32 %v365, %v585
      %v587 = vpop.f32.mrb[0].mxu0
      %588 = vmatprep.mubr.bf16.mxu0 0
      %589 = vmatmul.mubr.bf16.gmra.mrb[0].mxu0 %v470
      %v590 = vpop.f32.mrb[0].mxu0
      %v591 = vadd.f32 %v365, %v590
      %v592 = vpop.f32.mrb[0].mxu0
      %v593 = vpop.f32.mrb[0].mxu0
      %v594 = vadd.f32 %v365, %v593
      %v595 = vpop.f32.mrb[0].mxu0
      %596 = vmatprep.mubr.bf16.mxu0 0
      %597 = vmatmul.mubr.bf16.gmra.mrb[0].mxu0 %v473
      %v598 = vpop.f32.mrb[0].mxu0
      %v599 = vadd.f32 %v365, %v598
      %v600 = vpop.f32.mrb[0].mxu0
      %v601 = vpop.f32.mrb[0].mxu0
      %v602 = vadd.f32 %v365, %v601
      %v603 = vpop.f32.mrb[0].mxu0
      %604 = vmatprep.mubr.bf16.mxu0 0
      %605 = vmatmul.mubr.bf16.gmra.mrb[0].mxu0 %v476
      %v606 = vpop.f32.mrb[0].mxu0
      %v607 = vadd.f32 %v365, %v606
      %v608 = vpop.f32.mrb[0].mxu0
      %v609 = vpop.f32.mrb[0].mxu0
      %v610 = vadd.f32 %v365, %v609
      %v611 = vpop.f32.mrb[0].mxu0
      %612 = vmatprep.mubr.bf16.mxu0 0
      %613 = vmatmul.mubr.bf16.gmra.mrb[0].mxu0 %v479
      %v614 = vpop.f32.mrb[0].mxu0
      %v615 = vadd.f32 %v365, %v614
      %v616 = vpop.f32.mrb[0].mxu0
      %v617 = vpop.f32.mrb[0].mxu0
      %v618 = vadd.f32 %v365, %v617
      %v619 = vpop.f32.mrb[0].mxu0
      %620 = vmatprep.mubr.bf16.mxu0 0
      %621 = vmatmul.mubr.bf16.gmra.mrb[0].mxu0 %v482
      %v622 = vpop.f32.mrb[0].mxu0
      %v623 = vadd.f32 %v365, %v622
      %v624 = vpop.f32.mrb[0].mxu0
      %v625 = vpop.f32.mrb[0].mxu0
      %v626 = vadd.f32 %v365, %v625
      %v627 = vpop.f32.mrb[0].mxu0
      %628 = vmatprep.mubr.bf16.mxu0 0
      %629 = vmatmul.mubr.bf16.gmra.mrb[0].mxu0 %v485
      %v630 = vpop.f32.mrb[0].mxu0
      %v631 = vadd.f32 %v365, %v630
      %v632 = vpop.f32.mrb[0].mxu0
      %v633 = vpop.f32.mrb[0].mxu0
      %v634 = vadd.f32 %v365, %v633
      %v635 = vpop.f32.mrb[0].mxu0
      %636 = vmatprep.mubr.bf16.mxu0 0
      %637 = vmatmul.mubr.bf16.gmra.mrb[0].mxu0 %v488
      %v638 = vpop.f32.mrb[0].mxu0
      %v639 = vadd.f32 %v365, %v638
      %v640 = vpop.f32.mrb[0].mxu0
      %v641 = vpop.f32.mrb[0].mxu0
      %v642 = vadd.f32 %v365, %v641
      %v643 = vpop.f32.mrb[0].mxu0
      %644 = vmatprep.mubr.bf16.mxu0 0
      %645 = vmatmul.mubr.bf16.gmra.mrb[0].mxu0 %v491
      %v646 = vpop.f32.mrb[0].mxu0
      %v647 = vadd.f32 %v365, %v646
      %v648 = vpop.f32.mrb[0].mxu0
      %v649 = vpop.f32.mrb[0].mxu0
      %v650 = vadd.f32 %v365, %v649
      %v651 = vpop.f32.mrb[0].mxu0
      %652 = vmatprep.mubr.bf16.mxu0 0
      %653 = vmatmul.mubr.bf16.gmra.mrb[0].mxu0 %v494
      %v654 = vpop.f32.mrb[0].mxu0
      %v655 = vadd.f32 %v365, %v654
      %v656 = vpop.f32.mrb[0].mxu0
      %v657 = vpop.f32.mrb[0].mxu0
      %v658 = vadd.f32 %v365, %v657
      %v659 = vpop.f32.mrb[0].mxu0
      %660 = vdwg.mxu0
      %v661 = vld [vmem:[%s320] sm:$0xff]
      %v662 = vld [vmem:[%s320 + $0x8] sm:$0xff]
      %v663 = vld [vmem:[%s320 + $0x10] sm:$0xff]
      %v664 = vld [vmem:[%s320 + $0x18] sm:$0xff]
      %v665 = vld [vmem:[%s320 + $0x20] sm:$0xff]
      %v666 = vld [vmem:[%s320 + $0x28] sm:$0xff]
      %v667 = vld [vmem:[%s320 + $0x30] sm:$0xff]
      %v668 = vld [vmem:[%s320 + $0x38] sm:$0xff]
      %v669 = vld [vmem:[%s320 + $0x40] sm:$0xff]
      %v670 = vld [vmem:[%s320 + $0x48] sm:$0xff]
      %v671 = vld [vmem:[%s320 + $0x50] sm:$0xff]
      %v672 = vld [vmem:[%s320 + $0x58] sm:$0xff]
      %v673 = vld [vmem:[%s320 + $0x60] sm:$0xff]
      %v674 = vld [vmem:[%s320 + $0x68] sm:$0xff]
      %v675 = vld [vmem:[%s320 + $0x70] sm:$0xff]
      %v676 = vld [vmem:[%s320 + $0x78] sm:$0xff]
      %v677 = vld [vmem:[%s320 + $0x80] sm:$0xff]
      %v678 = vld [vmem:[%s320 + $0x88] sm:$0xff]
      %v679 = vld [vmem:[%s320 + $0x90] sm:$0xff]
      %v680 = vld [vmem:[%s320 + $0x98] sm:$0xff]
      %v681 = vld [vmem:[%s320 + $0xa0] sm:$0xff]
      %v682 = vld [vmem:[%s320 + $0xa8] sm:$0xff]
      %v683 = vld [vmem:[%s320 + $0xb0] sm:$0xff]
      %v684 = vld [vmem:[%s320 + $0xb8] sm:$0xff]
      %v685 = vld [vmem:[%s320 + $0xc0] sm:$0xff]
      %v686 = vld [vmem:[%s320 + $0xc8] sm:$0xff]
      %v687 = vld [vmem:[%s320 + $0xd0] sm:$0xff]
      %v688 = vld [vmem:[%s320 + $0xd8] sm:$0xff]
      %v689 = vld [vmem:[%s320 + $0xe0] sm:$0xff]
      %v690 = vld [vmem:[%s320 + $0xe8] sm:$0xff]
      %v691 = vld [vmem:[%s320 + $0xf0] sm:$0xff]
      %v692 = vld [vmem:[%s320 + $0xf8] sm:$0xff]
      %v693 = vadd.f32 %v535, %v661
      %v694 = vadd.f32 %v538, %v662
      %v695 = vadd.f32 %v543, %v663
      %v696 = vadd.f32 %v546, %v664
      %v697 = vadd.f32 %v551, %v665
      %v698 = vadd.f32 %v554, %v666
      %v699 = vadd.f32 %v559, %v667
      %v700 = vadd.f32 %v562, %v668
      %v701 = vadd.f32 %v567, %v669
      %v702 = vadd.f32 %v570, %v670
      %v703 = vadd.f32 %v575, %v671
      %v704 = vadd.f32 %v578, %v672
      %v705 = vadd.f32 %v583, %v673
      %v706 = vadd.f32 %v586, %v674
      %v707 = vadd.f32 %v591, %v675
      %v708 = vadd.f32 %v594, %v676
      %v709 = vadd.f32 %v599, %v677
      %v710 = vadd.f32 %v602, %v678
      %v711 = vadd.f32 %v607, %v679
      %v712 = vadd.f32 %v610, %v680
      %v713 = vadd.f32 %v615, %v681
      %v714 = vadd.f32 %v618, %v682
      %v715 = vadd.f32 %v623, %v683
      %v716 = vadd.f32 %v626, %v684
      %v717 = vadd.f32 %v631, %v685
      %v718 = vadd.f32 %v634, %v686
      %v719 = vadd.f32 %v639, %v687
      %v720 = vadd.f32 %v642, %v688
      %v721 = vadd.f32 %v647, %v689
      %v722 = vadd.f32 %v650, %v690
      %v723 = vadd.f32 %v655, %v691
      %v724 = vadd.f32 %v658, %v692
      %v725 = vld [vmem:[%s0] sm:$0xff]
      %v726 = vld [vmem:[%s0 + $0x8] sm:$0xff]
      %v727 = vld [vmem:[%s0 + $0x10] sm:$0xff]
      %v728 = vld [vmem:[%s0 + $0x18] sm:$0xff]
      %v729 = vld [vmem:[%s0 + $0x20] sm:$0xff]
      %v730 = vld [vmem:[%s0 + $0x28] sm:$0xff]
      %v731 = vld [vmem:[%s0 + $0x30] sm:$0xff]
      %v732 = vld [vmem:[%s0 + $0x38] sm:$0xff]
      %v733 = vld [vmem:[%s0 + $0x40] sm:$0xff]
      %v734 = vld [vmem:[%s0 + $0x48] sm:$0xff]
      %v735 = vld [vmem:[%s0 + $0x50] sm:$0xff]
      %v736 = vld [vmem:[%s0 + $0x58] sm:$0xff]
      %v737 = vld [vmem:[%s0 + $0x60] sm:$0xff]
      %v738 = vld [vmem:[%s0 + $0x68] sm:$0xff]
      %v739 = vld [vmem:[%s0 + $0x70] sm:$0xff]
      %v740 = vld [vmem:[%s0 + $0x78] sm:$0xff]
      %v741 = vld [vmem:[%s0 + $0x80] sm:$0xff]
      %v742 = vld [vmem:[%s0 + $0x88] sm:$0xff]
      %v743 = vld [vmem:[%s0 + $0x90] sm:$0xff]
      %v744 = vld [vmem:[%s0 + $0x98] sm:$0xff]
      %v745 = vld [vmem:[%s0 + $0xa0] sm:$0xff]
      %v746 = vld [vmem:[%s0 + $0xa8] sm:$0xff]
      %v747 = vld [vmem:[%s0 + $0xb0] sm:$0xff]
      %v748 = vld [vmem:[%s0 + $0xb8] sm:$0xff]
      %v749 = vld [vmem:[%s0 + $0xc0] sm:$0xff]
      %v750 = vld [vmem:[%s0 + $0xc8] sm:$0xff]
      %v751 = vld [vmem:[%s0 + $0xd0] sm:$0xff]
      %v752 = vld [vmem:[%s0 + $0xd8] sm:$0xff]
      %v753 = vld [vmem:[%s0 + $0xe0] sm:$0xff]
      %v754 = vld [vmem:[%s0 + $0xe8] sm:$0xff]
      %v755 = vld [vmem:[%s0 + $0xf0] sm:$0xff]
      %v756 = vld [vmem:[%s0 + $0xf8] sm:$0xff]
      %v757 = vld [vmem:[%s1] sm:$0xff]
      %v758 = vld [vmem:[%s1 + $0x8] sm:$0xff]
      %v759 = vld [vmem:[%s1 + $0x10] sm:$0xff]
      %v760 = vld [vmem:[%s1 + $0x18] sm:$0xff]
      %v761 = vld [vmem:[%s1 + $0x20] sm:$0xff]
      %v762 = vld [vmem:[%s1 + $0x28] sm:$0xff]
      %v763 = vld [vmem:[%s1 + $0x30] sm:$0xff]
      %v764 = vld [vmem:[%s1 + $0x38] sm:$0xff]
      %v765 = vld [vmem:[%s1 + $0x40] sm:$0xff]
      %v766 = vld [vmem:[%s1 + $0x48] sm:$0xff]
      %v767 = vld [vmem:[%s1 + $0x50] sm:$0xff]
      %v768 = vld [vmem:[%s1 + $0x58] sm:$0xff]
      %v769 = vld [vmem:[%s1 + $0x60] sm:$0xff]
      %v770 = vld [vmem:[%s1 + $0x68] sm:$0xff]
      %v771 = vld [vmem:[%s1 + $0x70] sm:$0xff]
      %v772 = vld [vmem:[%s1 + $0x78] sm:$0xff]
      %v773 = vld [vmem:[%s1 + $0x80] sm:$0xff]
      %v774 = vld [vmem:[%s1 + $0x88] sm:$0xff]
      %v775 = vld [vmem:[%s1 + $0x90] sm:$0xff]
      %v776 = vld [vmem:[%s1 + $0x98] sm:$0xff]
      %v777 = vld [vmem:[%s1 + $0xa0] sm:$0xff]
      %v778 = vld [vmem:[%s1 + $0xa8] sm:$0xff]
      %v779 = vld [vmem:[%s1 + $0xb0] sm:$0xff]
      %v780 = vld [vmem:[%s1 + $0xb8] sm:$0xff]
      %v781 = vld [vmem:[%s1 + $0xc0] sm:$0xff]
      %v782 = vld [vmem:[%s1 + $0xc8] sm:$0xff]
      %v783 = vld [vmem:[%s1 + $0xd0] sm:$0xff]
      %v784 = vld [vmem:[%s1 + $0xd8] sm:$0xff]
      %v785 = vld [vmem:[%s1 + $0xe0] sm:$0xff]
      %v786 = vld [vmem:[%s1 + $0xe8] sm:$0xff]
      %v787 = vld [vmem:[%s1 + $0xf0] sm:$0xff]
      %v788 = vld [vmem:[%s1 + $0xf8] sm:$0xff]
      %v789 = vrot.slane %v693, 7
      %v790 = vrot.slane %v694, 7
      %v791 = vrot.slane %v695, 7
      %v792 = vrot.slane %v696, 7
      %v793 = vrot.slane %v697, 7
      %v794 = vrot.slane %v698, 7
      %v795 = vrot.slane %v699, 7
      %v796 = vrot.slane %v700, 7
      %v797 = vrot.slane %v701, 7
      %v798 = vrot.slane %v702, 7
      %v799 = vrot.slane %v703, 7
      %v800 = vrot.slane %v704, 7
      %v801 = vrot.slane %v705, 7
      %v802 = vrot.slane %v706, 7
      %v803 = vrot.slane %v707, 7
      %v804 = vrot.slane %v708, 7
      %v805 = vrot.slane %v709, 7
      %v806 = vrot.slane %v710, 7
      %v807 = vrot.slane %v711, 7
      %v808 = vrot.slane %v712, 7
      %v809 = vrot.slane %v713, 7
      %v810 = vrot.slane %v714, 7
      %v811 = vrot.slane %v715, 7
      %v812 = vrot.slane %v716, 7
      %v813 = vrot.slane %v717, 7
      %v814 = vrot.slane %v718, 7
      %v815 = vrot.slane %v719, 7
      %v816 = vrot.slane %v720, 7
      %v817 = vrot.slane %v721, 7
      %v818 = vrot.slane %v722, 7
      %v819 = vrot.slane %v723, 7
      %v820 = vrot.slane %v724, 7
      %v821 = vlaneseq
      %v822 = vshrl.u32 %v821, 7
      %vm823 = vcmp.lt.s32.totalorder %v822, 1
      %v824 = vsel %vm823, %v819, %v820
      %v825 = vsel %vm823, %v818, %v819
      %v826 = vsel %vm823, %v817, %v818
      %v827 = vsel %vm823, %v816, %v817
      %v828 = vsel %vm823, %v815, %v816
      %v829 = vsel %vm823, %v814, %v815
      %v830 = vsel %vm823, %v813, %v814
      %v831 = vsel %vm823, %v812, %v813
      %v832 = vsel %vm823, %v811, %v812
      %v833 = vsel %vm823, %v810, %v811
      %v834 = vsel %vm823, %v809, %v810
      %v835 = vsel %vm823, %v808, %v809
      %v836 = vsel %vm823, %v807, %v808
      %v837 = vsel %vm823, %v806, %v807
      %v838 = vsel %vm823, %v805, %v806
      %v839 = vsel %vm823, %v804, %v805
      %v840 = vsel %vm823, %v803, %v804
      %v841 = vsel %vm823, %v802, %v803
      %v842 = vsel %vm823, %v801, %v802
      %v843 = vsel %vm823, %v800, %v801
      %v844 = vsel %vm823, %v799, %v800
      %v845 = vsel %vm823, %v798, %v799
      %v846 = vsel %vm823, %v797, %v798
      %v847 = vsel %vm823, %v796, %v797
      %v848 = vsel %vm823, %v795, %v796
      %v849 = vsel %vm823, %v794, %v795
      %v850 = vsel %vm823, %v793, %v794
      %v851 = vsel %vm823, %v792, %v793
      %v852 = vsel %vm823, %v791, %v792
      %v853 = vsel %vm823, %v790, %v791
      %v854 = vsel %vm823, %v789, %v790
      %v855 = vsel %vm823, %v820, %v789
      %vm856 = vcmp.ge.s32.totalorder %v725, 1
      %vm857 = vcmp.ge.s32.totalorder %v726, 1
      %vm858 = vcmp.ge.s32.totalorder %v727, 1
      %vm859 = vcmp.ge.s32.totalorder %v728, 1
      %vm860 = vcmp.ge.s32.totalorder %v729, 1
      %vm861 = vcmp.ge.s32.totalorder %v730, 1
      %vm862 = vcmp.ge.s32.totalorder %v731, 1
      %vm863 = vcmp.ge.s32.totalorder %v732, 1
      %vm864 = vcmp.ge.s32.totalorder %v733, 1
      %vm865 = vcmp.ge.s32.totalorder %v734, 1
      %vm866 = vcmp.ge.s32.totalorder %v735, 1
      %vm867 = vcmp.ge.s32.totalorder %v736, 1
      %vm868 = vcmp.ge.s32.totalorder %v737, 1
      %vm869 = vcmp.ge.s32.totalorder %v738, 1
      %vm870 = vcmp.ge.s32.totalorder %v739, 1
      %vm871 = vcmp.ge.s32.totalorder %v740, 1
      %vm872 = vcmp.ge.s32.totalorder %v741, 1
      %vm873 = vcmp.ge.s32.totalorder %v742, 1
      %vm874 = vcmp.ge.s32.totalorder %v743, 1
      %vm875 = vcmp.ge.s32.totalorder %v744, 1
      %vm876 = vcmp.ge.s32.totalorder %v745, 1
      %vm877 = vcmp.ge.s32.totalorder %v746, 1
      %vm878 = vcmp.ge.s32.totalorder %v747, 1
      %vm879 = vcmp.ge.s32.totalorder %v748, 1
      %vm880 = vcmp.ge.s32.totalorder %v749, 1
      %vm881 = vcmp.ge.s32.totalorder %v750, 1
      %vm882 = vcmp.ge.s32.totalorder %v751, 1
      %vm883 = vcmp.ge.s32.totalorder %v752, 1
      %vm884 = vcmp.ge.s32.totalorder %v753, 1
      %vm885 = vcmp.ge.s32.totalorder %v754, 1
      %vm886 = vcmp.ge.s32.totalorder %v755, 1
      %vm887 = vcmp.ge.s32.totalorder %v756, 1
      %vm888 = vcmp.ge.s32.totalorder %v757, 1
      %vm889 = vcmp.ge.s32.totalorder %v758, 1
      %vm890 = vcmp.ge.s32.totalorder %v759, 1
      %vm891 = vcmp.ge.s32.totalorder %v760, 1
      %vm892 = vcmp.ge.s32.totalorder %v761, 1
      %vm893 = vcmp.ge.s32.totalorder %v762, 1
      %vm894 = vcmp.ge.s32.totalorder %v763, 1
      %vm895 = vcmp.ge.s32.totalorder %v764, 1
      %vm896 = vcmp.ge.s32.totalorder %v765, 1
      %vm897 = vcmp.ge.s32.totalorder %v766, 1
      %vm898 = vcmp.ge.s32.totalorder %v767, 1
      %vm899 = vcmp.ge.s32.totalorder %v768, 1
      %vm900 = vcmp.ge.s32.totalorder %v769, 1
      %vm901 = vcmp.ge.s32.totalorder %v770, 1
      %vm902 = vcmp.ge.s32.totalorder %v771, 1
      %vm903 = vcmp.ge.s32.totalorder %v772, 1
      %vm904 = vcmp.ge.s32.totalorder %v773, 1
      %vm905 = vcmp.ge.s32.totalorder %v774, 1
      %vm906 = vcmp.ge.s32.totalorder %v775, 1
      %vm907 = vcmp.ge.s32.totalorder %v776, 1
      %vm908 = vcmp.ge.s32.totalorder %v777, 1
      %vm909 = vcmp.ge.s32.totalorder %v778, 1
      %vm910 = vcmp.ge.s32.totalorder %v779, 1
      %vm911 = vcmp.ge.s32.totalorder %v780, 1
      %vm912 = vcmp.ge.s32.totalorder %v781, 1
      %vm913 = vcmp.ge.s32.totalorder %v782, 1
      %vm914 = vcmp.ge.s32.totalorder %v783, 1
      %vm915 = vcmp.ge.s32.totalorder %v784, 1
      %vm916 = vcmp.ge.s32.totalorder %v785, 1
      %vm917 = vcmp.ge.s32.totalorder %v786, 1
      %vm918 = vcmp.ge.s32.totalorder %v787, 1
      %vm919 = vcmp.ge.s32.totalorder %v788, 1
      %vm920 = vmand %vm856, %vm888
      %vm921 = vmand %vm857, %vm889
      %vm922 = vmand %vm858, %vm890
      %vm923 = vmand %vm859, %vm891
      %vm924 = vmand %vm860, %vm892
      %vm925 = vmand %vm861, %vm893
      %vm926 = vmand %vm862, %vm894
      %vm927 = vmand %vm863, %vm895
      %vm928 = vmand %vm864, %vm896
      %vm929 = vmand %vm865, %vm897
      %vm930 = vmand %vm866, %vm898
      %vm931 = vmand %vm867, %vm899
      %vm932 = vmand %vm868, %vm900
      %vm933 = vmand %vm869, %vm901
      %vm934 = vmand %vm870, %vm902
      %vm935 = vmand %vm871, %vm903
      %vm936 = vmand %vm872, %vm904
      %vm937 = vmand %vm873, %vm905
      %vm938 = vmand %vm874, %vm906
      %vm939 = vmand %vm875, %vm907
      %vm940 = vmand %vm876, %vm908
      %vm941 = vmand %vm877, %vm909
      %vm942 = vmand %vm878, %vm910
      %vm943 = vmand %vm879, %vm911
      %vm944 = vmand %vm880, %vm912
      %vm945 = vmand %vm881, %vm913
      %vm946 = vmand %vm882, %vm914
      %vm947 = vmand %vm883, %vm915
      %vm948 = vmand %vm884, %vm916
      %vm949 = vmand %vm885, %vm917
      %vm950 = vmand %vm886, %vm918
      %vm951 = vmand %vm887, %vm919
      %v952 = vsel %vm920, 1, 0
      %v953 = vsel %vm921, 1, 0
      %v954 = vsel %vm922, 1, 0
      %v955 = vsel %vm923, 1, 0
      %v956 = vsel %vm924, 1, 0
      %v957 = vsel %vm925, 1, 0
      %v958 = vsel %vm926, 1, 0
      %v959 = vsel %vm927, 1, 0
      %v960 = vsel %vm928, 1, 0
      %v961 = vsel %vm929, 1, 0
      %v962 = vsel %vm930, 1, 0
      %v963 = vsel %vm931, 1, 0
      %v964 = vsel %vm932, 1, 0
      %v965 = vsel %vm933, 1, 0
      %v966 = vsel %vm934, 1, 0
      %v967 = vsel %vm935, 1, 0
      %v968 = vsel %vm936, 1, 0
      %v969 = vsel %vm937, 1, 0
      %v970 = vsel %vm938, 1, 0
      %v971 = vsel %vm939, 1, 0
      %v972 = vsel %vm940, 1, 0
      %v973 = vsel %vm941, 1, 0
      %v974 = vsel %vm942, 1, 0
      %v975 = vsel %vm943, 1, 0
      %v976 = vsel %vm944, 1, 0
      %v977 = vsel %vm945, 1, 0
      %v978 = vsel %vm946, 1, 0
      %v979 = vsel %vm947, 1, 0
      %v980 = vsel %vm948, 1, 0
      %v981 = vsel %vm949, 1, 0
      %v982 = vsel %vm950, 1, 0
      %v983 = vsel %vm951, 1, 0
      %984 = vset.pattern.permute.xlu0 0
      %985 = vperm.xlu0 %984, %v952
      %v986 = vpop.permute.xlu0 %985
      %987 = vset.pattern.permute.xlu0 0
      %988 = vperm.xlu0 %987, %v953
      %v989 = vpop.permute.xlu0 %988
      %990 = vset.pattern.permute.xlu0 0
      %991 = vperm.xlu0 %990, %v954
      %v992 = vpop.permute.xlu0 %991
      %993 = vset.pattern.permute.xlu0 0
      %994 = vperm.xlu0 %993, %v955
      %v995 = vpop.permute.xlu0 %994
      %996 = vset.pattern.permute.xlu0 0
      %997 = vperm.xlu0 %996, %v956
      %v998 = vpop.permute.xlu0 %997
      %999 = vset.pattern.permute.xlu0 0
      %1000 = vperm.xlu0 %999, %v957
      %v1001 = vpop.permute.xlu0 %1000
      %1002 = vset.pattern.permute.xlu0 0
      %1003 = vperm.xlu0 %1002, %v958
      %v1004 = vpop.permute.xlu0 %1003
      %1005 = vset.pattern.permute.xlu0 0
      %1006 = vperm.xlu0 %1005, %v959
      %v1007 = vpop.permute.xlu0 %1006
      %1008 = vset.pattern.permute.xlu0 0
      %1009 = vperm.xlu0 %1008, %v960
      %v1010 = vpop.permute.xlu0 %1009
      %1011 = vset.pattern.permute.xlu0 0
      %1012 = vperm.xlu0 %1011, %v961
      %v1013 = vpop.permute.xlu0 %1012
      %1014 = vset.pattern.permute.xlu0 0
      %1015 = vperm.xlu0 %1014, %v962
      %v1016 = vpop.permute.xlu0 %1015
      %1017 = vset.pattern.permute.xlu0 0
      %1018 = vperm.xlu0 %1017, %v963
      %v1019 = vpop.permute.xlu0 %1018
      %1020 = vset.pattern.permute.xlu0 0
      %1021 = vperm.xlu0 %1020, %v964
      %v1022 = vpop.permute.xlu0 %1021
      %1023 = vset.pattern.permute.xlu0 0
      %1024 = vperm.xlu0 %1023, %v965
      %v1025 = vpop.permute.xlu0 %1024
      %1026 = vset.pattern.permute.xlu0 0
      %1027 = vperm.xlu0 %1026, %v966
      %v1028 = vpop.permute.xlu0 %1027
      %1029 = vset.pattern.permute.xlu0 0
      %1030 = vperm.xlu0 %1029, %v967
      %v1031 = vpop.permute.xlu0 %1030
      %1032 = vset.pattern.permute.xlu0 0
      %1033 = vperm.xlu0 %1032, %v968
      %v1034 = vpop.permute.xlu0 %1033
      %1035 = vset.pattern.permute.xlu0 0
      %1036 = vperm.xlu0 %1035, %v969
      %v1037 = vpop.permute.xlu0 %1036
      %1038 = vset.pattern.permute.xlu0 0
      %1039 = vperm.xlu0 %1038, %v970
      %v1040 = vpop.permute.xlu0 %1039
      %1041 = vset.pattern.permute.xlu0 0
      %1042 = vperm.xlu0 %1041, %v971
      %v1043 = vpop.permute.xlu0 %1042
      %1044 = vset.pattern.permute.xlu0 0
      %1045 = vperm.xlu0 %1044, %v972
      %v1046 = vpop.permute.xlu0 %1045
      %1047 = vset.pattern.permute.xlu0 0
      %1048 = vperm.xlu0 %1047, %v973
      %v1049 = vpop.permute.xlu0 %1048
      %1050 = vset.pattern.permute.xlu0 0
      %1051 = vperm.xlu0 %1050, %v974
      %v1052 = vpop.permute.xlu0 %1051
      %1053 = vset.pattern.permute.xlu0 0
      %1054 = vperm.xlu0 %1053, %v975
      %v1055 = vpop.permute.xlu0 %1054
      %1056 = vset.pattern.permute.xlu0 0
      %1057 = vperm.xlu0 %1056, %v976
      %v1058 = vpop.permute.xlu0 %1057
      %1059 = vset.pattern.permute.xlu0 0
      %1060 = vperm.xlu0 %1059, %v977
      %v1061 = vpop.permute.xlu0 %1060
      %1062 = vset.pattern.permute.xlu0 0
      %1063 = vperm.xlu0 %1062, %v978
      %v1064 = vpop.permute.xlu0 %1063
      %1065 = vset.pattern.permute.xlu0 0
      %1066 = vperm.xlu0 %1065, %v979
      %v1067 = vpop.permute.xlu0 %1066
      %1068 = vset.pattern.permute.xlu0 0
      %1069 = vperm.xlu0 %1068, %v980
      %v1070 = vpop.permute.xlu0 %1069
      %1071 = vset.pattern.permute.xlu0 0
      %1072 = vperm.xlu0 %1071, %v981
      %v1073 = vpop.permute.xlu0 %1072
      %1074 = vset.pattern.permute.xlu0 0
      %1075 = vperm.xlu0 %1074, %v982
      %v1076 = vpop.permute.xlu0 %1075
      %1077 = vset.pattern.permute.xlu0 0
      %1078 = vperm.xlu0 %1077, %v983
      %v1079 = vpop.permute.xlu0 %1078
      %vm1080 = vcmp.eq.s32.totalorder %v986, 1
      %vm1081 = vcmp.eq.s32.totalorder %v989, 1
      %vm1082 = vcmp.eq.s32.totalorder %v992, 1
      %vm1083 = vcmp.eq.s32.totalorder %v995, 1
      %vm1084 = vcmp.eq.s32.totalorder %v998, 1
      %vm1085 = vcmp.eq.s32.totalorder %v1001, 1
      %vm1086 = vcmp.eq.s32.totalorder %v1004, 1
      %vm1087 = vcmp.eq.s32.totalorder %v1007, 1
      %vm1088 = vcmp.eq.s32.totalorder %v1010, 1
      %vm1089 = vcmp.eq.s32.totalorder %v1013, 1
      %vm1090 = vcmp.eq.s32.totalorder %v1016, 1
      %vm1091 = vcmp.eq.s32.totalorder %v1019, 1
      %vm1092 = vcmp.eq.s32.totalorder %v1022, 1
      %vm1093 = vcmp.eq.s32.totalorder %v1025, 1
      %vm1094 = vcmp.eq.s32.totalorder %v1028, 1
      %vm1095 = vcmp.eq.s32.totalorder %v1031, 1
      %vm1096 = vcmp.eq.s32.totalorder %v1034, 1
      %vm1097 = vcmp.eq.s32.totalorder %v1037, 1
      %vm1098 = vcmp.eq.s32.totalorder %v1040, 1
      %vm1099 = vcmp.eq.s32.totalorder %v1043, 1
      %vm1100 = vcmp.eq.s32.totalorder %v1046, 1
      %vm1101 = vcmp.eq.s32.totalorder %v1049, 1
      %vm1102 = vcmp.eq.s32.totalorder %v1052, 1
      %vm1103 = vcmp.eq.s32.totalorder %v1055, 1
      %vm1104 = vcmp.eq.s32.totalorder %v1058, 1
      %vm1105 = vcmp.eq.s32.totalorder %v1061, 1
      %vm1106 = vcmp.eq.s32.totalorder %v1064, 1
      %vm1107 = vcmp.eq.s32.totalorder %v1067, 1
      %vm1108 = vcmp.eq.s32.totalorder %v1070, 1
      %vm1109 = vcmp.eq.s32.totalorder %v1073, 1
      %vm1110 = vcmp.eq.s32.totalorder %v1076, 1
      %vm1111 = vcmp.eq.s32.totalorder %v1079, 1
      %v1112 = vsel %vm1080, %v825, 0.0
      %v1113 = vsel %vm1081, %v824, 0.0
      %v1114 = vsel %vm1082, %v855, 0.0
      %v1115 = vsel %vm1083, %v854, 0.0
      %v1116 = vsel %vm1084, %v853, 0.0
      %v1117 = vsel %vm1085, %v852, 0.0
      %v1118 = vsel %vm1086, %v851, 0.0
      %v1119 = vsel %vm1087, %v850, 0.0
      %v1120 = vsel %vm1088, %v849, 0.0
      %v1121 = vsel %vm1089, %v848, 0.0
      %v1122 = vsel %vm1090, %v847, 0.0
      %v1123 = vsel %vm1091, %v846, 0.0
      %v1124 = vsel %vm1092, %v845, 0.0
      %v1125 = vsel %vm1093, %v844, 0.0
      %v1126 = vsel %vm1094, %v843, 0.0
      %v1127 = vsel %vm1095, %v842, 0.0
      %v1128 = vsel %vm1096, %v841, 0.0
      %v1129 = vsel %vm1097, %v840, 0.0
      %v1130 = vsel %vm1098, %v839, 0.0
      %v1131 = vsel %vm1099, %v838, 0.0
      %v1132 = vsel %vm1100, %v837, 0.0
      %v1133 = vsel %vm1101, %v836, 0.0
      %v1134 = vsel %vm1102, %v835, 0.0
      %v1135 = vsel %vm1103, %v834, 0.0
      %v1136 = vsel %vm1104, %v833, 0.0
      %v1137 = vsel %vm1105, %v832, 0.0
      %v1138 = vsel %vm1106, %v831, 0.0
      %v1139 = vsel %vm1107, %v830, 0.0
      %v1140 = vsel %vm1108, %v829, 0.0
      %v1141 = vsel %vm1109, %v828, 0.0
      %v1142 = vsel %vm1110, %v827, 0.0
      %v1143 = vsel %vm1111, %v826, 0.0
      %v1144 = vpack.c.bf16 %v1113, %v1112
      %v1145 = vpack.c.bf16 %v1115, %v1114
      %v1146 = vpack.c.bf16 %v1117, %v1116
      %v1147 = vpack.c.bf16 %v1119, %v1118
      %v1148 = vpack.c.bf16 %v1121, %v1120
      %v1149 = vpack.c.bf16 %v1123, %v1122
      %v1150 = vpack.c.bf16 %v1125, %v1124
      %v1151 = vpack.c.bf16 %v1127, %v1126
      %v1152 = vpack.c.bf16 %v1129, %v1128
      %v1153 = vpack.c.bf16 %v1131, %v1130
      %v1154 = vpack.c.bf16 %v1133, %v1132
      %v1155 = vpack.c.bf16 %v1135, %v1134
      %v1156 = vpack.c.bf16 %v1137, %v1136
      %v1157 = vpack.c.bf16 %v1139, %v1138
      %v1158 = vpack.c.bf16 %v1141, %v1140
      %v1159 = vpack.c.bf16 %v1143, %v1142
      %v1160 = vld [vmem:[%s6] sm:$0x3]
      %v1161 = vsel %vm856, 1, 0
      %v1162 = vsel %vm857, 1, 0
      %v1163 = vsel %vm858, 1, 0
      %v1164 = vsel %vm859, 1, 0
      %v1165 = vsel %vm860, 1, 0
      %v1166 = vsel %vm861, 1, 0
      %v1167 = vsel %vm862, 1, 0
      %v1168 = vsel %vm863, 1, 0
      %v1169 = vsel %vm864, 1, 0
      %v1170 = vsel %vm865, 1, 0
      %v1171 = vsel %vm866, 1, 0
      %v1172 = vsel %vm867, 1, 0
      %v1173 = vsel %vm868, 1, 0
      %v1174 = vsel %vm869, 1, 0
      %v1175 = vsel %vm870, 1, 0
      %v1176 = vsel %vm871, 1, 0
      %v1177 = vsel %vm872, 1, 0
      %v1178 = vsel %vm873, 1, 0
      %v1179 = vsel %vm874, 1, 0
      %v1180 = vsel %vm875, 1, 0
      %v1181 = vsel %vm876, 1, 0
      %v1182 = vsel %vm877, 1, 0
      %v1183 = vsel %vm878, 1, 0
      %v1184 = vsel %vm879, 1, 0
      %v1185 = vsel %vm880, 1, 0
      %v1186 = vsel %vm881, 1, 0
      %v1187 = vsel %vm882, 1, 0
      %v1188 = vsel %vm883, 1, 0
      %v1189 = vsel %vm884, 1, 0
      %v1190 = vsel %vm885, 1, 0
      %v1191 = vsel %vm886, 1, 0
      %v1192 = vsel %vm887, 1, 0
      %1193 = vset.pattern.permute.xlu0 0
      %1194 = vperm.xlu0 %1193, %v1161
      %v1195 = vpop.permute.xlu0 %1194
      %1196 = vset.pattern.permute.xlu0 0
      %1197 = vperm.xlu0 %1196, %v1162
      %v1198 = vpop.permute.xlu0 %1197
      %1199 = vset.pattern.permute.xlu0 0
      %1200 = vperm.xlu0 %1199, %v1163
      %v1201 = vpop.permute.xlu0 %1200
      %1202 = vset.pattern.permute.xlu0 0
      %1203 = vperm.xlu0 %1202, %v1164
      %v1204 = vpop.permute.xlu0 %1203
      %1205 = vset.pattern.permute.xlu0 0
      %1206 = vperm.xlu0 %1205, %v1165
      %v1207 = vpop.permute.xlu0 %1206
      %1208 = vset.pattern.permute.xlu0 0
      %1209 = vperm.xlu0 %1208, %v1166
      %v1210 = vpop.permute.xlu0 %1209
      %1211 = vset.pattern.permute.xlu0 0
      %1212 = vperm.xlu0 %1211, %v1167
      %v1213 = vpop.permute.xlu0 %1212
      %1214 = vset.pattern.permute.xlu0 0
      %1215 = vperm.xlu0 %1214, %v1168
      %v1216 = vpop.permute.xlu0 %1215
      %1217 = vset.pattern.permute.xlu0 0
      %1218 = vperm.xlu0 %1217, %v1169
      %v1219 = vpop.permute.xlu0 %1218
      %1220 = vset.pattern.permute.xlu0 0
      %1221 = vperm.xlu0 %1220, %v1170
      %v1222 = vpop.permute.xlu0 %1221
      %1223 = vset.pattern.permute.xlu0 0
      %1224 = vperm.xlu0 %1223, %v1171
      %v1225 = vpop.permute.xlu0 %1224
      %1226 = vset.pattern.permute.xlu0 0
      %1227 = vperm.xlu0 %1226, %v1172
      %v1228 = vpop.permute.xlu0 %1227
      %1229 = vset.pattern.permute.xlu0 0
      %1230 = vperm.xlu0 %1229, %v1173
      %v1231 = vpop.permute.xlu0 %1230
      %1232 = vset.pattern.permute.xlu0 0
      %1233 = vperm.xlu0 %1232, %v1174
      %v1234 = vpop.permute.xlu0 %1233
      %1235 = vset.pattern.permute.xlu0 0
      %1236 = vperm.xlu0 %1235, %v1175
      %v1237 = vpop.permute.xlu0 %1236
      %1238 = vset.pattern.permute.xlu0 0
      %1239 = vperm.xlu0 %1238, %v1176
      %v1240 = vpop.permute.xlu0 %1239
      %1241 = vset.pattern.permute.xlu0 0
      %1242 = vperm.xlu0 %1241, %v1177
      %v1243 = vpop.permute.xlu0 %1242
      %1244 = vset.pattern.permute.xlu0 0
      %1245 = vperm.xlu0 %1244, %v1178
      %v1246 = vpop.permute.xlu0 %1245
      %1247 = vset.pattern.permute.xlu0 0
      %1248 = vperm.xlu0 %1247, %v1179
      %v1249 = vpop.permute.xlu0 %1248
      %1250 = vset.pattern.permute.xlu0 0
      %1251 = vperm.xlu0 %1250, %v1180
      %v1252 = vpop.permute.xlu0 %1251
      %1253 = vset.pattern.permute.xlu0 0
      %1254 = vperm.xlu0 %1253, %v1181
      %v1255 = vpop.permute.xlu0 %1254
      %1256 = vset.pattern.permute.xlu0 0
      %1257 = vperm.xlu0 %1256, %v1182
      %v1258 = vpop.permute.xlu0 %1257
      %1259 = vset.pattern.permute.xlu0 0
      %1260 = vperm.xlu0 %1259, %v1183
      %v1261 = vpop.permute.xlu0 %1260
      %1262 = vset.pattern.permute.xlu0 0
      %1263 = vperm.xlu0 %1262, %v1184
      %v1264 = vpop.permute.xlu0 %1263
      %1265 = vset.pattern.permute.xlu0 0
      %1266 = vperm.xlu0 %1265, %v1185
      %v1267 = vpop.permute.xlu0 %1266
      %1268 = vset.pattern.permute.xlu0 0
      %1269 = vperm.xlu0 %1268, %v1186
      %v1270 = vpop.permute.xlu0 %1269
      %1271 = vset.pattern.permute.xlu0 0
      %1272 = vperm.xlu0 %1271, %v1187
      %v1273 = vpop.permute.xlu0 %1272
      %1274 = vset.pattern.permute.xlu0 0
      %1275 = vperm.xlu0 %1274, %v1188
      %v1276 = vpop.permute.xlu0 %1275
      %1277 = vset.pattern.permute.xlu0 0
      %1278 = vperm.xlu0 %1277, %v1189
      %v1279 = vpop.permute.xlu0 %1278
      %1280 = vset.pattern.permute.xlu0 0
      %1281 = vperm.xlu0 %1280, %v1190
      %v1282 = vpop.permute.xlu0 %1281
      %1283 = vset.pattern.permute.xlu0 0
      %1284 = vperm.xlu0 %1283, %v1191
      %v1285 = vpop.permute.xlu0 %1284
      %1286 = vset.pattern.permute.xlu0 0
      %1287 = vperm.xlu0 %1286, %v1192
      %v1288 = vpop.permute.xlu0 %1287
      %vm1289 = vcmp.eq.s32.totalorder %v1195, 1
      %vm1290 = vcmp.eq.s32.totalorder %v1198, 1
      %vm1291 = vcmp.eq.s32.totalorder %v1201, 1
      %vm1292 = vcmp.eq.s32.totalorder %v1204, 1
      %vm1293 = vcmp.eq.s32.totalorder %v1207, 1
      %vm1294 = vcmp.eq.s32.totalorder %v1210, 1
      %vm1295 = vcmp.eq.s32.totalorder %v1213, 1
      %vm1296 = vcmp.eq.s32.totalorder %v1216, 1
      %vm1297 = vcmp.eq.s32.totalorder %v1219, 1
      %vm1298 = vcmp.eq.s32.totalorder %v1222, 1
      %vm1299 = vcmp.eq.s32.totalorder %v1225, 1
      %vm1300 = vcmp.eq.s32.totalorder %v1228, 1
      %vm1301 = vcmp.eq.s32.totalorder %v1231, 1
      %vm1302 = vcmp.eq.s32.totalorder %v1234, 1
      %vm1303 = vcmp.eq.s32.totalorder %v1237, 1
      %vm1304 = vcmp.eq.s32.totalorder %v1240, 1
      %vm1305 = vcmp.eq.s32.totalorder %v1243, 1
      %vm1306 = vcmp.eq.s32.totalorder %v1246, 1
      %vm1307 = vcmp.eq.s32.totalorder %v1249, 1
      %vm1308 = vcmp.eq.s32.totalorder %v1252, 1
      %vm1309 = vcmp.eq.s32.totalorder %v1255, 1
      %vm1310 = vcmp.eq.s32.totalorder %v1258, 1
      %vm1311 = vcmp.eq.s32.totalorder %v1261, 1
      %vm1312 = vcmp.eq.s32.totalorder %v1264, 1
      %vm1313 = vcmp.eq.s32.totalorder %v1267, 1
      %vm1314 = vcmp.eq.s32.totalorder %v1270, 1
      %vm1315 = vcmp.eq.s32.totalorder %v1273, 1
      %vm1316 = vcmp.eq.s32.totalorder %v1276, 1
      %vm1317 = vcmp.eq.s32.totalorder %v1279, 1
      %vm1318 = vcmp.eq.s32.totalorder %v1282, 1
      %vm1319 = vcmp.eq.s32.totalorder %v1285, 1
      %vm1320 = vcmp.eq.s32.totalorder %v1288, 1
      %v1321 = vsel %vm1289, %v723, 0.0
      %v1322 = vsel %vm1290, %v724, 0.0
      %v1323 = vsel %vm1291, %v693, 0.0
      %v1324 = vsel %vm1292, %v694, 0.0
      %v1325 = vsel %vm1293, %v695, 0.0
      %v1326 = vsel %vm1294, %v696, 0.0
      %v1327 = vsel %vm1295, %v697, 0.0
      %v1328 = vsel %vm1296, %v698, 0.0
      %v1329 = vsel %vm1297, %v699, 0.0
      %v1330 = vsel %vm1298, %v700, 0.0
      %v1331 = vsel %vm1299, %v701, 0.0
      %v1332 = vsel %vm1300, %v702, 0.0
      %v1333 = vsel %vm1301, %v703, 0.0
      %v1334 = vsel %vm1302, %v704, 0.0
      %v1335 = vsel %vm1303, %v705, 0.0
      %v1336 = vsel %vm1304, %v706, 0.0
      %v1337 = vsel %vm1305, %v707, 0.0
      %v1338 = vsel %vm1306, %v708, 0.0
      %v1339 = vsel %vm1307, %v709, 0.0
      %v1340 = vsel %vm1308, %v710, 0.0
      %v1341 = vsel %vm1309, %v711, 0.0
      %v1342 = vsel %vm1310, %v712, 0.0
      %v1343 = vsel %vm1311, %v713, 0.0
      %v1344 = vsel %vm1312, %v714, 0.0
      %v1345 = vsel %vm1313, %v715, 0.0
      %v1346 = vsel %vm1314, %v716, 0.0
      %v1347 = vsel %vm1315, %v717, 0.0
      %v1348 = vsel %vm1316, %v718, 0.0
      %v1349 = vsel %vm1317, %v719, 0.0
      %v1350 = vsel %vm1318, %v720, 0.0
      %v1351 = vsel %vm1319, %v721, 0.0
      %v1352 = vsel %vm1320, %v722, 0.0
      %v1353 = vpack.c.bf16 %v1322, %v1321
      %v1354 = vpack.c.bf16 %v1324, %v1323
      %v1355 = vpack.c.bf16 %v1326, %v1325
      %v1356 = vpack.c.bf16 %v1328, %v1327
      %v1357 = vpack.c.bf16 %v1330, %v1329
      %v1358 = vpack.c.bf16 %v1332, %v1331
      %v1359 = vpack.c.bf16 %v1334, %v1333
      %v1360 = vpack.c.bf16 %v1336, %v1335
      %v1361 = vpack.c.bf16 %v1338, %v1337
      %v1362 = vpack.c.bf16 %v1340, %v1339
      %v1363 = vpack.c.bf16 %v1342, %v1341
      %v1364 = vpack.c.bf16 %v1344, %v1343
      %v1365 = vpack.c.bf16 %v1346, %v1345
      %v1366 = vpack.c.bf16 %v1348, %v1347
      %v1367 = vpack.c.bf16 %v1350, %v1349
      %v1368 = vpack.c.bf16 %v1352, %v1351
      %s1369 = scalar_lea.vmem %s6, 2
      %v1370 = vld [vmem:[%s1369] sm:$0x3]
      %vm1371 = vcmask 31744
      %v1373 = vsel %vm1371, %v1353, 0
      %v1376 = vsel %vm1371, %v1354, 0
      %v1379 = vsel %vm1371, %v1355, 0
      %v1382 = vsel %vm1371, %v1356, 0
      %v1385 = vsel %vm1371, %v1357, 0
      %v1388 = vsel %vm1371, %v1358, 0
      %v1391 = vsel %vm1371, %v1359, 0
      %v1394 = vsel %vm1371, %v1360, 0
      %v1397 = vsel %vm1371, %v1361, 0
      %v1400 = vsel %vm1371, %v1362, 0
      %v1403 = vsel %vm1371, %v1363, 0
      %v1406 = vsel %vm1371, %v1364, 0
      %v1409 = vsel %vm1371, %v1365, 0
      %v1412 = vsel %vm1371, %v1366, 0
      %v1415 = vsel %vm1371, %v1367, 0
      %v1418 = vsel %vm1371, %v1368, 0
      %vm1420 = vcmask 1041408
      %v1422 = vsel %vm1420, %v1370, 0
      %1424 = vmatprep.subr.bf16.mxu0 0
      %1425 = vmatpush1.bf16.msra.mxu0 %v1422
      %1426 = vmatprep.subr.bf16.mxu0 0
      %1427 = vmatpush1.bf16.msra.mxu0 0
      %1428 = vmatprep.subr.bf16.mxu0 0
      %1429 = vmatpush1.bf16.msra.mxu0 0
      %1430 = vmatprep.subr.bf16.mxu0 0
      %1431 = vmatpush1.bf16.msra.mxu0 0
      %1432 = vmatprep.subr.bf16.mxu0 0
      %1433 = vmatpush1.bf16.msra.mxu0 0
      %1434 = vmatprep.subr.bf16.mxu0 0
      %1435 = vmatpush1.bf16.msra.mxu0 0
      %1436 = vmatprep.subr.bf16.mxu0 0
      %1437 = vmatpush1.bf16.msra.mxu0 0
      %1438 = vmatprep.subr.bf16.mxu0 0
      %1439 = vmatpush1.bf16.msra.mxu0 0
      %1440 = vmatprep.subr.bf16.mxu0 0
      %1441 = vmatpush1.bf16.msra.mxu0 0
      %1442 = vmatprep.subr.bf16.mxu0 0
      %1443 = vmatpush1.bf16.msra.mxu0 0
      %1444 = vmatprep.subr.bf16.mxu0 0
      %1445 = vmatpush1.bf16.msra.mxu0 0
      %1446 = vmatprep.subr.bf16.mxu0 0
      %1447 = vmatpush1.bf16.msra.mxu0 0
      %1448 = vmatprep.subr.bf16.mxu0 0
      %1449 = vmatpush1.bf16.msra.mxu0 0
      %1450 = vmatprep.subr.bf16.mxu0 0
      %1451 = vmatpush1.bf16.msra.mxu0 0
      %1452 = vmatprep.subr.bf16.mxu0 0
      %1453 = vmatpush1.bf16.msra.mxu0 0
      %1454 = vmatprep.subr.bf16.mxu0 0
      %1455 = vmatpush1.bf16.msra.mxu0 0
      %1456 = vmatprep.mubr.bf16.mxu0 0
      %1457 = vmatmul.mubr.bf16.gmra.mrb[0].mxu0 %v1373
      %v1458 = vpop.f32.mrb[0].mxu0
      %v1459 = vadd.f32 0.0, %v1458
      %v1460 = vpop.f32.mrb[0].mxu0
      %v1461 = vpop.f32.mrb[0].mxu0
      %v1462 = vadd.f32 0.0, %v1461
      %v1463 = vpop.f32.mrb[0].mxu0
      %1464 = vmatprep.mubr.bf16.mxu0 0
      %1465 = vmatmul.mubr.bf16.gmra.mrb[0].mxu0 %v1376
      %v1466 = vpop.f32.mrb[0].mxu0
      %v1467 = vadd.f32 0.0, %v1466
      %v1468 = vpop.f32.mrb[0].mxu0
      %v1469 = vpop.f32.mrb[0].mxu0
      %v1470 = vadd.f32 0.0, %v1469
      %v1471 = vpop.f32.mrb[0].mxu0
      %1472 = vmatprep.mubr.bf16.mxu0 0
      %1473 = vmatmul.mubr.bf16.gmra.mrb[0].mxu0 %v1379
      %v1474 = vpop.f32.mrb[0].mxu0
      %v1475 = vadd.f32 0.0, %v1474
      %v1476 = vpop.f32.mrb[0].mxu0
      %v1477 = vpop.f32.mrb[0].mxu0
      %v1478 = vadd.f32 0.0, %v1477
      %v1479 = vpop.f32.mrb[0].mxu0
      %1480 = vmatprep.mubr.bf16.mxu0 0
      %1481 = vmatmul.mubr.bf16.gmra.mrb[0].mxu0 %v1382
      %v1482 = vpop.f32.mrb[0].mxu0
      %v1483 = vadd.f32 0.0, %v1482
      %v1484 = vpop.f32.mrb[0].mxu0
      %v1485 = vpop.f32.mrb[0].mxu0
      %v1486 = vadd.f32 0.0, %v1485
      %v1487 = vpop.f32.mrb[0].mxu0
      %1488 = vmatprep.mubr.bf16.mxu0 0
      %1489 = vmatmul.mubr.bf16.gmra.mrb[0].mxu0 %v1385
      %v1490 = vpop.f32.mrb[0].mxu0
      %v1491 = vadd.f32 0.0, %v1490
      %v1492 = vpop.f32.mrb[0].mxu0
      %v1493 = vpop.f32.mrb[0].mxu0
      %v1494 = vadd.f32 0.0, %v1493
      %v1495 = vpop.f32.mrb[0].mxu0
      %1496 = vmatprep.mubr.bf16.mxu0 0
      %1497 = vmatmul.mubr.bf16.gmra.mrb[0].mxu0 %v1388
      %v1498 = vpop.f32.mrb[0].mxu0
      %v1499 = vadd.f32 0.0, %v1498
      %v1500 = vpop.f32.mrb[0].mxu0
      %v1501 = vpop.f32.mrb[0].mxu0
      %v1502 = vadd.f32 0.0, %v1501
      %v1503 = vpop.f32.mrb[0].mxu0
      %1504 = vmatprep.mubr.bf16.mxu0 0
      %1505 = vmatmul.mubr.bf16.gmra.mrb[0].mxu0 %v1391
      %v1506 = vpop.f32.mrb[0].mxu0
      %v1507 = vadd.f32 0.0, %v1506
      %v1508 = vpop.f32.mrb[0].mxu0
      %v1509 = vpop.f32.mrb[0].mxu0
      %v1510 = vadd.f32 0.0, %v1509
      %v1511 = vpop.f32.mrb[0].mxu0
      %1512 = vmatprep.mubr.bf16.mxu0 0
      %1513 = vmatmul.mubr.bf16.gmra.mrb[0].mxu0 %v1394
      %v1514 = vpop.f32.mrb[0].mxu0
      %v1515 = vadd.f32 0.0, %v1514
      %v1516 = vpop.f32.mrb[0].mxu0
      %v1517 = vpop.f32.mrb[0].mxu0
      %v1518 = vadd.f32 0.0, %v1517
      %v1519 = vpop.f32.mrb[0].mxu0
      %1520 = vmatprep.mubr.bf16.mxu0 0
      %1521 = vmatmul.mubr.bf16.gmra.mrb[0].mxu0 %v1397
      %v1522 = vpop.f32.mrb[0].mxu0
      %v1523 = vadd.f32 0.0, %v1522
      %v1524 = vpop.f32.mrb[0].mxu0
      %v1525 = vpop.f32.mrb[0].mxu0
      %v1526 = vadd.f32 0.0, %v1525
      %v1527 = vpop.f32.mrb[0].mxu0
      %1528 = vmatprep.mubr.bf16.mxu0 0
      %1529 = vmatmul.mubr.bf16.gmra.mrb[0].mxu0 %v1400
      %v1530 = vpop.f32.mrb[0].mxu0
      %v1531 = vadd.f32 0.0, %v1530
      %v1532 = vpop.f32.mrb[0].mxu0
      %v1533 = vpop.f32.mrb[0].mxu0
      %v1534 = vadd.f32 0.0, %v1533
      %v1535 = vpop.f32.mrb[0].mxu0
      %1536 = vmatprep.mubr.bf16.mxu0 0
      %1537 = vmatmul.mubr.bf16.gmra.mrb[0].mxu0 %v1403
      %v1538 = vpop.f32.mrb[0].mxu0
      %v1539 = vadd.f32 0.0, %v1538
      %v1540 = vpop.f32.mrb[0].mxu0
      %v1541 = vpop.f32.mrb[0].mxu0
      %v1542 = vadd.f32 0.0, %v1541
      %v1543 = vpop.f32.mrb[0].mxu0
      %1544 = vmatprep.mubr.bf16.mxu0 0
      %1545 = vmatmul.mubr.bf16.gmra.mrb[0].mxu0 %v1406
      %v1546 = vpop.f32.mrb[0].mxu0
      %v1547 = vadd.f32 0.0, %v1546
      %v1548 = vpop.f32.mrb[0].mxu0
      %v1549 = vpop.f32.mrb[0].mxu0
      %v1550 = vadd.f32 0.0, %v1549
      %v1551 = vpop.f32.mrb[0].mxu0
      %1552 = vmatprep.mubr.bf16.mxu0 0
      %1553 = vmatmul.mubr.bf16.gmra.mrb[0].mxu0 %v1409
      %v1554 = vpop.f32.mrb[0].mxu0
      %v1555 = vadd.f32 0.0, %v1554
      %v1556 = vpop.f32.mrb[0].mxu0
      %v1557 = vpop.f32.mrb[0].mxu0
      %v1558 = vadd.f32 0.0, %v1557
      %v1559 = vpop.f32.mrb[0].mxu0
      %1560 = vmatprep.mubr.bf16.mxu0 0
      %1561 = vmatmul.mubr.bf16.gmra.mrb[0].mxu0 %v1412
      %v1562 = vpop.f32.mrb[0].mxu0
      %v1563 = vadd.f32 0.0, %v1562
      %v1564 = vpop.f32.mrb[0].mxu0
      %v1565 = vpop.f32.mrb[0].mxu0
      %v1566 = vadd.f32 0.0, %v1565
      %v1567 = vpop.f32.mrb[0].mxu0
      %1568 = vmatprep.mubr.bf16.mxu0 0
      %1569 = vmatmul.mubr.bf16.gmra.mrb[0].mxu0 %v1415
      %v1570 = vpop.f32.mrb[0].mxu0
      %v1571 = vadd.f32 0.0, %v1570
      %v1572 = vpop.f32.mrb[0].mxu0
      %v1573 = vpop.f32.mrb[0].mxu0
      %v1574 = vadd.f32 0.0, %v1573
      %v1575 = vpop.f32.mrb[0].mxu0
      %1576 = vmatprep.mubr.bf16.mxu0 0
      %1577 = vmatmul.mubr.bf16.gmra.mrb[0].mxu0 %v1418
      %v1578 = vpop.f32.mrb[0].mxu0
      %v1579 = vadd.f32 0.0, %v1578
      %v1580 = vpop.f32.mrb[0].mxu0
      %v1581 = vpop.f32.mrb[0].mxu0
      %v1582 = vadd.f32 0.0, %v1581
      %v1583 = vpop.f32.mrb[0].mxu0
      %1584 = vdwg.mxu0
      %v1586 = vsel %vm1371, %v1144, 0
      %v1589 = vsel %vm1371, %v1145, 0
      %v1592 = vsel %vm1371, %v1146, 0
      %v1595 = vsel %vm1371, %v1147, 0
      %v1598 = vsel %vm1371, %v1148, 0
      %v1601 = vsel %vm1371, %v1149, 0
      %v1604 = vsel %vm1371, %v1150, 0
      %v1607 = vsel %vm1371, %v1151, 0
      %v1610 = vsel %vm1371, %v1152, 0
      %v1613 = vsel %vm1371, %v1153, 0
      %v1616 = vsel %vm1371, %v1154, 0
      %v1619 = vsel %vm1371, %v1155, 0
      %v1622 = vsel %vm1371, %v1156, 0
      %v1625 = vsel %vm1371, %v1157, 0
      %v1628 = vsel %vm1371, %v1158, 0
      %v1631 = vsel %vm1371, %v1159, 0
      %v1634 = vsel %vm1420, %v1160, 0
      %1636 = vmatprep.subr.bf16.mxu0 0
      %1637 = vmatpush1.bf16.msra.mxu0 %v1634
      %1638 = vmatprep.subr.bf16.mxu0 0
      %1639 = vmatpush1.bf16.msra.mxu0 0
      %1640 = vmatprep.subr.bf16.mxu0 0
      %1641 = vmatpush1.bf16.msra.mxu0 0
      %1642 = vmatprep.subr.bf16.mxu0 0
      %1643 = vmatpush1.bf16.msra.mxu0 0
      %1644 = vmatprep.subr.bf16.mxu0 0
      %1645 = vmatpush1.bf16.msra.mxu0 0
      %1646 = vmatprep.subr.bf16.mxu0 0
      %1647 = vmatpush1.bf16.msra.mxu0 0
      %1648 = vmatprep.subr.bf16.mxu0 0
      %1649 = vmatpush1.bf16.msra.mxu0 0
      %1650 = vmatprep.subr.bf16.mxu0 0
      %1651 = vmatpush1.bf16.msra.mxu0 0
      %1652 = vmatprep.subr.bf16.mxu0 0
      %1653 = vmatpush1.bf16.msra.mxu0 0
      %1654 = vmatprep.subr.bf16.mxu0 0
      %1655 = vmatpush1.bf16.msra.mxu0 0
      %1656 = vmatprep.subr.bf16.mxu0 0
      %1657 = vmatpush1.bf16.msra.mxu0 0
      %1658 = vmatprep.subr.bf16.mxu0 0
      %1659 = vmatpush1.bf16.msra.mxu0 0
      %1660 = vmatprep.subr.bf16.mxu0 0
      %1661 = vmatpush1.bf16.msra.mxu0 0
      %1662 = vmatprep.subr.bf16.mxu0 0
      %1663 = vmatpush1.bf16.msra.mxu0 0
      %1664 = vmatprep.subr.bf16.mxu0 0
      %1665 = vmatpush1.bf16.msra.mxu0 0
      %1666 = vmatprep.subr.bf16.mxu0 0
      %1667 = vmatpush1.bf16.msra.mxu0 0
      %1668 = vmatprep.mubr.bf16.mxu0 0
      %1669 = vmatmul.mubr.bf16.gmra.mrb[0].mxu0 %v1586
      %v1670 = vpop.f32.mrb[0].mxu0
      %v1671 = vadd.f32 %v1459, %v1670
      %v1672 = vpop.f32.mrb[0].mxu0
      %v1673 = vpop.f32.mrb[0].mxu0
      %v1674 = vadd.f32 %v1462, %v1673
      %v1675 = vpop.f32.mrb[0].mxu0
      %1676 = vmatprep.mubr.bf16.mxu0 0
      %1677 = vmatmul.mubr.bf16.gmra.mrb[0].mxu0 %v1589
      %v1678 = vpop.f32.mrb[0].mxu0
      %v1679 = vadd.f32 %v1467, %v1678
      %v1680 = vpop.f32.mrb[0].mxu0
      %v1681 = vpop.f32.mrb[0].mxu0
      %v1682 = vadd.f32 %v1470, %v1681
      %v1683 = vpop.f32.mrb[0].mxu0
      %1684 = vmatprep.mubr.bf16.mxu0 0
      %1685 = vmatmul.mubr.bf16.gmra.mrb[0].mxu0 %v1592
      %v1686 = vpop.f32.mrb[0].mxu0
      %v1687 = vadd.f32 %v1475, %v1686
      %v1688 = vpop.f32.mrb[0].mxu0
      %v1689 = vpop.f32.mrb[0].mxu0
      %v1690 = vadd.f32 %v1478, %v1689
      %v1691 = vpop.f32.mrb[0].mxu0
      %1692 = vmatprep.mubr.bf16.mxu0 0
      %1693 = vmatmul.mubr.bf16.gmra.mrb[0].mxu0 %v1595
      %v1694 = vpop.f32.mrb[0].mxu0
      %v1695 = vadd.f32 %v1483, %v1694
      %v1696 = vpop.f32.mrb[0].mxu0
      %v1697 = vpop.f32.mrb[0].mxu0
      %v1698 = vadd.f32 %v1486, %v1697
      %v1699 = vpop.f32.mrb[0].mxu0
      %1700 = vmatprep.mubr.bf16.mxu0 0
      %1701 = vmatmul.mubr.bf16.gmra.mrb[0].mxu0 %v1598
      %v1702 = vpop.f32.mrb[0].mxu0
      %v1703 = vadd.f32 %v1491, %v1702
      %v1704 = vpop.f32.mrb[0].mxu0
      %v1705 = vpop.f32.mrb[0].mxu0
      %v1706 = vadd.f32 %v1494, %v1705
      %v1707 = vpop.f32.mrb[0].mxu0
      %1708 = vmatprep.mubr.bf16.mxu0 0
      %1709 = vmatmul.mubr.bf16.gmra.mrb[0].mxu0 %v1601
      %v1710 = vpop.f32.mrb[0].mxu0
      %v1711 = vadd.f32 %v1499, %v1710
      %v1712 = vpop.f32.mrb[0].mxu0
      %v1713 = vpop.f32.mrb[0].mxu0
      %v1714 = vadd.f32 %v1502, %v1713
      %v1715 = vpop.f32.mrb[0].mxu0
      %1716 = vmatprep.mubr.bf16.mxu0 0
      %1717 = vmatmul.mubr.bf16.gmra.mrb[0].mxu0 %v1604
      %v1718 = vpop.f32.mrb[0].mxu0
      %v1719 = vadd.f32 %v1507, %v1718
      %v1720 = vpop.f32.mrb[0].mxu0
      %v1721 = vpop.f32.mrb[0].mxu0
      %v1722 = vadd.f32 %v1510, %v1721
      %v1723 = vpop.f32.mrb[0].mxu0
      %1724 = vmatprep.mubr.bf16.mxu0 0
      %1725 = vmatmul.mubr.bf16.gmra.mrb[0].mxu0 %v1607
      %v1726 = vpop.f32.mrb[0].mxu0
      %v1727 = vadd.f32 %v1515, %v1726
      %v1728 = vpop.f32.mrb[0].mxu0
      %v1729 = vpop.f32.mrb[0].mxu0
      %v1730 = vadd.f32 %v1518, %v1729
      %v1731 = vpop.f32.mrb[0].mxu0
      %1732 = vmatprep.mubr.bf16.mxu0 0
      %1733 = vmatmul.mubr.bf16.gmra.mrb[0].mxu0 %v1610
      %v1734 = vpop.f32.mrb[0].mxu0
      %v1735 = vadd.f32 %v1523, %v1734
      %v1736 = vpop.f32.mrb[0].mxu0
      %v1737 = vpop.f32.mrb[0].mxu0
      %v1738 = vadd.f32 %v1526, %v1737
      %v1739 = vpop.f32.mrb[0].mxu0
      %1740 = vmatprep.mubr.bf16.mxu0 0
      %1741 = vmatmul.mubr.bf16.gmra.mrb[0].mxu0 %v1613
      %v1742 = vpop.f32.mrb[0].mxu0
      %v1743 = vadd.f32 %v1531, %v1742
      %v1744 = vpop.f32.mrb[0].mxu0
      %v1745 = vpop.f32.mrb[0].mxu0
      %v1746 = vadd.f32 %v1534, %v1745
      %v1747 = vpop.f32.mrb[0].mxu0
      %1748 = vmatprep.mubr.bf16.mxu0 0
      %1749 = vmatmul.mubr.bf16.gmra.mrb[0].mxu0 %v1616
      %v1750 = vpop.f32.mrb[0].mxu0
      %v1751 = vadd.f32 %v1539, %v1750
      %v1752 = vpop.f32.mrb[0].mxu0
      %v1753 = vpop.f32.mrb[0].mxu0
      %v1754 = vadd.f32 %v1542, %v1753
      %v1755 = vpop.f32.mrb[0].mxu0
      %1756 = vmatprep.mubr.bf16.mxu0 0
      %1757 = vmatmul.mubr.bf16.gmra.mrb[0].mxu0 %v1619
      %v1758 = vpop.f32.mrb[0].mxu0
      %v1759 = vadd.f32 %v1547, %v1758
      %v1760 = vpop.f32.mrb[0].mxu0
      %v1761 = vpop.f32.mrb[0].mxu0
      %v1762 = vadd.f32 %v1550, %v1761
      %v1763 = vpop.f32.mrb[0].mxu0
      %1764 = vmatprep.mubr.bf16.mxu0 0
      %1765 = vmatmul.mubr.bf16.gmra.mrb[0].mxu0 %v1622
      %v1766 = vpop.f32.mrb[0].mxu0
      %v1767 = vadd.f32 %v1555, %v1766
      %v1768 = vpop.f32.mrb[0].mxu0
      %v1769 = vpop.f32.mrb[0].mxu0
      %v1770 = vadd.f32 %v1558, %v1769
      %v1771 = vpop.f32.mrb[0].mxu0
      %1772 = vmatprep.mubr.bf16.mxu0 0
      %1773 = vmatmul.mubr.bf16.gmra.mrb[0].mxu0 %v1625
      %v1774 = vpop.f32.mrb[0].mxu0
      %v1775 = vadd.f32 %v1563, %v1774
      %v1776 = vpop.f32.mrb[0].mxu0
      %v1777 = vpop.f32.mrb[0].mxu0
      %v1778 = vadd.f32 %v1566, %v1777
      %v1779 = vpop.f32.mrb[0].mxu0
      %1780 = vmatprep.mubr.bf16.mxu0 0
      %1781 = vmatmul.mubr.bf16.gmra.mrb[0].mxu0 %v1628
      %v1782 = vpop.f32.mrb[0].mxu0
      %v1783 = vadd.f32 %v1571, %v1782
      %v1784 = vpop.f32.mrb[0].mxu0
      %v1785 = vpop.f32.mrb[0].mxu0
      %v1786 = vadd.f32 %v1574, %v1785
      %v1787 = vpop.f32.mrb[0].mxu0
      %1788 = vmatprep.mubr.bf16.mxu0 0
      %1789 = vmatmul.mubr.bf16.gmra.mrb[0].mxu0 %v1631
      %v1790 = vpop.f32.mrb[0].mxu0
      %v1791 = vadd.f32 %v1579, %v1790
      %v1792 = vpop.f32.mrb[0].mxu0
      %v1793 = vpop.f32.mrb[0].mxu0
      %v1794 = vadd.f32 %v1582, %v1793
      %v1795 = vpop.f32.mrb[0].mxu0
      %1796 = vdwg.mxu0
      %v1797 = vrot.slane %v693, 1
      %v1798 = vrot.slane %v694, 1
      %v1799 = vrot.slane %v695, 1
      %v1800 = vrot.slane %v696, 1
      %v1801 = vrot.slane %v697, 1
      %v1802 = vrot.slane %v698, 1
      %v1803 = vrot.slane %v699, 1
      %v1804 = vrot.slane %v700, 1
      %v1805 = vrot.slane %v701, 1
      %v1806 = vrot.slane %v702, 1
      %v1807 = vrot.slane %v703, 1
      %v1808 = vrot.slane %v704, 1
      %v1809 = vrot.slane %v705, 1
      %v1810 = vrot.slane %v706, 1
      %v1811 = vrot.slane %v707, 1
      %v1812 = vrot.slane %v708, 1
      %v1813 = vrot.slane %v709, 1
      %v1814 = vrot.slane %v710, 1
      %v1815 = vrot.slane %v711, 1
      %v1816 = vrot.slane %v712, 1
      %v1817 = vrot.slane %v713, 1
      %v1818 = vrot.slane %v714, 1
      %v1819 = vrot.slane %v715, 1
      %v1820 = vrot.slane %v716, 1
      %v1821 = vrot.slane %v717, 1
      %v1822 = vrot.slane %v718, 1
      %v1823 = vrot.slane %v719, 1
      %v1824 = vrot.slane %v720, 1
      %v1825 = vrot.slane %v721, 1
      %v1826 = vrot.slane %v722, 1
      %v1827 = vrot.slane %v723, 1
      %v1828 = vrot.slane %v724, 1
      %vm1829 = vcmp.lt.s32.totalorder %v822, 7
      %v1830 = vsel %vm1829, %v1827, %v1828
      %v1831 = vsel %vm1829, %v1826, %v1827
      %v1832 = vsel %vm1829, %v1825, %v1826
      %v1833 = vsel %vm1829, %v1824, %v1825
      %v1834 = vsel %vm1829, %v1823, %v1824
      %v1835 = vsel %vm1829, %v1822, %v1823
      %v1836 = vsel %vm1829, %v1821, %v1822
      %v1837 = vsel %vm1829, %v1820, %v1821
      %v1838 = vsel %vm1829, %v1819, %v1820
      %v1839 = vsel %vm1829, %v1818, %v1819
      %v1840 = vsel %vm1829, %v1817, %v1818
      %v1841 = vsel %vm1829, %v1816, %v1817
      %v1842 = vsel %vm1829, %v1815, %v1816
      %v1843 = vsel %vm1829, %v1814, %v1815
      %v1844 = vsel %vm1829, %v1813, %v1814
      %v1845 = vsel %vm1829, %v1812, %v1813
      %v1846 = vsel %vm1829, %v1811, %v1812
      %v1847 = vsel %vm1829, %v1810, %v1811
      %v1848 = vsel %vm1829, %v1809, %v1810
      %v1849 = vsel %vm1829, %v1808, %v1809
      %v1850 = vsel %vm1829, %v1807, %v1808
      %v1851 = vsel %vm1829, %v1806, %v1807
      %v1852 = vsel %vm1829, %v1805, %v1806
      %v1853 = vsel %vm1829, %v1804, %v1805
      %v1854 = vsel %vm1829, %v1803, %v1804
      %v1855 = vsel %vm1829, %v1802, %v1803
      %v1856 = vsel %vm1829, %v1801, %v1802
      %v1857 = vsel %vm1829, %v1800, %v1801
      %v1858 = vsel %vm1829, %v1799, %v1800
      %v1859 = vsel %vm1829, %v1798, %v1799
      %v1860 = vsel %vm1829, %v1797, %v1798
      %v1861 = vsel %vm1829, %v1828, %v1797
      %vm1862 = vcmp.lt.s32.totalorder %v757, 15
      %vm1863 = vcmp.lt.s32.totalorder %v758, 15
      %vm1864 = vcmp.lt.s32.totalorder %v759, 15
      %vm1865 = vcmp.lt.s32.totalorder %v760, 15
      %vm1866 = vcmp.lt.s32.totalorder %v761, 15
      %vm1867 = vcmp.lt.s32.totalorder %v762, 15
      %vm1868 = vcmp.lt.s32.totalorder %v763, 15
      %vm1869 = vcmp.lt.s32.totalorder %v764, 15
      %vm1870 = vcmp.lt.s32.totalorder %v765, 15
      %vm1871 = vcmp.lt.s32.totalorder %v766, 15
      %vm1872 = vcmp.lt.s32.totalorder %v767, 15
      %vm1873 = vcmp.lt.s32.totalorder %v768, 15
      %vm1874 = vcmp.lt.s32.totalorder %v769, 15
      %vm1875 = vcmp.lt.s32.totalorder %v770, 15
      %vm1876 = vcmp.lt.s32.totalorder %v771, 15
      %vm1877 = vcmp.lt.s32.totalorder %v772, 15
      %vm1878 = vcmp.lt.s32.totalorder %v773, 15
      %vm1879 = vcmp.lt.s32.totalorder %v774, 15
      %vm1880 = vcmp.lt.s32.totalorder %v775, 15
      %vm1881 = vcmp.lt.s32.totalorder %v776, 15
      %vm1882 = vcmp.lt.s32.totalorder %v777, 15
      %vm1883 = vcmp.lt.s32.totalorder %v778, 15
      %vm1884 = vcmp.lt.s32.totalorder %v779, 15
      %vm1885 = vcmp.lt.s32.totalorder %v780, 15
      %vm1886 = vcmp.lt.s32.totalorder %v781, 15
      %vm1887 = vcmp.lt.s32.totalorder %v782, 15
      %vm1888 = vcmp.lt.s32.totalorder %v783, 15
      %vm1889 = vcmp.lt.s32.totalorder %v784, 15
      %vm1890 = vcmp.lt.s32.totalorder %v785, 15
      %vm1891 = vcmp.lt.s32.totalorder %v786, 15
      %vm1892 = vcmp.lt.s32.totalorder %v787, 15
      %vm1893 = vcmp.lt.s32.totalorder %v788, 15
      %vm1894 = vmand %vm856, %vm1862
      %vm1895 = vmand %vm857, %vm1863
      %vm1896 = vmand %vm858, %vm1864
      %vm1897 = vmand %vm859, %vm1865
      %vm1898 = vmand %vm860, %vm1866
      %vm1899 = vmand %vm861, %vm1867
      %vm1900 = vmand %vm862, %vm1868
      %vm1901 = vmand %vm863, %vm1869
      %vm1902 = vmand %vm864, %vm1870
      %vm1903 = vmand %vm865, %vm1871
      %vm1904 = vmand %vm866, %vm1872
      %vm1905 = vmand %vm867, %vm1873
      %vm1906 = vmand %vm868, %vm1874
      %vm1907 = vmand %vm869, %vm1875
      %vm1908 = vmand %vm870, %vm1876
      %vm1909 = vmand %vm871, %vm1877
      %vm1910 = vmand %vm872, %vm1878
      %vm1911 = vmand %vm873, %vm1879
      %vm1912 = vmand %vm874, %vm1880
      %vm1913 = vmand %vm875, %vm1881
      %vm1914 = vmand %vm876, %vm1882
      %vm1915 = vmand %vm877, %vm1883
      %vm1916 = vmand %vm878, %vm1884
      %vm1917 = vmand %vm879, %vm1885
      %vm1918 = vmand %vm880, %vm1886
      %vm1919 = vmand %vm881, %vm1887
      %vm1920 = vmand %vm882, %vm1888
      %vm1921 = vmand %vm883, %vm1889
      %vm1922 = vmand %vm884, %vm1890
      %vm1923 = vmand %vm885, %vm1891
      %vm1924 = vmand %vm886, %vm1892
      %vm1925 = vmand %vm887, %vm1893
      %v1926 = vsel %vm1894, 1, 0
      %v1927 = vsel %vm1895, 1, 0
      %v1928 = vsel %vm1896, 1, 0
      %v1929 = vsel %vm1897, 1, 0
      %v1930 = vsel %vm1898, 1, 0
      %v1931 = vsel %vm1899, 1, 0
      %v1932 = vsel %vm1900, 1, 0
      %v1933 = vsel %vm1901, 1, 0
      %v1934 = vsel %vm1902, 1, 0
      %v1935 = vsel %vm1903, 1, 0
      %v1936 = vsel %vm1904, 1, 0
      %v1937 = vsel %vm1905, 1, 0
      %v1938 = vsel %vm1906, 1, 0
      %v1939 = vsel %vm1907, 1, 0
      %v1940 = vsel %vm1908, 1, 0
      %v1941 = vsel %vm1909, 1, 0
      %v1942 = vsel %vm1910, 1, 0
      %v1943 = vsel %vm1911, 1, 0
      %v1944 = vsel %vm1912, 1, 0
      %v1945 = vsel %vm1913, 1, 0
      %v1946 = vsel %vm1914, 1, 0
      %v1947 = vsel %vm1915, 1, 0
      %v1948 = vsel %vm1916, 1, 0
      %v1949 = vsel %vm1917, 1, 0
      %v1950 = vsel %vm1918, 1, 0
      %v1951 = vsel %vm1919, 1, 0
      %v1952 = vsel %vm1920, 1, 0
      %v1953 = vsel %vm1921, 1, 0
      %v1954 = vsel %vm1922, 1, 0
      %v1955 = vsel %vm1923, 1, 0
      %v1956 = vsel %vm1924, 1, 0
      %v1957 = vsel %vm1925, 1, 0
      %1958 = vset.pattern.permute.xlu0 0
      %1959 = vperm.xlu0 %1958, %v1926
      %v1960 = vpop.permute.xlu0 %1959
      %1961 = vset.pattern.permute.xlu0 0
      %1962 = vperm.xlu0 %1961, %v1927
      %v1963 = vpop.permute.xlu0 %1962
      %1964 = vset.pattern.permute.xlu0 0
      %1965 = vperm.xlu0 %1964, %v1928
      %v1966 = vpop.permute.xlu0 %1965
      %1967 = vset.pattern.permute.xlu0 0
      %1968 = vperm.xlu0 %1967, %v1929
      %v1969 = vpop.permute.xlu0 %1968
      %1970 = vset.pattern.permute.xlu0 0
      %1971 = vperm.xlu0 %1970, %v1930
      %v1972 = vpop.permute.xlu0 %1971
      %1973 = vset.pattern.permute.xlu0 0
      %1974 = vperm.xlu0 %1973, %v1931
      %v1975 = vpop.permute.xlu0 %1974
      %1976 = vset.pattern.permute.xlu0 0
      %1977 = vperm.xlu0 %1976, %v1932
      %v1978 = vpop.permute.xlu0 %1977
      %1979 = vset.pattern.permute.xlu0 0
      %1980 = vperm.xlu0 %1979, %v1933
      %v1981 = vpop.permute.xlu0 %1980
      %1982 = vset.pattern.permute.xlu0 0
      %1983 = vperm.xlu0 %1982, %v1934
      %v1984 = vpop.permute.xlu0 %1983
      %1985 = vset.pattern.permute.xlu0 0
      %1986 = vperm.xlu0 %1985, %v1935
      %v1987 = vpop.permute.xlu0 %1986
      %1988 = vset.pattern.permute.xlu0 0
      %1989 = vperm.xlu0 %1988, %v1936
      %v1990 = vpop.permute.xlu0 %1989
      %1991 = vset.pattern.permute.xlu0 0
      %1992 = vperm.xlu0 %1991, %v1937
      %v1993 = vpop.permute.xlu0 %1992
      %1994 = vset.pattern.permute.xlu0 0
      %1995 = vperm.xlu0 %1994, %v1938
      %v1996 = vpop.permute.xlu0 %1995
      %1997 = vset.pattern.permute.xlu0 0
      %1998 = vperm.xlu0 %1997, %v1939
      %v1999 = vpop.permute.xlu0 %1998
      %2000 = vset.pattern.permute.xlu0 0
      %2001 = vperm.xlu0 %2000, %v1940
      %v2002 = vpop.permute.xlu0 %2001
      %2003 = vset.pattern.permute.xlu0 0
      %2004 = vperm.xlu0 %2003, %v1941
      %v2005 = vpop.permute.xlu0 %2004
      %2006 = vset.pattern.permute.xlu0 0
      %2007 = vperm.xlu0 %2006, %v1942
      %v2008 = vpop.permute.xlu0 %2007
      %2009 = vset.pattern.permute.xlu0 0
      %2010 = vperm.xlu0 %2009, %v1943
      %v2011 = vpop.permute.xlu0 %2010
      %2012 = vset.pattern.permute.xlu0 0
      %2013 = vperm.xlu0 %2012, %v1944
      %v2014 = vpop.permute.xlu0 %2013
      %2015 = vset.pattern.permute.xlu0 0
      %2016 = vperm.xlu0 %2015, %v1945
      %v2017 = vpop.permute.xlu0 %2016
      %2018 = vset.pattern.permute.xlu0 0
      %2019 = vperm.xlu0 %2018, %v1946
      %v2020 = vpop.permute.xlu0 %2019
      %2021 = vset.pattern.permute.xlu0 0
      %2022 = vperm.xlu0 %2021, %v1947
      %v2023 = vpop.permute.xlu0 %2022
      %2024 = vset.pattern.permute.xlu0 0
      %2025 = vperm.xlu0 %2024, %v1948
      %v2026 = vpop.permute.xlu0 %2025
      %2027 = vset.pattern.permute.xlu0 0
      %2028 = vperm.xlu0 %2027, %v1949
      %v2029 = vpop.permute.xlu0 %2028
      %2030 = vset.pattern.permute.xlu0 0
      %2031 = vperm.xlu0 %2030, %v1950
      %v2032 = vpop.permute.xlu0 %2031
      %2033 = vset.pattern.permute.xlu0 0
      %2034 = vperm.xlu0 %2033, %v1951
      %v2035 = vpop.permute.xlu0 %2034
      %2036 = vset.pattern.permute.xlu0 0
      %2037 = vperm.xlu0 %2036, %v1952
      %v2038 = vpop.permute.xlu0 %2037
      %2039 = vset.pattern.permute.xlu0 0
      %2040 = vperm.xlu0 %2039, %v1953
      %v2041 = vpop.permute.xlu0 %2040
      %2042 = vset.pattern.permute.xlu0 0
      %2043 = vperm.xlu0 %2042, %v1954
      %v2044 = vpop.permute.xlu0 %2043
      %2045 = vset.pattern.permute.xlu0 0
      %2046 = vperm.xlu0 %2045, %v1955
      %v2047 = vpop.permute.xlu0 %2046
      %2048 = vset.pattern.permute.xlu0 0
      %2049 = vperm.xlu0 %2048, %v1956
      %v2050 = vpop.permute.xlu0 %2049
      %2051 = vset.pattern.permute.xlu0 0
      %2052 = vperm.xlu0 %2051, %v1957
      %v2053 = vpop.permute.xlu0 %2052
      %vm2054 = vcmp.eq.s32.totalorder %v1960, 1
      %vm2055 = vcmp.eq.s32.totalorder %v1963, 1
      %vm2056 = vcmp.eq.s32.totalorder %v1966, 1
      %vm2057 = vcmp.eq.s32.totalorder %v1969, 1
      %vm2058 = vcmp.eq.s32.totalorder %v1972, 1
      %vm2059 = vcmp.eq.s32.totalorder %v1975, 1
      %vm2060 = vcmp.eq.s32.totalorder %v1978, 1
      %vm2061 = vcmp.eq.s32.totalorder %v1981, 1
      %vm2062 = vcmp.eq.s32.totalorder %v1984, 1
      %vm2063 = vcmp.eq.s32.totalorder %v1987, 1
      %vm2064 = vcmp.eq.s32.totalorder %v1990, 1
      %vm2065 = vcmp.eq.s32.totalorder %v1993, 1
      %vm2066 = vcmp.eq.s32.totalorder %v1996, 1
      %vm2067 = vcmp.eq.s32.totalorder %v1999, 1
      %vm2068 = vcmp.eq.s32.totalorder %v2002, 1
      %vm2069 = vcmp.eq.s32.totalorder %v2005, 1
      %vm2070 = vcmp.eq.s32.totalorder %v2008, 1
      %vm2071 = vcmp.eq.s32.totalorder %v2011, 1
      %vm2072 = vcmp.eq.s32.totalorder %v2014, 1
      %vm2073 = vcmp.eq.s32.totalorder %v2017, 1
      %vm2074 = vcmp.eq.s32.totalorder %v2020, 1
      %vm2075 = vcmp.eq.s32.totalorder %v2023, 1
      %vm2076 = vcmp.eq.s32.totalorder %v2026, 1
      %vm2077 = vcmp.eq.s32.totalorder %v2029, 1
      %vm2078 = vcmp.eq.s32.totalorder %v2032, 1
      %vm2079 = vcmp.eq.s32.totalorder %v2035, 1
      %vm2080 = vcmp.eq.s32.totalorder %v2038, 1
      %vm2081 = vcmp.eq.s32.totalorder %v2041, 1
      %vm2082 = vcmp.eq.s32.totalorder %v2044, 1
      %vm2083 = vcmp.eq.s32.totalorder %v2047, 1
      %vm2084 = vcmp.eq.s32.totalorder %v2050, 1
      %vm2085 = vcmp.eq.s32.totalorder %v2053, 1
      %v2086 = vsel %vm2054, %v1830, 0.0
      %v2087 = vsel %vm2055, %v1861, 0.0
      %v2088 = vsel %vm2056, %v1860, 0.0
      %v2089 = vsel %vm2057, %v1859, 0.0
      %v2090 = vsel %vm2058, %v1858, 0.0
      %v2091 = vsel %vm2059, %v1857, 0.0
      %v2092 = vsel %vm2060, %v1856, 0.0
      %v2093 = vsel %vm2061, %v1855, 0.0
      %v2094 = vsel %vm2062, %v1854, 0.0
      %v2095 = vsel %vm2063, %v1853, 0.0
      %v2096 = vsel %vm2064, %v1852, 0.0
      %v2097 = vsel %vm2065, %v1851, 0.0
      %v2098 = vsel %vm2066, %v1850, 0.0
      %v2099 = vsel %vm2067, %v1849, 0.0
      %v2100 = vsel %vm2068, %v1848, 0.0
      %v2101 = vsel %vm2069, %v1847, 0.0
      %v2102 = vsel %vm2070, %v1846, 0.0
      %v2103 = vsel %vm2071, %v1845, 0.0
      %v2104 = vsel %vm2072, %v1844, 0.0
      %v2105 = vsel %vm2073, %v1843, 0.0
      %v2106 = vsel %vm2074, %v1842, 0.0
      %v2107 = vsel %vm2075, %v1841, 0.0
      %v2108 = vsel %vm2076, %v1840, 0.0
      %v2109 = vsel %vm2077, %v1839, 0.0
      %v2110 = vsel %vm2078, %v1838, 0.0
      %v2111 = vsel %vm2079, %v1837, 0.0
      %v2112 = vsel %vm2080, %v1836, 0.0
      %v2113 = vsel %vm2081, %v1835, 0.0
      %v2114 = vsel %vm2082, %v1834, 0.0
      %v2115 = vsel %vm2083, %v1833, 0.0
      %v2116 = vsel %vm2084, %v1832, 0.0
      %v2117 = vsel %vm2085, %v1831, 0.0
      %v2118 = vpack.c.bf16 %v2087, %v2086
      %v2119 = vpack.c.bf16 %v2089, %v2088
      %v2120 = vpack.c.bf16 %v2091, %v2090
      %v2121 = vpack.c.bf16 %v2093, %v2092
      %v2122 = vpack.c.bf16 %v2095, %v2094
      %v2123 = vpack.c.bf16 %v2097, %v2096
      %v2124 = vpack.c.bf16 %v2099, %v2098
      %v2125 = vpack.c.bf16 %v2101, %v2100
      %v2126 = vpack.c.bf16 %v2103, %v2102
      %v2127 = vpack.c.bf16 %v2105, %v2104
      %v2128 = vpack.c.bf16 %v2107, %v2106
      %v2129 = vpack.c.bf16 %v2109, %v2108
      %v2130 = vpack.c.bf16 %v2111, %v2110
      %v2131 = vpack.c.bf16 %v2113, %v2112
      %v2132 = vpack.c.bf16 %v2115, %v2114
      %v2133 = vpack.c.bf16 %v2117, %v2116
      %s2134 = scalar_lea.vmem %s6, 4
      %v2135 = vld [vmem:[%s2134] sm:$0x3]
      %v2137 = vsel %vm1371, %v2118, 0
      %v2140 = vsel %vm1371, %v2119, 0
      %v2143 = vsel %vm1371, %v2120, 0
      %v2146 = vsel %vm1371, %v2121, 0
      %v2149 = vsel %vm1371, %v2122, 0
      %v2152 = vsel %vm1371, %v2123, 0
      %v2155 = vsel %vm1371, %v2124, 0
      %v2158 = vsel %vm1371, %v2125, 0
      %v2161 = vsel %vm1371, %v2126, 0
      %v2164 = vsel %vm1371, %v2127, 0
      %v2167 = vsel %vm1371, %v2128, 0
      %v2170 = vsel %vm1371, %v2129, 0
      %v2173 = vsel %vm1371, %v2130, 0
      %v2176 = vsel %vm1371, %v2131, 0
      %v2179 = vsel %vm1371, %v2132, 0
      %v2182 = vsel %vm1371, %v2133, 0
      %v2185 = vsel %vm1420, %v2135, 0
      %2187 = vmatprep.subr.bf16.mxu0 0
      %2188 = vmatpush1.bf16.msra.mxu0 %v2185
      %2189 = vmatprep.subr.bf16.mxu0 0
      %2190 = vmatpush1.bf16.msra.mxu0 0
      %2191 = vmatprep.subr.bf16.mxu0 0
      %2192 = vmatpush1.bf16.msra.mxu0 0
      %2193 = vmatprep.subr.bf16.mxu0 0
      %2194 = vmatpush1.bf16.msra.mxu0 0
      %2195 = vmatprep.subr.bf16.mxu0 0
      %2196 = vmatpush1.bf16.msra.mxu0 0
      %2197 = vmatprep.subr.bf16.mxu0 0
      %2198 = vmatpush1.bf16.msra.mxu0 0
      %2199 = vmatprep.subr.bf16.mxu0 0
      %2200 = vmatpush1.bf16.msra.mxu0 0
      %2201 = vmatprep.subr.bf16.mxu0 0
      %2202 = vmatpush1.bf16.msra.mxu0 0
      %2203 = vmatprep.subr.bf16.mxu0 0
      %2204 = vmatpush1.bf16.msra.mxu0 0
      %2205 = vmatprep.subr.bf16.mxu0 0
      %2206 = vmatpush1.bf16.msra.mxu0 0
      %2207 = vmatprep.subr.bf16.mxu0 0
      %2208 = vmatpush1.bf16.msra.mxu0 0
      %2209 = vmatprep.subr.bf16.mxu0 0
      %2210 = vmatpush1.bf16.msra.mxu0 0
      %2211 = vmatprep.subr.bf16.mxu0 0
      %2212 = vmatpush1.bf16.msra.mxu0 0
      %2213 = vmatprep.subr.bf16.mxu0 0
      %2214 = vmatpush1.bf16.msra.mxu0 0
      %2215 = vmatprep.subr.bf16.mxu0 0
      %2216 = vmatpush1.bf16.msra.mxu0 0
      %2217 = vmatprep.subr.bf16.mxu0 0
      %2218 = vmatpush1.bf16.msra.mxu0 0
      %2219 = vmatprep.mubr.bf16.mxu0 0
      %2220 = vmatmul.mubr.bf16.gmra.mrb[0].mxu0 %v2137
      %v2221 = vpop.f32.mrb[0].mxu0
      %v2222 = vadd.f32 0.0, %v2221
      %v2223 = vpop.f32.mrb[0].mxu0
      %v2224 = vpop.f32.mrb[0].mxu0
      %v2225 = vadd.f32 0.0, %v2224
      %v2226 = vpop.f32.mrb[0].mxu0
      %2227 = vmatprep.mubr.bf16.mxu0 0
      %2228 = vmatmul.mubr.bf16.gmra.mrb[0].mxu0 %v2140
      %v2229 = vpop.f32.mrb[0].mxu0
      %v2230 = vadd.f32 0.0, %v2229
      %v2231 = vpop.f32.mrb[0].mxu0
      %v2232 = vpop.f32.mrb[0].mxu0
      %v2233 = vadd.f32 0.0, %v2232
      %v2234 = vpop.f32.mrb[0].mxu0
      %2235 = vmatprep.mubr.bf16.mxu0 0
      %2236 = vmatmul.mubr.bf16.gmra.mrb[0].mxu0 %v2143
      %v2237 = vpop.f32.mrb[0].mxu0
      %v2238 = vadd.f32 0.0, %v2237
      %v2239 = vpop.f32.mrb[0].mxu0
      %v2240 = vpop.f32.mrb[0].mxu0
      %v2241 = vadd.f32 0.0, %v2240
      %v2242 = vpop.f32.mrb[0].mxu0
      %2243 = vmatprep.mubr.bf16.mxu0 0
      %2244 = vmatmul.mubr.bf16.gmra.mrb[0].mxu0 %v2146
      %v2245 = vpop.f32.mrb[0].mxu0
      %v2246 = vadd.f32 0.0, %v2245
      %v2247 = vpop.f32.mrb[0].mxu0
      %v2248 = vpop.f32.mrb[0].mxu0
      %v2249 = vadd.f32 0.0, %v2248
      %v2250 = vpop.f32.mrb[0].mxu0
      %2251 = vmatprep.mubr.bf16.mxu0 0
      %2252 = vmatmul.mubr.bf16.gmra.mrb[0].mxu0 %v2149
      %v2253 = vpop.f32.mrb[0].mxu0
      %v2254 = vadd.f32 0.0, %v2253
      %v2255 = vpop.f32.mrb[0].mxu0
      %v2256 = vpop.f32.mrb[0].mxu0
      %v2257 = vadd.f32 0.0, %v2256
      %v2258 = vpop.f32.mrb[0].mxu0
      %2259 = vmatprep.mubr.bf16.mxu0 0
      %2260 = vmatmul.mubr.bf16.gmra.mrb[0].mxu0 %v2152
      %v2261 = vpop.f32.mrb[0].mxu0
      %v2262 = vadd.f32 0.0, %v2261
      %v2263 = vpop.f32.mrb[0].mxu0
      %v2264 = vpop.f32.mrb[0].mxu0
      %v2265 = vadd.f32 0.0, %v2264
      %v2266 = vpop.f32.mrb[0].mxu0
      %2267 = vmatprep.mubr.bf16.mxu0 0
      %2268 = vmatmul.mubr.bf16.gmra.mrb[0].mxu0 %v2155
      %v2269 = vpop.f32.mrb[0].mxu0
      %v2270 = vadd.f32 0.0, %v2269
      %v2271 = vpop.f32.mrb[0].mxu0
      %v2272 = vpop.f32.mrb[0].mxu0
      %v2273 = vadd.f32 0.0, %v2272
      %v2274 = vpop.f32.mrb[0].mxu0
      %2275 = vmatprep.mubr.bf16.mxu0 0
      %2276 = vmatmul.mubr.bf16.gmra.mrb[0].mxu0 %v2158
      %v2277 = vpop.f32.mrb[0].mxu0
      %v2278 = vadd.f32 0.0, %v2277
      %v2279 = vpop.f32.mrb[0].mxu0
      %v2280 = vpop.f32.mrb[0].mxu0
      %v2281 = vadd.f32 0.0, %v2280
      %v2282 = vpop.f32.mrb[0].mxu0
      %2283 = vmatprep.mubr.bf16.mxu0 0
      %2284 = vmatmul.mubr.bf16.gmra.mrb[0].mxu0 %v2161
      %v2285 = vpop.f32.mrb[0].mxu0
      %v2286 = vadd.f32 0.0, %v2285
      %v2287 = vpop.f32.mrb[0].mxu0
      %v2288 = vpop.f32.mrb[0].mxu0
      %v2289 = vadd.f32 0.0, %v2288
      %v2290 = vpop.f32.mrb[0].mxu0
      %2291 = vmatprep.mubr.bf16.mxu0 0
      %2292 = vmatmul.mubr.bf16.gmra.mrb[0].mxu0 %v2164
      %v2293 = vpop.f32.mrb[0].mxu0
      %v2294 = vadd.f32 0.0, %v2293
      %v2295 = vpop.f32.mrb[0].mxu0
      %v2296 = vpop.f32.mrb[0].mxu0
      %v2297 = vadd.f32 0.0, %v2296
      %v2298 = vpop.f32.mrb[0].mxu0
      %2299 = vmatprep.mubr.bf16.mxu0 0
      %2300 = vmatmul.mubr.bf16.gmra.mrb[0].mxu0 %v2167
      %v2301 = vpop.f32.mrb[0].mxu0
      %v2302 = vadd.f32 0.0, %v2301
      %v2303 = vpop.f32.mrb[0].mxu0
      %v2304 = vpop.f32.mrb[0].mxu0
      %v2305 = vadd.f32 0.0, %v2304
      %v2306 = vpop.f32.mrb[0].mxu0
      %2307 = vmatprep.mubr.bf16.mxu0 0
      %2308 = vmatmul.mubr.bf16.gmra.mrb[0].mxu0 %v2170
      %v2309 = vpop.f32.mrb[0].mxu0
      %v2310 = vadd.f32 0.0, %v2309
      %v2311 = vpop.f32.mrb[0].mxu0
      %v2312 = vpop.f32.mrb[0].mxu0
      %v2313 = vadd.f32 0.0, %v2312
      %v2314 = vpop.f32.mrb[0].mxu0
      %2315 = vmatprep.mubr.bf16.mxu0 0
      %2316 = vmatmul.mubr.bf16.gmra.mrb[0].mxu0 %v2173
      %v2317 = vpop.f32.mrb[0].mxu0
      %v2318 = vadd.f32 0.0, %v2317
      %v2319 = vpop.f32.mrb[0].mxu0
      %v2320 = vpop.f32.mrb[0].mxu0
      %v2321 = vadd.f32 0.0, %v2320
      %v2322 = vpop.f32.mrb[0].mxu0
      %2323 = vmatprep.mubr.bf16.mxu0 0
      %2324 = vmatmul.mubr.bf16.gmra.mrb[0].mxu0 %v2176
      %v2325 = vpop.f32.mrb[0].mxu0
      %v2326 = vadd.f32 0.0, %v2325
      %v2327 = vpop.f32.mrb[0].mxu0
      %v2328 = vpop.f32.mrb[0].mxu0
      %v2329 = vadd.f32 0.0, %v2328
      %v2330 = vpop.f32.mrb[0].mxu0
      %2331 = vmatprep.mubr.bf16.mxu0 0
      %2332 = vmatmul.mubr.bf16.gmra.mrb[0].mxu0 %v2179
      %v2333 = vpop.f32.mrb[0].mxu0
      %v2334 = vadd.f32 0.0, %v2333
      %v2335 = vpop.f32.mrb[0].mxu0
      %v2336 = vpop.f32.mrb[0].mxu0
      %v2337 = vadd.f32 0.0, %v2336
      %v2338 = vpop.f32.mrb[0].mxu0
      %2339 = vmatprep.mubr.bf16.mxu0 0
      %2340 = vmatmul.mubr.bf16.gmra.mrb[0].mxu0 %v2182
      %v2341 = vpop.f32.mrb[0].mxu0
      %v2342 = vadd.f32 0.0, %v2341
      %v2343 = vpop.f32.mrb[0].mxu0
      %v2344 = vpop.f32.mrb[0].mxu0
      %v2345 = vadd.f32 0.0, %v2344
      %v2346 = vpop.f32.mrb[0].mxu0
      %2347 = vdwg.mxu0
      %v2348 = vadd.f32 %v1671, %v2222
      %v2349 = vadd.f32 %v1674, %v2225
      %v2350 = vadd.f32 %v1679, %v2230
      %v2351 = vadd.f32 %v1682, %v2233
      %v2352 = vadd.f32 %v1687, %v2238
      %v2353 = vadd.f32 %v1690, %v2241
      %v2354 = vadd.f32 %v1695, %v2246
      %v2355 = vadd.f32 %v1698, %v2249
      %v2356 = vadd.f32 %v1703, %v2254
      %v2357 = vadd.f32 %v1706, %v2257
      %v2358 = vadd.f32 %v1711, %v2262
      %v2359 = vadd.f32 %v1714, %v2265
      %v2360 = vadd.f32 %v1719, %v2270
      %v2361 = vadd.f32 %v1722, %v2273
      %v2362 = vadd.f32 %v1727, %v2278
      %v2363 = vadd.f32 %v1730, %v2281
      %v2364 = vadd.f32 %v1735, %v2286
      %v2365 = vadd.f32 %v1738, %v2289
      %v2366 = vadd.f32 %v1743, %v2294
      %v2367 = vadd.f32 %v1746, %v2297
      %v2368 = vadd.f32 %v1751, %v2302
      %v2369 = vadd.f32 %v1754, %v2305
      %v2370 = vadd.f32 %v1759, %v2310
      %v2371 = vadd.f32 %v1762, %v2313
      %v2372 = vadd.f32 %v1767, %v2318
      %v2373 = vadd.f32 %v1770, %v2321
      %v2374 = vadd.f32 %v1775, %v2326
      %v2375 = vadd.f32 %v1778, %v2329
      %v2376 = vadd.f32 %v1783, %v2334
      %v2377 = vadd.f32 %v1786, %v2337
      %v2378 = vadd.f32 %v1791, %v2342
      %v2379 = vadd.f32 %v1794, %v2345
      %v2380 = vsel %vm888, 1, 0
      %v2381 = vsel %vm889, 1, 0
      %v2382 = vsel %vm890, 1, 0
      %v2383 = vsel %vm891, 1, 0
      %v2384 = vsel %vm892, 1, 0
      %v2385 = vsel %vm893, 1, 0
      %v2386 = vsel %vm894, 1, 0
      %v2387 = vsel %vm895, 1, 0
      %v2388 = vsel %vm896, 1, 0
      %v2389 = vsel %vm897, 1, 0
      %v2390 = vsel %vm898, 1, 0
      %v2391 = vsel %vm899, 1, 0
      %v2392 = vsel %vm900, 1, 0
      %v2393 = vsel %vm901, 1, 0
      %v2394 = vsel %vm902, 1, 0
      %v2395 = vsel %vm903, 1, 0
      %v2396 = vsel %vm904, 1, 0
      %v2397 = vsel %vm905, 1, 0
      %v2398 = vsel %vm906, 1, 0
      %v2399 = vsel %vm907, 1, 0
      %v2400 = vsel %vm908, 1, 0
      %v2401 = vsel %vm909, 1, 0
      %v2402 = vsel %vm910, 1, 0
      %v2403 = vsel %vm911, 1, 0
      %v2404 = vsel %vm912, 1, 0
      %v2405 = vsel %vm913, 1, 0
      %v2406 = vsel %vm914, 1, 0
      %v2407 = vsel %vm915, 1, 0
      %v2408 = vsel %vm916, 1, 0
      %v2409 = vsel %vm917, 1, 0
      %v2410 = vsel %vm918, 1, 0
      %v2411 = vsel %vm919, 1, 0
      %2412 = vset.pattern.permute.xlu0 0
      %2413 = vperm.xlu0 %2412, %v2380
      %v2414 = vpop.permute.xlu0 %2413
      %2415 = vset.pattern.permute.xlu0 0
      %2416 = vperm.xlu0 %2415, %v2381
      %v2417 = vpop.permute.xlu0 %2416
      %2418 = vset.pattern.permute.xlu0 0
      %2419 = vperm.xlu0 %2418, %v2382
      %v2420 = vpop.permute.xlu0 %2419
      %2421 = vset.pattern.permute.xlu0 0
      %2422 = vperm.xlu0 %2421, %v2383
      %v2423 = vpop.permute.xlu0 %2422
      %2424 = vset.pattern.permute.xlu0 0
      %2425 = vperm.xlu0 %2424, %v2384
      %v2426 = vpop.permute.xlu0 %2425
      %2427 = vset.pattern.permute.xlu0 0
      %2428 = vperm.xlu0 %2427, %v2385
      %v2429 = vpop.permute.xlu0 %2428
      %2430 = vset.pattern.permute.xlu0 0
      %2431 = vperm.xlu0 %2430, %v2386
      %v2432 = vpop.permute.xlu0 %2431
      %2433 = vset.pattern.permute.xlu0 0
      %2434 = vperm.xlu0 %2433, %v2387
      %v2435 = vpop.permute.xlu0 %2434
      %2436 = vset.pattern.permute.xlu0 0
      %2437 = vperm.xlu0 %2436, %v2388
      %v2438 = vpop.permute.xlu0 %2437
      %2439 = vset.pattern.permute.xlu0 0
      %2440 = vperm.xlu0 %2439, %v2389
      %v2441 = vpop.permute.xlu0 %2440
      %2442 = vset.pattern.permute.xlu0 0
      %2443 = vperm.xlu0 %2442, %v2390
      %v2444 = vpop.permute.xlu0 %2443
      %2445 = vset.pattern.permute.xlu0 0
      %2446 = vperm.xlu0 %2445, %v2391
      %v2447 = vpop.permute.xlu0 %2446
      %2448 = vset.pattern.permute.xlu0 0
      %2449 = vperm.xlu0 %2448, %v2392
      %v2450 = vpop.permute.xlu0 %2449
      %2451 = vset.pattern.permute.xlu0 0
      %2452 = vperm.xlu0 %2451, %v2393
      %v2453 = vpop.permute.xlu0 %2452
      %2454 = vset.pattern.permute.xlu0 0
      %2455 = vperm.xlu0 %2454, %v2394
      %v2456 = vpop.permute.xlu0 %2455
      %2457 = vset.pattern.permute.xlu0 0
      %2458 = vperm.xlu0 %2457, %v2395
      %v2459 = vpop.permute.xlu0 %2458
      %2460 = vset.pattern.permute.xlu0 0
      %2461 = vperm.xlu0 %2460, %v2396
      %v2462 = vpop.permute.xlu0 %2461
      %2463 = vset.pattern.permute.xlu0 0
      %2464 = vperm.xlu0 %2463, %v2397
      %v2465 = vpop.permute.xlu0 %2464
      %2466 = vset.pattern.permute.xlu0 0
      %2467 = vperm.xlu0 %2466, %v2398
      %v2468 = vpop.permute.xlu0 %2467
      %2469 = vset.pattern.permute.xlu0 0
      %2470 = vperm.xlu0 %2469, %v2399
      %v2471 = vpop.permute.xlu0 %2470
      %2472 = vset.pattern.permute.xlu0 0
      %2473 = vperm.xlu0 %2472, %v2400
      %v2474 = vpop.permute.xlu0 %2473
      %2475 = vset.pattern.permute.xlu0 0
      %2476 = vperm.xlu0 %2475, %v2401
      %v2477 = vpop.permute.xlu0 %2476
      %2478 = vset.pattern.permute.xlu0 0
      %2479 = vperm.xlu0 %2478, %v2402
      %v2480 = vpop.permute.xlu0 %2479
      %2481 = vset.pattern.permute.xlu0 0
      %2482 = vperm.xlu0 %2481, %v2403
      %v2483 = vpop.permute.xlu0 %2482
      %2484 = vset.pattern.permute.xlu0 0
      %2485 = vperm.xlu0 %2484, %v2404
      %v2486 = vpop.permute.xlu0 %2485
      %2487 = vset.pattern.permute.xlu0 0
      %2488 = vperm.xlu0 %2487, %v2405
      %v2489 = vpop.permute.xlu0 %2488
      %2490 = vset.pattern.permute.xlu0 0
      %2491 = vperm.xlu0 %2490, %v2406
      %v2492 = vpop.permute.xlu0 %2491
      %2493 = vset.pattern.permute.xlu0 0
      %2494 = vperm.xlu0 %2493, %v2407
      %v2495 = vpop.permute.xlu0 %2494
      %2496 = vset.pattern.permute.xlu0 0
      %2497 = vperm.xlu0 %2496, %v2408
      %v2498 = vpop.permute.xlu0 %2497
      %2499 = vset.pattern.permute.xlu0 0
      %2500 = vperm.xlu0 %2499, %v2409
      %v2501 = vpop.permute.xlu0 %2500
      %2502 = vset.pattern.permute.xlu0 0
      %2503 = vperm.xlu0 %2502, %v2410
      %v2504 = vpop.permute.xlu0 %2503
      %2505 = vset.pattern.permute.xlu0 0
      %2506 = vperm.xlu0 %2505, %v2411
      %v2507 = vpop.permute.xlu0 %2506
      %vm2508 = vcmp.eq.s32.totalorder %v2414, 1
      %vm2509 = vcmp.eq.s32.totalorder %v2417, 1
      %vm2510 = vcmp.eq.s32.totalorder %v2420, 1
      %vm2511 = vcmp.eq.s32.totalorder %v2423, 1
      %vm2512 = vcmp.eq.s32.totalorder %v2426, 1
      %vm2513 = vcmp.eq.s32.totalorder %v2429, 1
      %vm2514 = vcmp.eq.s32.totalorder %v2432, 1
      %vm2515 = vcmp.eq.s32.totalorder %v2435, 1
      %vm2516 = vcmp.eq.s32.totalorder %v2438, 1
      %vm2517 = vcmp.eq.s32.totalorder %v2441, 1
      %vm2518 = vcmp.eq.s32.totalorder %v2444, 1
      %vm2519 = vcmp.eq.s32.totalorder %v2447, 1
      %vm2520 = vcmp.eq.s32.totalorder %v2450, 1
      %vm2521 = vcmp.eq.s32.totalorder %v2453, 1
      %vm2522 = vcmp.eq.s32.totalorder %v2456, 1
      %vm2523 = vcmp.eq.s32.totalorder %v2459, 1
      %vm2524 = vcmp.eq.s32.totalorder %v2462, 1
      %vm2525 = vcmp.eq.s32.totalorder %v2465, 1
      %vm2526 = vcmp.eq.s32.totalorder %v2468, 1
      %vm2527 = vcmp.eq.s32.totalorder %v2471, 1
      %vm2528 = vcmp.eq.s32.totalorder %v2474, 1
      %vm2529 = vcmp.eq.s32.totalorder %v2477, 1
      %vm2530 = vcmp.eq.s32.totalorder %v2480, 1
      %vm2531 = vcmp.eq.s32.totalorder %v2483, 1
      %vm2532 = vcmp.eq.s32.totalorder %v2486, 1
      %vm2533 = vcmp.eq.s32.totalorder %v2489, 1
      %vm2534 = vcmp.eq.s32.totalorder %v2492, 1
      %vm2535 = vcmp.eq.s32.totalorder %v2495, 1
      %vm2536 = vcmp.eq.s32.totalorder %v2498, 1
      %vm2537 = vcmp.eq.s32.totalorder %v2501, 1
      %vm2538 = vcmp.eq.s32.totalorder %v2504, 1
      %vm2539 = vcmp.eq.s32.totalorder %v2507, 1
      %v2540 = vsel %vm2508, %v855, 0.0
      %v2541 = vsel %vm2509, %v854, 0.0
      %v2542 = vsel %vm2510, %v853, 0.0
      %v2543 = vsel %vm2511, %v852, 0.0
      %v2544 = vsel %vm2512, %v851, 0.0
      %v2545 = vsel %vm2513, %v850, 0.0
      %v2546 = vsel %vm2514, %v849, 0.0
      %v2547 = vsel %vm2515, %v848, 0.0
      %v2548 = vsel %vm2516, %v847, 0.0
      %v2549 = vsel %vm2517, %v846, 0.0
      %v2550 = vsel %vm2518, %v845, 0.0
      %v2551 = vsel %vm2519, %v844, 0.0
      %v2552 = vsel %vm2520, %v843, 0.0
      %v2553 = vsel %vm2521, %v842, 0.0
      %v2554 = vsel %vm2522, %v841, 0.0
      %v2555 = vsel %vm2523, %v840, 0.0
      %v2556 = vsel %vm2524, %v839, 0.0
      %v2557 = vsel %vm2525, %v838, 0.0
      %v2558 = vsel %vm2526, %v837, 0.0
      %v2559 = vsel %vm2527, %v836, 0.0
      %v2560 = vsel %vm2528, %v835, 0.0
      %v2561 = vsel %vm2529, %v834, 0.0
      %v2562 = vsel %vm2530, %v833, 0.0
      %v2563 = vsel %vm2531, %v832, 0.0
      %v2564 = vsel %vm2532, %v831, 0.0
      %v2565 = vsel %vm2533, %v830, 0.0
      %v2566 = vsel %vm2534, %v829, 0.0
      %v2567 = vsel %vm2535, %v828, 0.0
      %v2568 = vsel %vm2536, %v827, 0.0
      %v2569 = vsel %vm2537, %v826, 0.0
      %v2570 = vsel %vm2538, %v825, 0.0
      %v2571 = vsel %vm2539, %v824, 0.0
      %v2572 = vpack.c.bf16 %v2541, %v2540
      %v2573 = vpack.c.bf16 %v2543, %v2542
      %v2574 = vpack.c.bf16 %v2545, %v2544
      %v2575 = vpack.c.bf16 %v2547, %v2546
      %v2576 = vpack.c.bf16 %v2549, %v2548
      %v2577 = vpack.c.bf16 %v2551, %v2550
      %v2578 = vpack.c.bf16 %v2553, %v2552
      %v2579 = vpack.c.bf16 %v2555, %v2554
      %v2580 = vpack.c.bf16 %v2557, %v2556
      %v2581 = vpack.c.bf16 %v2559, %v2558
      %v2582 = vpack.c.bf16 %v2561, %v2560
      %v2583 = vpack.c.bf16 %v2563, %v2562
      %v2584 = vpack.c.bf16 %v2565, %v2564
      %v2585 = vpack.c.bf16 %v2567, %v2566
      %v2586 = vpack.c.bf16 %v2569, %v2568
      %v2587 = vpack.c.bf16 %v2571, %v2570
      %s2588 = scalar_lea.vmem %s6, 6
      %v2589 = vld [vmem:[%s2588] sm:$0x3]
      %v2591 = vsel %vm1371, %v2572, 0
      %v2594 = vsel %vm1371, %v2573, 0
      %v2597 = vsel %vm1371, %v2574, 0
      %v2600 = vsel %vm1371, %v2575, 0
      %v2603 = vsel %vm1371, %v2576, 0
      %v2606 = vsel %vm1371, %v2577, 0
      %v2609 = vsel %vm1371, %v2578, 0
      %v2612 = vsel %vm1371, %v2579, 0
      %v2615 = vsel %vm1371, %v2580, 0
      %v2618 = vsel %vm1371, %v2581, 0
      %v2621 = vsel %vm1371, %v2582, 0
      %v2624 = vsel %vm1371, %v2583, 0
      %v2627 = vsel %vm1371, %v2584, 0
      %v2630 = vsel %vm1371, %v2585, 0
      %v2633 = vsel %vm1371, %v2586, 0
      %v2636 = vsel %vm1371, %v2587, 0
      %v2639 = vsel %vm1420, %v2589, 0
      %2641 = vmatprep.subr.bf16.mxu0 0
      %2642 = vmatpush1.bf16.msra.mxu0 %v2639
      %2643 = vmatprep.subr.bf16.mxu0 0
      %2644 = vmatpush1.bf16.msra.mxu0 0
      %2645 = vmatprep.subr.bf16.mxu0 0
      %2646 = vmatpush1.bf16.msra.mxu0 0
      %2647 = vmatprep.subr.bf16.mxu0 0
      %2648 = vmatpush1.bf16.msra.mxu0 0
      %2649 = vmatprep.subr.bf16.mxu0 0
      %2650 = vmatpush1.bf16.msra.mxu0 0
      %2651 = vmatprep.subr.bf16.mxu0 0
      %2652 = vmatpush1.bf16.msra.mxu0 0
      %2653 = vmatprep.subr.bf16.mxu0 0
      %2654 = vmatpush1.bf16.msra.mxu0 0
      %2655 = vmatprep.subr.bf16.mxu0 0
      %2656 = vmatpush1.bf16.msra.mxu0 0
      %2657 = vmatprep.subr.bf16.mxu0 0
      %2658 = vmatpush1.bf16.msra.mxu0 0
      %2659 = vmatprep.subr.bf16.mxu0 0
      %2660 = vmatpush1.bf16.msra.mxu0 0
      %2661 = vmatprep.subr.bf16.mxu0 0
      %2662 = vmatpush1.bf16.msra.mxu0 0
      %2663 = vmatprep.subr.bf16.mxu0 0
      %2664 = vmatpush1.bf16.msra.mxu0 0
      %2665 = vmatprep.subr.bf16.mxu0 0
      %2666 = vmatpush1.bf16.msra.mxu0 0
      %2667 = vmatprep.subr.bf16.mxu0 0
      %2668 = vmatpush1.bf16.msra.mxu0 0
      %2669 = vmatprep.subr.bf16.mxu0 0
      %2670 = vmatpush1.bf16.msra.mxu0 0
      %2671 = vmatprep.subr.bf16.mxu0 0
      %2672 = vmatpush1.bf16.msra.mxu0 0
      %2673 = vmatprep.mubr.bf16.mxu0 0
      %2674 = vmatmul.mubr.bf16.gmra.mrb[0].mxu0 %v2591
      %v2675 = vpop.f32.mrb[0].mxu0
      %v2676 = vadd.f32 0.0, %v2675
      %v2677 = vpop.f32.mrb[0].mxu0
      %v2678 = vpop.f32.mrb[0].mxu0
      %v2679 = vadd.f32 0.0, %v2678
      %v2680 = vpop.f32.mrb[0].mxu0
      %2681 = vmatprep.mubr.bf16.mxu0 0
      %2682 = vmatmul.mubr.bf16.gmra.mrb[0].mxu0 %v2594
      %v2683 = vpop.f32.mrb[0].mxu0
      %v2684 = vadd.f32 0.0, %v2683
      %v2685 = vpop.f32.mrb[0].mxu0
      %v2686 = vpop.f32.mrb[0].mxu0
      %v2687 = vadd.f32 0.0, %v2686
      %v2688 = vpop.f32.mrb[0].mxu0
      %2689 = vmatprep.mubr.bf16.mxu0 0
      %2690 = vmatmul.mubr.bf16.gmra.mrb[0].mxu0 %v2597
      %v2691 = vpop.f32.mrb[0].mxu0
      %v2692 = vadd.f32 0.0, %v2691
      %v2693 = vpop.f32.mrb[0].mxu0
      %v2694 = vpop.f32.mrb[0].mxu0
      %v2695 = vadd.f32 0.0, %v2694
      %v2696 = vpop.f32.mrb[0].mxu0
      %2697 = vmatprep.mubr.bf16.mxu0 0
      %2698 = vmatmul.mubr.bf16.gmra.mrb[0].mxu0 %v2600
      %v2699 = vpop.f32.mrb[0].mxu0
      %v2700 = vadd.f32 0.0, %v2699
      %v2701 = vpop.f32.mrb[0].mxu0
      %v2702 = vpop.f32.mrb[0].mxu0
      %v2703 = vadd.f32 0.0, %v2702
      %v2704 = vpop.f32.mrb[0].mxu0
      %2705 = vmatprep.mubr.bf16.mxu0 0
      %2706 = vmatmul.mubr.bf16.gmra.mrb[0].mxu0 %v2603
      %v2707 = vpop.f32.mrb[0].mxu0
      %v2708 = vadd.f32 0.0, %v2707
      %v2709 = vpop.f32.mrb[0].mxu0
      %v2710 = vpop.f32.mrb[0].mxu0
      %v2711 = vadd.f32 0.0, %v2710
      %v2712 = vpop.f32.mrb[0].mxu0
      %2713 = vmatprep.mubr.bf16.mxu0 0
      %2714 = vmatmul.mubr.bf16.gmra.mrb[0].mxu0 %v2606
      %v2715 = vpop.f32.mrb[0].mxu0
      %v2716 = vadd.f32 0.0, %v2715
      %v2717 = vpop.f32.mrb[0].mxu0
      %v2718 = vpop.f32.mrb[0].mxu0
      %v2719 = vadd.f32 0.0, %v2718
      %v2720 = vpop.f32.mrb[0].mxu0
      %2721 = vmatprep.mubr.bf16.mxu0 0
      %2722 = vmatmul.mubr.bf16.gmra.mrb[0].mxu0 %v2609
      %v2723 = vpop.f32.mrb[0].mxu0
      %v2724 = vadd.f32 0.0, %v2723
      %v2725 = vpop.f32.mrb[0].mxu0
      %v2726 = vpop.f32.mrb[0].mxu0
      %v2727 = vadd.f32 0.0, %v2726
      %v2728 = vpop.f32.mrb[0].mxu0
      %2729 = vmatprep.mubr.bf16.mxu0 0
      %2730 = vmatmul.mubr.bf16.gmra.mrb[0].mxu0 %v2612
      %v2731 = vpop.f32.mrb[0].mxu0
      %v2732 = vadd.f32 0.0, %v2731
      %v2733 = vpop.f32.mrb[0].mxu0
      %v2734 = vpop.f32.mrb[0].mxu0
      %v2735 = vadd.f32 0.0, %v2734
      %v2736 = vpop.f32.mrb[0].mxu0
      %2737 = vmatprep.mubr.bf16.mxu0 0
      %2738 = vmatmul.mubr.bf16.gmra.mrb[0].mxu0 %v2615
      %v2739 = vpop.f32.mrb[0].mxu0
      %v2740 = vadd.f32 0.0, %v2739
      %v2741 = vpop.f32.mrb[0].mxu0
      %v2742 = vpop.f32.mrb[0].mxu0
      %v2743 = vadd.f32 0.0, %v2742
      %v2744 = vpop.f32.mrb[0].mxu0
      %2745 = vmatprep.mubr.bf16.mxu0 0
      %2746 = vmatmul.mubr.bf16.gmra.mrb[0].mxu0 %v2618
      %v2747 = vpop.f32.mrb[0].mxu0
      %v2748 = vadd.f32 0.0, %v2747
      %v2749 = vpop.f32.mrb[0].mxu0
      %v2750 = vpop.f32.mrb[0].mxu0
      %v2751 = vadd.f32 0.0, %v2750
      %v2752 = vpop.f32.mrb[0].mxu0
      %2753 = vmatprep.mubr.bf16.mxu0 0
      %2754 = vmatmul.mubr.bf16.gmra.mrb[0].mxu0 %v2621
      %v2755 = vpop.f32.mrb[0].mxu0
      %v2756 = vadd.f32 0.0, %v2755
      %v2757 = vpop.f32.mrb[0].mxu0
      %v2758 = vpop.f32.mrb[0].mxu0
      %v2759 = vadd.f32 0.0, %v2758
      %v2760 = vpop.f32.mrb[0].mxu0
      %2761 = vmatprep.mubr.bf16.mxu0 0
      %2762 = vmatmul.mubr.bf16.gmra.mrb[0].mxu0 %v2624
      %v2763 = vpop.f32.mrb[0].mxu0
      %v2764 = vadd.f32 0.0, %v2763
      %v2765 = vpop.f32.mrb[0].mxu0
      %v2766 = vpop.f32.mrb[0].mxu0
      %v2767 = vadd.f32 0.0, %v2766
      %v2768 = vpop.f32.mrb[0].mxu0
      %2769 = vmatprep.mubr.bf16.mxu0 0
      %2770 = vmatmul.mubr.bf16.gmra.mrb[0].mxu0 %v2627
      %v2771 = vpop.f32.mrb[0].mxu0
      %v2772 = vadd.f32 0.0, %v2771
      %v2773 = vpop.f32.mrb[0].mxu0
      %v2774 = vpop.f32.mrb[0].mxu0
      %v2775 = vadd.f32 0.0, %v2774
      %v2776 = vpop.f32.mrb[0].mxu0
      %2777 = vmatprep.mubr.bf16.mxu0 0
      %2778 = vmatmul.mubr.bf16.gmra.mrb[0].mxu0 %v2630
      %v2779 = vpop.f32.mrb[0].mxu0
      %v2780 = vadd.f32 0.0, %v2779
      %v2781 = vpop.f32.mrb[0].mxu0
      %v2782 = vpop.f32.mrb[0].mxu0
      %v2783 = vadd.f32 0.0, %v2782
      %v2784 = vpop.f32.mrb[0].mxu0
      %2785 = vmatprep.mubr.bf16.mxu0 0
      %2786 = vmatmul.mubr.bf16.gmra.mrb[0].mxu0 %v2633
      %v2787 = vpop.f32.mrb[0].mxu0
      %v2788 = vadd.f32 0.0, %v2787
      %v2789 = vpop.f32.mrb[0].mxu0
      %v2790 = vpop.f32.mrb[0].mxu0
      %v2791 = vadd.f32 0.0, %v2790
      %v2792 = vpop.f32.mrb[0].mxu0
      %2793 = vmatprep.mubr.bf16.mxu0 0
      %2794 = vmatmul.mubr.bf16.gmra.mrb[0].mxu0 %v2636
      %v2795 = vpop.f32.mrb[0].mxu0
      %v2796 = vadd.f32 0.0, %v2795
      %v2797 = vpop.f32.mrb[0].mxu0
      %v2798 = vpop.f32.mrb[0].mxu0
      %v2799 = vadd.f32 0.0, %v2798
      %v2800 = vpop.f32.mrb[0].mxu0
      %2801 = vdwg.mxu0
      %v2802 = vadd.f32 %v2348, %v2676
      %v2803 = vadd.f32 %v2349, %v2679
      %v2804 = vadd.f32 %v2350, %v2684
      %v2805 = vadd.f32 %v2351, %v2687
      %v2806 = vadd.f32 %v2352, %v2692
      %v2807 = vadd.f32 %v2353, %v2695
      %v2808 = vadd.f32 %v2354, %v2700
      %v2809 = vadd.f32 %v2355, %v2703
      %v2810 = vadd.f32 %v2356, %v2708
      %v2811 = vadd.f32 %v2357, %v2711
      %v2812 = vadd.f32 %v2358, %v2716
      %v2813 = vadd.f32 %v2359, %v2719
      %v2814 = vadd.f32 %v2360, %v2724
      %v2815 = vadd.f32 %v2361, %v2727
      %v2816 = vadd.f32 %v2362, %v2732
      %v2817 = vadd.f32 %v2363, %v2735
      %v2818 = vadd.f32 %v2364, %v2740
      %v2819 = vadd.f32 %v2365, %v2743
      %v2820 = vadd.f32 %v2366, %v2748
      %v2821 = vadd.f32 %v2367, %v2751
      %v2822 = vadd.f32 %v2368, %v2756
      %v2823 = vadd.f32 %v2369, %v2759
      %v2824 = vadd.f32 %v2370, %v2764
      %v2825 = vadd.f32 %v2371, %v2767
      %v2826 = vadd.f32 %v2372, %v2772
      %v2827 = vadd.f32 %v2373, %v2775
      %v2828 = vadd.f32 %v2374, %v2780
      %v2829 = vadd.f32 %v2375, %v2783
      %v2830 = vadd.f32 %v2376, %v2788
      %v2831 = vadd.f32 %v2377, %v2791
      %v2832 = vadd.f32 %v2378, %v2796
      %v2833 = vadd.f32 %v2379, %v2799
      %v2834 = vpack.c.bf16 %v694, %v693
      %v2835 = vpack.c.bf16 %v696, %v695
      %v2836 = vpack.c.bf16 %v698, %v697
      %v2837 = vpack.c.bf16 %v700, %v699
      %v2838 = vpack.c.bf16 %v702, %v701
      %v2839 = vpack.c.bf16 %v704, %v703
      %v2840 = vpack.c.bf16 %v706, %v705
      %v2841 = vpack.c.bf16 %v708, %v707
      %v2842 = vpack.c.bf16 %v710, %v709
      %v2843 = vpack.c.bf16 %v712, %v711
      %v2844 = vpack.c.bf16 %v714, %v713
      %v2845 = vpack.c.bf16 %v716, %v715
      %v2846 = vpack.c.bf16 %v718, %v717
      %v2847 = vpack.c.bf16 %v720, %v719
      %v2848 = vpack.c.bf16 %v722, %v721
      %v2849 = vpack.c.bf16 %v724, %v723
      %s2850 = scalar_lea.vmem %s6, 8
      %v2851 = vld [vmem:[%s2850] sm:$0x3]
      %v2853 = vsel %vm1371, %v2834, 0
      %v2856 = vsel %vm1371, %v2835, 0
      %v2859 = vsel %vm1371, %v2836, 0
      %v2862 = vsel %vm1371, %v2837, 0
      %v2865 = vsel %vm1371, %v2838, 0
      %v2868 = vsel %vm1371, %v2839, 0
      %v2871 = vsel %vm1371, %v2840, 0
      %v2874 = vsel %vm1371, %v2841, 0
      %v2877 = vsel %vm1371, %v2842, 0
      %v2880 = vsel %vm1371, %v2843, 0
      %v2883 = vsel %vm1371, %v2844, 0
      %v2886 = vsel %vm1371, %v2845, 0
      %v2889 = vsel %vm1371, %v2846, 0
      %v2892 = vsel %vm1371, %v2847, 0
      %v2895 = vsel %vm1371, %v2848, 0
      %v2898 = vsel %vm1371, %v2849, 0
      %v2901 = vsel %vm1420, %v2851, 0
      %2903 = vmatprep.subr.bf16.mxu0 0
      %2904 = vmatpush1.bf16.msra.mxu0 %v2901
      %2905 = vmatprep.subr.bf16.mxu0 0
      %2906 = vmatpush1.bf16.msra.mxu0 0
      %2907 = vmatprep.subr.bf16.mxu0 0
      %2908 = vmatpush1.bf16.msra.mxu0 0
      %2909 = vmatprep.subr.bf16.mxu0 0
      %2910 = vmatpush1.bf16.msra.mxu0 0
      %2911 = vmatprep.subr.bf16.mxu0 0
      %2912 = vmatpush1.bf16.msra.mxu0 0
      %2913 = vmatprep.subr.bf16.mxu0 0
      %2914 = vmatpush1.bf16.msra.mxu0 0
      %2915 = vmatprep.subr.bf16.mxu0 0
      %2916 = vmatpush1.bf16.msra.mxu0 0
      %2917 = vmatprep.subr.bf16.mxu0 0
      %2918 = vmatpush1.bf16.msra.mxu0 0
      %2919 = vmatprep.subr.bf16.mxu0 0
      %2920 = vmatpush1.bf16.msra.mxu0 0
      %2921 = vmatprep.subr.bf16.mxu0 0
      %2922 = vmatpush1.bf16.msra.mxu0 0
      %2923 = vmatprep.subr.bf16.mxu0 0
      %2924 = vmatpush1.bf16.msra.mxu0 0
      %2925 = vmatprep.subr.bf16.mxu0 0
      %2926 = vmatpush1.bf16.msra.mxu0 0
      %2927 = vmatprep.subr.bf16.mxu0 0
      %2928 = vmatpush1.bf16.msra.mxu0 0
      %2929 = vmatprep.subr.bf16.mxu0 0
      %2930 = vmatpush1.bf16.msra.mxu0 0
      %2931 = vmatprep.subr.bf16.mxu0 0
      %2932 = vmatpush1.bf16.msra.mxu0 0
      %2933 = vmatprep.subr.bf16.mxu0 0
      %2934 = vmatpush1.bf16.msra.mxu0 0
      %2935 = vmatprep.mubr.bf16.mxu0 0
      %2936 = vmatmul.mubr.bf16.gmra.mrb[0].mxu0 %v2853
      %v2937 = vpop.f32.mrb[0].mxu0
      %v2938 = vadd.f32 0.0, %v2937
      %v2939 = vpop.f32.mrb[0].mxu0
      %v2940 = vpop.f32.mrb[0].mxu0
      %v2941 = vadd.f32 0.0, %v2940
      %v2942 = vpop.f32.mrb[0].mxu0
      %2943 = vmatprep.mubr.bf16.mxu0 0
      %2944 = vmatmul.mubr.bf16.gmra.mrb[0].mxu0 %v2856
      %v2945 = vpop.f32.mrb[0].mxu0
      %v2946 = vadd.f32 0.0, %v2945
      %v2947 = vpop.f32.mrb[0].mxu0
      %v2948 = vpop.f32.mrb[0].mxu0
      %v2949 = vadd.f32 0.0, %v2948
      %v2950 = vpop.f32.mrb[0].mxu0
      %2951 = vmatprep.mubr.bf16.mxu0 0
      %2952 = vmatmul.mubr.bf16.gmra.mrb[0].mxu0 %v2859
      %v2953 = vpop.f32.mrb[0].mxu0
      %v2954 = vadd.f32 0.0, %v2953
      %v2955 = vpop.f32.mrb[0].mxu0
      %v2956 = vpop.f32.mrb[0].mxu0
      %v2957 = vadd.f32 0.0, %v2956
      %v2958 = vpop.f32.mrb[0].mxu0
      %2959 = vmatprep.mubr.bf16.mxu0 0
      %2960 = vmatmul.mubr.bf16.gmra.mrb[0].mxu0 %v2862
      %v2961 = vpop.f32.mrb[0].mxu0
      %v2962 = vadd.f32 0.0, %v2961
      %v2963 = vpop.f32.mrb[0].mxu0
      %v2964 = vpop.f32.mrb[0].mxu0
      %v2965 = vadd.f32 0.0, %v2964
      %v2966 = vpop.f32.mrb[0].mxu0
      %2967 = vmatprep.mubr.bf16.mxu0 0
      %2968 = vmatmul.mubr.bf16.gmra.mrb[0].mxu0 %v2865
      %v2969 = vpop.f32.mrb[0].mxu0
      %v2970 = vadd.f32 0.0, %v2969
      %v2971 = vpop.f32.mrb[0].mxu0
      %v2972 = vpop.f32.mrb[0].mxu0
      %v2973 = vadd.f32 0.0, %v2972
      %v2974 = vpop.f32.mrb[0].mxu0
      %2975 = vmatprep.mubr.bf16.mxu0 0
      %2976 = vmatmul.mubr.bf16.gmra.mrb[0].mxu0 %v2868
      %v2977 = vpop.f32.mrb[0].mxu0
      %v2978 = vadd.f32 0.0, %v2977
      %v2979 = vpop.f32.mrb[0].mxu0
      %v2980 = vpop.f32.mrb[0].mxu0
      %v2981 = vadd.f32 0.0, %v2980
      %v2982 = vpop.f32.mrb[0].mxu0
      %2983 = vmatprep.mubr.bf16.mxu0 0
      %2984 = vmatmul.mubr.bf16.gmra.mrb[0].mxu0 %v2871
      %v2985 = vpop.f32.mrb[0].mxu0
      %v2986 = vadd.f32 0.0, %v2985
      %v2987 = vpop.f32.mrb[0].mxu0
      %v2988 = vpop.f32.mrb[0].mxu0
      %v2989 = vadd.f32 0.0, %v2988
      %v2990 = vpop.f32.mrb[0].mxu0
      %2991 = vmatprep.mubr.bf16.mxu0 0
      %2992 = vmatmul.mubr.bf16.gmra.mrb[0].mxu0 %v2874
      %v2993 = vpop.f32.mrb[0].mxu0
      %v2994 = vadd.f32 0.0, %v2993
      %v2995 = vpop.f32.mrb[0].mxu0
      %v2996 = vpop.f32.mrb[0].mxu0
      %v2997 = vadd.f32 0.0, %v2996
      %v2998 = vpop.f32.mrb[0].mxu0
      %2999 = vmatprep.mubr.bf16.mxu0 0
      %3000 = vmatmul.mubr.bf16.gmra.mrb[0].mxu0 %v2877
      %v3001 = vpop.f32.mrb[0].mxu0
      %v3002 = vadd.f32 0.0, %v3001
      %v3003 = vpop.f32.mrb[0].mxu0
      %v3004 = vpop.f32.mrb[0].mxu0
      %v3005 = vadd.f32 0.0, %v3004
      %v3006 = vpop.f32.mrb[0].mxu0
      %3007 = vmatprep.mubr.bf16.mxu0 0
      %3008 = vmatmul.mubr.bf16.gmra.mrb[0].mxu0 %v2880
      %v3009 = vpop.f32.mrb[0].mxu0
      %v3010 = vadd.f32 0.0, %v3009
      %v3011 = vpop.f32.mrb[0].mxu0
      %v3012 = vpop.f32.mrb[0].mxu0
      %v3013 = vadd.f32 0.0, %v3012
      %v3014 = vpop.f32.mrb[0].mxu0
      %3015 = vmatprep.mubr.bf16.mxu0 0
      %3016 = vmatmul.mubr.bf16.gmra.mrb[0].mxu0 %v2883
      %v3017 = vpop.f32.mrb[0].mxu0
      %v3018 = vadd.f32 0.0, %v3017
      %v3019 = vpop.f32.mrb[0].mxu0
      %v3020 = vpop.f32.mrb[0].mxu0
      %v3021 = vadd.f32 0.0, %v3020
      %v3022 = vpop.f32.mrb[0].mxu0
      %3023 = vmatprep.mubr.bf16.mxu0 0
      %3024 = vmatmul.mubr.bf16.gmra.mrb[0].mxu0 %v2886
      %v3025 = vpop.f32.mrb[0].mxu0
      %v3026 = vadd.f32 0.0, %v3025
      %v3027 = vpop.f32.mrb[0].mxu0
      %v3028 = vpop.f32.mrb[0].mxu0
      %v3029 = vadd.f32 0.0, %v3028
      %v3030 = vpop.f32.mrb[0].mxu0
      %3031 = vmatprep.mubr.bf16.mxu0 0
      %3032 = vmatmul.mubr.bf16.gmra.mrb[0].mxu0 %v2889
      %v3033 = vpop.f32.mrb[0].mxu0
      %v3034 = vadd.f32 0.0, %v3033
      %v3035 = vpop.f32.mrb[0].mxu0
      %v3036 = vpop.f32.mrb[0].mxu0
      %v3037 = vadd.f32 0.0, %v3036
      %v3038 = vpop.f32.mrb[0].mxu0
      %3039 = vmatprep.mubr.bf16.mxu0 0
      %3040 = vmatmul.mubr.bf16.gmra.mrb[0].mxu0 %v2892
      %v3041 = vpop.f32.mrb[0].mxu0
      %v3042 = vadd.f32 0.0, %v3041
      %v3043 = vpop.f32.mrb[0].mxu0
      %v3044 = vpop.f32.mrb[0].mxu0
      %v3045 = vadd.f32 0.0, %v3044
      %v3046 = vpop.f32.mrb[0].mxu0
      %3047 = vmatprep.mubr.bf16.mxu0 0
      %3048 = vmatmul.mubr.bf16.gmra.mrb[0].mxu0 %v2895
      %v3049 = vpop.f32.mrb[0].mxu0
      %v3050 = vadd.f32 0.0, %v3049
      %v3051 = vpop.f32.mrb[0].mxu0
      %v3052 = vpop.f32.mrb[0].mxu0
      %v3053 = vadd.f32 0.0, %v3052
      %v3054 = vpop.f32.mrb[0].mxu0
      %3055 = vmatprep.mubr.bf16.mxu0 0
      %3056 = vmatmul.mubr.bf16.gmra.mrb[0].mxu0 %v2898
      %v3057 = vpop.f32.mrb[0].mxu0
      %v3058 = vadd.f32 0.0, %v3057
      %v3059 = vpop.f32.mrb[0].mxu0
      %v3060 = vpop.f32.mrb[0].mxu0
      %v3061 = vadd.f32 0.0, %v3060
      %v3062 = vpop.f32.mrb[0].mxu0
      %3063 = vdwg.mxu0
      %v3064 = vadd.f32 %v2802, %v2938
      %v3065 = vadd.f32 %v2803, %v2941
      %v3066 = vadd.f32 %v2804, %v2946
      %v3067 = vadd.f32 %v2805, %v2949
      %v3068 = vadd.f32 %v2806, %v2954
      %v3069 = vadd.f32 %v2807, %v2957
      %v3070 = vadd.f32 %v2808, %v2962
      %v3071 = vadd.f32 %v2809, %v2965
      %v3072 = vadd.f32 %v2810, %v2970
      %v3073 = vadd.f32 %v2811, %v2973
      %v3074 = vadd.f32 %v2812, %v2978
      %v3075 = vadd.f32 %v2813, %v2981
      %v3076 = vadd.f32 %v2814, %v2986
      %v3077 = vadd.f32 %v2815, %v2989
      %v3078 = vadd.f32 %v2816, %v2994
      %v3079 = vadd.f32 %v2817, %v2997
      %v3080 = vadd.f32 %v2818, %v3002
      %v3081 = vadd.f32 %v2819, %v3005
      %v3082 = vadd.f32 %v2820, %v3010
      %v3083 = vadd.f32 %v2821, %v3013
      %v3084 = vadd.f32 %v2822, %v3018
      %v3085 = vadd.f32 %v2823, %v3021
      %v3086 = vadd.f32 %v2824, %v3026
      %v3087 = vadd.f32 %v2825, %v3029
      %v3088 = vadd.f32 %v2826, %v3034
      %v3089 = vadd.f32 %v2827, %v3037
      %v3090 = vadd.f32 %v2828, %v3042
      %v3091 = vadd.f32 %v2829, %v3045
      %v3092 = vadd.f32 %v2830, %v3050
      %v3093 = vadd.f32 %v2831, %v3053
      %v3094 = vadd.f32 %v2832, %v3058
      %v3095 = vadd.f32 %v2833, %v3061
      %v3096 = vsel %vm1862, 1, 0
      %v3097 = vsel %vm1863, 1, 0
      %v3098 = vsel %vm1864, 1, 0
      %v3099 = vsel %vm1865, 1, 0
      %v3100 = vsel %vm1866, 1, 0
      %v3101 = vsel %vm1867, 1, 0
      %v3102 = vsel %vm1868, 1, 0
      %v3103 = vsel %vm1869, 1, 0
      %v3104 = vsel %vm1870, 1, 0
      %v3105 = vsel %vm1871, 1, 0
      %v3106 = vsel %vm1872, 1, 0
      %v3107 = vsel %vm1873, 1, 0
      %v3108 = vsel %vm1874, 1, 0
      %v3109 = vsel %vm1875, 1, 0
      %v3110 = vsel %vm1876, 1, 0
      %v3111 = vsel %vm1877, 1, 0
      %v3112 = vsel %vm1878, 1, 0
      %v3113 = vsel %vm1879, 1, 0
      %v3114 = vsel %vm1880, 1, 0
      %v3115 = vsel %vm1881, 1, 0
      %v3116 = vsel %vm1882, 1, 0
      %v3117 = vsel %vm1883, 1, 0
      %v3118 = vsel %vm1884, 1, 0
      %v3119 = vsel %vm1885, 1, 0
      %v3120 = vsel %vm1886, 1, 0
      %v3121 = vsel %vm1887, 1, 0
      %v3122 = vsel %vm1888, 1, 0
      %v3123 = vsel %vm1889, 1, 0
      %v3124 = vsel %vm1890, 1, 0
      %v3125 = vsel %vm1891, 1, 0
      %v3126 = vsel %vm1892, 1, 0
      %v3127 = vsel %vm1893, 1, 0
      %3128 = vset.pattern.permute.xlu0 0
      %3129 = vperm.xlu0 %3128, %v3096
      %v3130 = vpop.permute.xlu0 %3129
      %3131 = vset.pattern.permute.xlu0 0
      %3132 = vperm.xlu0 %3131, %v3097
      %v3133 = vpop.permute.xlu0 %3132
      %3134 = vset.pattern.permute.xlu0 0
      %3135 = vperm.xlu0 %3134, %v3098
      %v3136 = vpop.permute.xlu0 %3135
      %3137 = vset.pattern.permute.xlu0 0
      %3138 = vperm.xlu0 %3137, %v3099
      %v3139 = vpop.permute.xlu0 %3138
      %3140 = vset.pattern.permute.xlu0 0
      %3141 = vperm.xlu0 %3140, %v3100
      %v3142 = vpop.permute.xlu0 %3141
      %3143 = vset.pattern.permute.xlu0 0
      %3144 = vperm.xlu0 %3143, %v3101
      %v3145 = vpop.permute.xlu0 %3144
      %3146 = vset.pattern.permute.xlu0 0
      %3147 = vperm.xlu0 %3146, %v3102
      %v3148 = vpop.permute.xlu0 %3147
      %3149 = vset.pattern.permute.xlu0 0
      %3150 = vperm.xlu0 %3149, %v3103
      %v3151 = vpop.permute.xlu0 %3150
      %3152 = vset.pattern.permute.xlu0 0
      %3153 = vperm.xlu0 %3152, %v3104
      %v3154 = vpop.permute.xlu0 %3153
      %3155 = vset.pattern.permute.xlu0 0
      %3156 = vperm.xlu0 %3155, %v3105
      %v3157 = vpop.permute.xlu0 %3156
      %3158 = vset.pattern.permute.xlu0 0
      %3159 = vperm.xlu0 %3158, %v3106
      %v3160 = vpop.permute.xlu0 %3159
      %3161 = vset.pattern.permute.xlu0 0
      %3162 = vperm.xlu0 %3161, %v3107
      %v3163 = vpop.permute.xlu0 %3162
      %3164 = vset.pattern.permute.xlu0 0
      %3165 = vperm.xlu0 %3164, %v3108
      %v3166 = vpop.permute.xlu0 %3165
      %3167 = vset.pattern.permute.xlu0 0
      %3168 = vperm.xlu0 %3167, %v3109
      %v3169 = vpop.permute.xlu0 %3168
      %3170 = vset.pattern.permute.xlu0 0
      %3171 = vperm.xlu0 %3170, %v3110
      %v3172 = vpop.permute.xlu0 %3171
      %3173 = vset.pattern.permute.xlu0 0
      %3174 = vperm.xlu0 %3173, %v3111
      %v3175 = vpop.permute.xlu0 %3174
      %3176 = vset.pattern.permute.xlu0 0
      %3177 = vperm.xlu0 %3176, %v3112
      %v3178 = vpop.permute.xlu0 %3177
      %3179 = vset.pattern.permute.xlu0 0
      %3180 = vperm.xlu0 %3179, %v3113
      %v3181 = vpop.permute.xlu0 %3180
      %3182 = vset.pattern.permute.xlu0 0
      %3183 = vperm.xlu0 %3182, %v3114
      %v3184 = vpop.permute.xlu0 %3183
      %3185 = vset.pattern.permute.xlu0 0
      %3186 = vperm.xlu0 %3185, %v3115
      %v3187 = vpop.permute.xlu0 %3186
      %3188 = vset.pattern.permute.xlu0 0
      %3189 = vperm.xlu0 %3188, %v3116
      %v3190 = vpop.permute.xlu0 %3189
      %3191 = vset.pattern.permute.xlu0 0
      %3192 = vperm.xlu0 %3191, %v3117
      %v3193 = vpop.permute.xlu0 %3192
      %3194 = vset.pattern.permute.xlu0 0
      %3195 = vperm.xlu0 %3194, %v3118
      %v3196 = vpop.permute.xlu0 %3195
      %3197 = vset.pattern.permute.xlu0 0
      %3198 = vperm.xlu0 %3197, %v3119
      %v3199 = vpop.permute.xlu0 %3198
      %3200 = vset.pattern.permute.xlu0 0
      %3201 = vperm.xlu0 %3200, %v3120
      %v3202 = vpop.permute.xlu0 %3201
      %3203 = vset.pattern.permute.xlu0 0
      %3204 = vperm.xlu0 %3203, %v3121
      %v3205 = vpop.permute.xlu0 %3204
      %3206 = vset.pattern.permute.xlu0 0
      %3207 = vperm.xlu0 %3206, %v3122
      %v3208 = vpop.permute.xlu0 %3207
      %3209 = vset.pattern.permute.xlu0 0
      %3210 = vperm.xlu0 %3209, %v3123
      %v3211 = vpop.permute.xlu0 %3210
      %3212 = vset.pattern.permute.xlu0 0
      %3213 = vperm.xlu0 %3212, %v3124
      %v3214 = vpop.permute.xlu0 %3213
      %3215 = vset.pattern.permute.xlu0 0
      %3216 = vperm.xlu0 %3215, %v3125
      %v3217 = vpop.permute.xlu0 %3216
      %3218 = vset.pattern.permute.xlu0 0
      %3219 = vperm.xlu0 %3218, %v3126
      %v3220 = vpop.permute.xlu0 %3219
      %3221 = vset.pattern.permute.xlu0 0
      %3222 = vperm.xlu0 %3221, %v3127
      %v3223 = vpop.permute.xlu0 %3222
      %vm3224 = vcmp.eq.s32.totalorder %v3130, 1
      %vm3225 = vcmp.eq.s32.totalorder %v3133, 1
      %vm3226 = vcmp.eq.s32.totalorder %v3136, 1
      %vm3227 = vcmp.eq.s32.totalorder %v3139, 1
      %vm3228 = vcmp.eq.s32.totalorder %v3142, 1
      %vm3229 = vcmp.eq.s32.totalorder %v3145, 1
      %vm3230 = vcmp.eq.s32.totalorder %v3148, 1
      %vm3231 = vcmp.eq.s32.totalorder %v3151, 1
      %vm3232 = vcmp.eq.s32.totalorder %v3154, 1
      %vm3233 = vcmp.eq.s32.totalorder %v3157, 1
      %vm3234 = vcmp.eq.s32.totalorder %v3160, 1
      %vm3235 = vcmp.eq.s32.totalorder %v3163, 1
      %vm3236 = vcmp.eq.s32.totalorder %v3166, 1
      %vm3237 = vcmp.eq.s32.totalorder %v3169, 1
      %vm3238 = vcmp.eq.s32.totalorder %v3172, 1
      %vm3239 = vcmp.eq.s32.totalorder %v3175, 1
      %vm3240 = vcmp.eq.s32.totalorder %v3178, 1
      %vm3241 = vcmp.eq.s32.totalorder %v3181, 1
      %vm3242 = vcmp.eq.s32.totalorder %v3184, 1
      %vm3243 = vcmp.eq.s32.totalorder %v3187, 1
      %vm3244 = vcmp.eq.s32.totalorder %v3190, 1
      %vm3245 = vcmp.eq.s32.totalorder %v3193, 1
      %vm3246 = vcmp.eq.s32.totalorder %v3196, 1
      %vm3247 = vcmp.eq.s32.totalorder %v3199, 1
      %vm3248 = vcmp.eq.s32.totalorder %v3202, 1
      %vm3249 = vcmp.eq.s32.totalorder %v3205, 1
      %vm3250 = vcmp.eq.s32.totalorder %v3208, 1
      %vm3251 = vcmp.eq.s32.totalorder %v3211, 1
      %vm3252 = vcmp.eq.s32.totalorder %v3214, 1
      %vm3253 = vcmp.eq.s32.totalorder %v3217, 1
      %vm3254 = vcmp.eq.s32.totalorder %v3220, 1
      %vm3255 = vcmp.eq.s32.totalorder %v3223, 1
      %v3256 = vsel %vm3224, %v1860, 0.0
      %v3257 = vsel %vm3225, %v1859, 0.0
      %v3258 = vsel %vm3226, %v1858, 0.0
      %v3259 = vsel %vm3227, %v1857, 0.0
      %v3260 = vsel %vm3228, %v1856, 0.0
      %v3261 = vsel %vm3229, %v1855, 0.0
      %v3262 = vsel %vm3230, %v1854, 0.0
      %v3263 = vsel %vm3231, %v1853, 0.0
      %v3264 = vsel %vm3232, %v1852, 0.0
      %v3265 = vsel %vm3233, %v1851, 0.0
      %v3266 = vsel %vm3234, %v1850, 0.0
      %v3267 = vsel %vm3235, %v1849, 0.0
      %v3268 = vsel %vm3236, %v1848, 0.0
      %v3269 = vsel %vm3237, %v1847, 0.0
      %v3270 = vsel %vm3238, %v1846, 0.0
      %v3271 = vsel %vm3239, %v1845, 0.0
      %v3272 = vsel %vm3240, %v1844, 0.0
      %v3273 = vsel %vm3241, %v1843, 0.0
      %v3274 = vsel %vm3242, %v1842, 0.0
      %v3275 = vsel %vm3243, %v1841, 0.0
      %v3276 = vsel %vm3244, %v1840, 0.0
      %v3277 = vsel %vm3245, %v1839, 0.0
      %v3278 = vsel %vm3246, %v1838, 0.0
      %v3279 = vsel %vm3247, %v1837, 0.0
      %v3280 = vsel %vm3248, %v1836, 0.0
      %v3281 = vsel %vm3249, %v1835, 0.0
      %v3282 = vsel %vm3250, %v1834, 0.0
      %v3283 = vsel %vm3251, %v1833, 0.0
      %v3284 = vsel %vm3252, %v1832, 0.0
      %v3285 = vsel %vm3253, %v1831, 0.0
      %v3286 = vsel %vm3254, %v1830, 0.0
      %v3287 = vsel %vm3255, %v1861, 0.0
      %v3288 = vpack.c.bf16 %v3257, %v3256
      %v3289 = vpack.c.bf16 %v3259, %v3258
      %v3290 = vpack.c.bf16 %v3261, %v3260
      %v3291 = vpack.c.bf16 %v3263, %v3262
      %v3292 = vpack.c.bf16 %v3265, %v3264
      %v3293 = vpack.c.bf16 %v3267, %v3266
      %v3294 = vpack.c.bf16 %v3269, %v3268
      %v3295 = vpack.c.bf16 %v3271, %v3270
      %v3296 = vpack.c.bf16 %v3273, %v3272
      %v3297 = vpack.c.bf16 %v3275, %v3274
      %v3298 = vpack.c.bf16 %v3277, %v3276
      %v3299 = vpack.c.bf16 %v3279, %v3278
      %v3300 = vpack.c.bf16 %v3281, %v3280
      %v3301 = vpack.c.bf16 %v3283, %v3282
      %v3302 = vpack.c.bf16 %v3285, %v3284
      %v3303 = vpack.c.bf16 %v3287, %v3286
      %s3304 = scalar_lea.vmem %s6, 10
      %v3305 = vld [vmem:[%s3304] sm:$0x3]
      %v3307 = vsel %vm1371, %v3288, 0
      %v3310 = vsel %vm1371, %v3289, 0
      %v3313 = vsel %vm1371, %v3290, 0
      %v3316 = vsel %vm1371, %v3291, 0
      %v3319 = vsel %vm1371, %v3292, 0
      %v3322 = vsel %vm1371, %v3293, 0
      %v3325 = vsel %vm1371, %v3294, 0
      %v3328 = vsel %vm1371, %v3295, 0
      %v3331 = vsel %vm1371, %v3296, 0
      %v3334 = vsel %vm1371, %v3297, 0
      %v3337 = vsel %vm1371, %v3298, 0
      %v3340 = vsel %vm1371, %v3299, 0
      %v3343 = vsel %vm1371, %v3300, 0
      %v3346 = vsel %vm1371, %v3301, 0
      %v3349 = vsel %vm1371, %v3302, 0
      %v3352 = vsel %vm1371, %v3303, 0
      %v3355 = vsel %vm1420, %v3305, 0
      %3357 = vmatprep.subr.bf16.mxu0 0
      %3358 = vmatpush1.bf16.msra.mxu0 %v3355
      %3359 = vmatprep.subr.bf16.mxu0 0
      %3360 = vmatpush1.bf16.msra.mxu0 0
      %3361 = vmatprep.subr.bf16.mxu0 0
      %3362 = vmatpush1.bf16.msra.mxu0 0
      %3363 = vmatprep.subr.bf16.mxu0 0
      %3364 = vmatpush1.bf16.msra.mxu0 0
      %3365 = vmatprep.subr.bf16.mxu0 0
      %3366 = vmatpush1.bf16.msra.mxu0 0
      %3367 = vmatprep.subr.bf16.mxu0 0
      %3368 = vmatpush1.bf16.msra.mxu0 0
      %3369 = vmatprep.subr.bf16.mxu0 0
      %3370 = vmatpush1.bf16.msra.mxu0 0
      %3371 = vmatprep.subr.bf16.mxu0 0
      %3372 = vmatpush1.bf16.msra.mxu0 0
      %3373 = vmatprep.subr.bf16.mxu0 0
      %3374 = vmatpush1.bf16.msra.mxu0 0
      %3375 = vmatprep.subr.bf16.mxu0 0
      %3376 = vmatpush1.bf16.msra.mxu0 0
      %3377 = vmatprep.subr.bf16.mxu0 0
      %3378 = vmatpush1.bf16.msra.mxu0 0
      %3379 = vmatprep.subr.bf16.mxu0 0
      %3380 = vmatpush1.bf16.msra.mxu0 0
      %3381 = vmatprep.subr.bf16.mxu0 0
      %3382 = vmatpush1.bf16.msra.mxu0 0
      %3383 = vmatprep.subr.bf16.mxu0 0
      %3384 = vmatpush1.bf16.msra.mxu0 0
      %3385 = vmatprep.subr.bf16.mxu0 0
      %3386 = vmatpush1.bf16.msra.mxu0 0
      %3387 = vmatprep.subr.bf16.mxu0 0
      %3388 = vmatpush1.bf16.msra.mxu0 0
      %3389 = vmatprep.mubr.bf16.mxu0 0
      %3390 = vmatmul.mubr.bf16.gmra.mrb[0].mxu0 %v3307
      %v3391 = vpop.f32.mrb[0].mxu0
      %v3392 = vadd.f32 0.0, %v3391
      %v3393 = vpop.f32.mrb[0].mxu0
      %v3394 = vpop.f32.mrb[0].mxu0
      %v3395 = vadd.f32 0.0, %v3394
      %v3396 = vpop.f32.mrb[0].mxu0
      %3397 = vmatprep.mubr.bf16.mxu0 0
      %3398 = vmatmul.mubr.bf16.gmra.mrb[0].mxu0 %v3310
      %v3399 = vpop.f32.mrb[0].mxu0
      %v3400 = vadd.f32 0.0, %v3399
      %v3401 = vpop.f32.mrb[0].mxu0
      %v3402 = vpop.f32.mrb[0].mxu0
      %v3403 = vadd.f32 0.0, %v3402
      %v3404 = vpop.f32.mrb[0].mxu0
      %3405 = vmatprep.mubr.bf16.mxu0 0
      %3406 = vmatmul.mubr.bf16.gmra.mrb[0].mxu0 %v3313
      %v3407 = vpop.f32.mrb[0].mxu0
      %v3408 = vadd.f32 0.0, %v3407
      %v3409 = vpop.f32.mrb[0].mxu0
      %v3410 = vpop.f32.mrb[0].mxu0
      %v3411 = vadd.f32 0.0, %v3410
      %v3412 = vpop.f32.mrb[0].mxu0
      %3413 = vmatprep.mubr.bf16.mxu0 0
      %3414 = vmatmul.mubr.bf16.gmra.mrb[0].mxu0 %v3316
      %v3415 = vpop.f32.mrb[0].mxu0
      %v3416 = vadd.f32 0.0, %v3415
      %v3417 = vpop.f32.mrb[0].mxu0
      %v3418 = vpop.f32.mrb[0].mxu0
      %v3419 = vadd.f32 0.0, %v3418
      %v3420 = vpop.f32.mrb[0].mxu0
      %3421 = vmatprep.mubr.bf16.mxu0 0
      %3422 = vmatmul.mubr.bf16.gmra.mrb[0].mxu0 %v3319
      %v3423 = vpop.f32.mrb[0].mxu0
      %v3424 = vadd.f32 0.0, %v3423
      %v3425 = vpop.f32.mrb[0].mxu0
      %v3426 = vpop.f32.mrb[0].mxu0
      %v3427 = vadd.f32 0.0, %v3426
      %v3428 = vpop.f32.mrb[0].mxu0
      %3429 = vmatprep.mubr.bf16.mxu0 0
      %3430 = vmatmul.mubr.bf16.gmra.mrb[0].mxu0 %v3322
      %v3431 = vpop.f32.mrb[0].mxu0
      %v3432 = vadd.f32 0.0, %v3431
      %v3433 = vpop.f32.mrb[0].mxu0
      %v3434 = vpop.f32.mrb[0].mxu0
      %v3435 = vadd.f32 0.0, %v3434
      %v3436 = vpop.f32.mrb[0].mxu0
      %3437 = vmatprep.mubr.bf16.mxu0 0
      %3438 = vmatmul.mubr.bf16.gmra.mrb[0].mxu0 %v3325
      %v3439 = vpop.f32.mrb[0].mxu0
      %v3440 = vadd.f32 0.0, %v3439
      %v3441 = vpop.f32.mrb[0].mxu0
      %v3442 = vpop.f32.mrb[0].mxu0
      %v3443 = vadd.f32 0.0, %v3442
      %v3444 = vpop.f32.mrb[0].mxu0
      %3445 = vmatprep.mubr.bf16.mxu0 0
      %3446 = vmatmul.mubr.bf16.gmra.mrb[0].mxu0 %v3328
      %v3447 = vpop.f32.mrb[0].mxu0
      %v3448 = vadd.f32 0.0, %v3447
      %v3449 = vpop.f32.mrb[0].mxu0
      %v3450 = vpop.f32.mrb[0].mxu0
      %v3451 = vadd.f32 0.0, %v3450
      %v3452 = vpop.f32.mrb[0].mxu0
      %3453 = vmatprep.mubr.bf16.mxu0 0
      %3454 = vmatmul.mubr.bf16.gmra.mrb[0].mxu0 %v3331
      %v3455 = vpop.f32.mrb[0].mxu0
      %v3456 = vadd.f32 0.0, %v3455
      %v3457 = vpop.f32.mrb[0].mxu0
      %v3458 = vpop.f32.mrb[0].mxu0
      %v3459 = vadd.f32 0.0, %v3458
      %v3460 = vpop.f32.mrb[0].mxu0
      %3461 = vmatprep.mubr.bf16.mxu0 0
      %3462 = vmatmul.mubr.bf16.gmra.mrb[0].mxu0 %v3334
      %v3463 = vpop.f32.mrb[0].mxu0
      %v3464 = vadd.f32 0.0, %v3463
      %v3465 = vpop.f32.mrb[0].mxu0
      %v3466 = vpop.f32.mrb[0].mxu0
      %v3467 = vadd.f32 0.0, %v3466
      %v3468 = vpop.f32.mrb[0].mxu0
      %3469 = vmatprep.mubr.bf16.mxu0 0
      %3470 = vmatmul.mubr.bf16.gmra.mrb[0].mxu0 %v3337
      %v3471 = vpop.f32.mrb[0].mxu0
      %v3472 = vadd.f32 0.0, %v3471
      %v3473 = vpop.f32.mrb[0].mxu0
      %v3474 = vpop.f32.mrb[0].mxu0
      %v3475 = vadd.f32 0.0, %v3474
      %v3476 = vpop.f32.mrb[0].mxu0
      %3477 = vmatprep.mubr.bf16.mxu0 0
      %3478 = vmatmul.mubr.bf16.gmra.mrb[0].mxu0 %v3340
      %v3479 = vpop.f32.mrb[0].mxu0
      %v3480 = vadd.f32 0.0, %v3479
      %v3481 = vpop.f32.mrb[0].mxu0
      %v3482 = vpop.f32.mrb[0].mxu0
      %v3483 = vadd.f32 0.0, %v3482
      %v3484 = vpop.f32.mrb[0].mxu0
      %3485 = vmatprep.mubr.bf16.mxu0 0
      %3486 = vmatmul.mubr.bf16.gmra.mrb[0].mxu0 %v3343
      %v3487 = vpop.f32.mrb[0].mxu0
      %v3488 = vadd.f32 0.0, %v3487
      %v3489 = vpop.f32.mrb[0].mxu0
      %v3490 = vpop.f32.mrb[0].mxu0
      %v3491 = vadd.f32 0.0, %v3490
      %v3492 = vpop.f32.mrb[0].mxu0
      %3493 = vmatprep.mubr.bf16.mxu0 0
      %3494 = vmatmul.mubr.bf16.gmra.mrb[0].mxu0 %v3346
      %v3495 = vpop.f32.mrb[0].mxu0
      %v3496 = vadd.f32 0.0, %v3495
      %v3497 = vpop.f32.mrb[0].mxu0
      %v3498 = vpop.f32.mrb[0].mxu0
      %v3499 = vadd.f32 0.0, %v3498
      %v3500 = vpop.f32.mrb[0].mxu0
      %3501 = vmatprep.mubr.bf16.mxu0 0
      %3502 = vmatmul.mubr.bf16.gmra.mrb[0].mxu0 %v3349
      %v3503 = vpop.f32.mrb[0].mxu0
      %v3504 = vadd.f32 0.0, %v3503
      %v3505 = vpop.f32.mrb[0].mxu0
      %v3506 = vpop.f32.mrb[0].mxu0
      %v3507 = vadd.f32 0.0, %v3506
      %v3508 = vpop.f32.mrb[0].mxu0
      %3509 = vmatprep.mubr.bf16.mxu0 0
      %3510 = vmatmul.mubr.bf16.gmra.mrb[0].mxu0 %v3352
      %v3511 = vpop.f32.mrb[0].mxu0
      %v3512 = vadd.f32 0.0, %v3511
      %v3513 = vpop.f32.mrb[0].mxu0
      %v3514 = vpop.f32.mrb[0].mxu0
      %v3515 = vadd.f32 0.0, %v3514
      %v3516 = vpop.f32.mrb[0].mxu0
      %3517 = vdwg.mxu0
      %v3518 = vadd.f32 %v3064, %v3392
      %v3519 = vadd.f32 %v3065, %v3395
      %v3520 = vadd.f32 %v3066, %v3400
      %v3521 = vadd.f32 %v3067, %v3403
      %v3522 = vadd.f32 %v3068, %v3408
      %v3523 = vadd.f32 %v3069, %v3411
      %v3524 = vadd.f32 %v3070, %v3416
      %v3525 = vadd.f32 %v3071, %v3419
      %v3526 = vadd.f32 %v3072, %v3424
      %v3527 = vadd.f32 %v3073, %v3427
      %v3528 = vadd.f32 %v3074, %v3432
      %v3529 = vadd.f32 %v3075, %v3435
      %v3530 = vadd.f32 %v3076, %v3440
      %v3531 = vadd.f32 %v3077, %v3443
      %v3532 = vadd.f32 %v3078, %v3448
      %v3533 = vadd.f32 %v3079, %v3451
      %v3534 = vadd.f32 %v3080, %v3456
      %v3535 = vadd.f32 %v3081, %v3459
      %v3536 = vadd.f32 %v3082, %v3464
      %v3537 = vadd.f32 %v3083, %v3467
      %v3538 = vadd.f32 %v3084, %v3472
      %v3539 = vadd.f32 %v3085, %v3475
      %v3540 = vadd.f32 %v3086, %v3480
      %v3541 = vadd.f32 %v3087, %v3483
      %v3542 = vadd.f32 %v3088, %v3488
      %v3543 = vadd.f32 %v3089, %v3491
      %v3544 = vadd.f32 %v3090, %v3496
      %v3545 = vadd.f32 %v3091, %v3499
      %v3546 = vadd.f32 %v3092, %v3504
      %v3547 = vadd.f32 %v3093, %v3507
      %v3548 = vadd.f32 %v3094, %v3512
      %v3549 = vadd.f32 %v3095, %v3515
      %vm3550 = vcmp.lt.s32.totalorder %v725, 15
      %vm3551 = vcmp.lt.s32.totalorder %v726, 15
      %vm3552 = vcmp.lt.s32.totalorder %v727, 15
      %vm3553 = vcmp.lt.s32.totalorder %v728, 15
      %vm3554 = vcmp.lt.s32.totalorder %v729, 15
      %vm3555 = vcmp.lt.s32.totalorder %v730, 15
      %vm3556 = vcmp.lt.s32.totalorder %v731, 15
      %vm3557 = vcmp.lt.s32.totalorder %v732, 15
      %vm3558 = vcmp.lt.s32.totalorder %v733, 15
      %vm3559 = vcmp.lt.s32.totalorder %v734, 15
      %vm3560 = vcmp.lt.s32.totalorder %v735, 15
      %vm3561 = vcmp.lt.s32.totalorder %v736, 15
      %vm3562 = vcmp.lt.s32.totalorder %v737, 15
      %vm3563 = vcmp.lt.s32.totalorder %v738, 15
      %vm3564 = vcmp.lt.s32.totalorder %v739, 15
      %vm3565 = vcmp.lt.s32.totalorder %v740, 15
      %vm3566 = vcmp.lt.s32.totalorder %v741, 15
      %vm3567 = vcmp.lt.s32.totalorder %v742, 15
      %vm3568 = vcmp.lt.s32.totalorder %v743, 15
      %vm3569 = vcmp.lt.s32.totalorder %v744, 15
      %vm3570 = vcmp.lt.s32.totalorder %v745, 15
      %vm3571 = vcmp.lt.s32.totalorder %v746, 15
      %vm3572 = vcmp.lt.s32.totalorder %v747, 15
      %vm3573 = vcmp.lt.s32.totalorder %v748, 15
      %vm3574 = vcmp.lt.s32.totalorder %v749, 15
      %vm3575 = vcmp.lt.s32.totalorder %v750, 15
      %vm3576 = vcmp.lt.s32.totalorder %v751, 15
      %vm3577 = vcmp.lt.s32.totalorder %v752, 15
      %vm3578 = vcmp.lt.s32.totalorder %v753, 15
      %vm3579 = vcmp.lt.s32.totalorder %v754, 15
      %vm3580 = vcmp.lt.s32.totalorder %v755, 15
      %vm3581 = vcmp.lt.s32.totalorder %v756, 15
      %vm3582 = vmand %vm3550, %vm888
      %vm3583 = vmand %vm3551, %vm889
      %vm3584 = vmand %vm3552, %vm890
      %vm3585 = vmand %vm3553, %vm891
      %vm3586 = vmand %vm3554, %vm892
      %vm3587 = vmand %vm3555, %vm893
      %vm3588 = vmand %vm3556, %vm894
      %vm3589 = vmand %vm3557, %vm895
      %vm3590 = vmand %vm3558, %vm896
      %vm3591 = vmand %vm3559, %vm897
      %vm3592 = vmand %vm3560, %vm898
      %vm3593 = vmand %vm3561, %vm899
      %vm3594 = vmand %vm3562, %vm900
      %vm3595 = vmand %vm3563, %vm901
      %vm3596 = vmand %vm3564, %vm902
      %vm3597 = vmand %vm3565, %vm903
      %vm3598 = vmand %vm3566, %vm904
      %vm3599 = vmand %vm3567, %vm905
      %vm3600 = vmand %vm3568, %vm906
      %vm3601 = vmand %vm3569, %vm907
      %vm3602 = vmand %vm3570, %vm908
      %vm3603 = vmand %vm3571, %vm909
      %vm3604 = vmand %vm3572, %vm910
      %vm3605 = vmand %vm3573, %vm911
      %vm3606 = vmand %vm3574, %vm912
      %vm3607 = vmand %vm3575, %vm913
      %vm3608 = vmand %vm3576, %vm914
      %vm3609 = vmand %vm3577, %vm915
      %vm3610 = vmand %vm3578, %vm916
      %vm3611 = vmand %vm3579, %vm917
      %vm3612 = vmand %vm3580, %vm918
      %vm3613 = vmand %vm3581, %vm919
      %v3614 = vsel %vm3582, 1, 0
      %v3615 = vsel %vm3583, 1, 0
      %v3616 = vsel %vm3584, 1, 0
      %v3617 = vsel %vm3585, 1, 0
      %v3618 = vsel %vm3586, 1, 0
      %v3619 = vsel %vm3587, 1, 0
      %v3620 = vsel %vm3588, 1, 0
      %v3621 = vsel %vm3589, 1, 0
      %v3622 = vsel %vm3590, 1, 0
      %v3623 = vsel %vm3591, 1, 0
      %v3624 = vsel %vm3592, 1, 0
      %v3625 = vsel %vm3593, 1, 0
      %v3626 = vsel %vm3594, 1, 0
      %v3627 = vsel %vm3595, 1, 0
      %v3628 = vsel %vm3596, 1, 0
      %v3629 = vsel %vm3597, 1, 0
      %v3630 = vsel %vm3598, 1, 0
      %v3631 = vsel %vm3599, 1, 0
      %v3632 = vsel %vm3600, 1, 0
      %v3633 = vsel %vm3601, 1, 0
      %v3634 = vsel %vm3602, 1, 0
      %v3635 = vsel %vm3603, 1, 0
      %v3636 = vsel %vm3604, 1, 0
      %v3637 = vsel %vm3605, 1, 0
      %v3638 = vsel %vm3606, 1, 0
      %v3639 = vsel %vm3607, 1, 0
      %v3640 = vsel %vm3608, 1, 0
      %v3641 = vsel %vm3609, 1, 0
      %v3642 = vsel %vm3610, 1, 0
      %v3643 = vsel %vm3611, 1, 0
      %v3644 = vsel %vm3612, 1, 0
      %v3645 = vsel %vm3613, 1, 0
      %3646 = vset.pattern.permute.xlu0 0
      %3647 = vperm.xlu0 %3646, %v3614
      %v3648 = vpop.permute.xlu0 %3647
      %3649 = vset.pattern.permute.xlu0 0
      %3650 = vperm.xlu0 %3649, %v3615
      %v3651 = vpop.permute.xlu0 %3650
      %3652 = vset.pattern.permute.xlu0 0
      %3653 = vperm.xlu0 %3652, %v3616
      %v3654 = vpop.permute.xlu0 %3653
      %3655 = vset.pattern.permute.xlu0 0
      %3656 = vperm.xlu0 %3655, %v3617
      %v3657 = vpop.permute.xlu0 %3656
      %3658 = vset.pattern.permute.xlu0 0
      %3659 = vperm.xlu0 %3658, %v3618
      %v3660 = vpop.permute.xlu0 %3659
      %3661 = vset.pattern.permute.xlu0 0
      %3662 = vperm.xlu0 %3661, %v3619
      %v3663 = vpop.permute.xlu0 %3662
      %3664 = vset.pattern.permute.xlu0 0
      %3665 = vperm.xlu0 %3664, %v3620
      %v3666 = vpop.permute.xlu0 %3665
      %3667 = vset.pattern.permute.xlu0 0
      %3668 = vperm.xlu0 %3667, %v3621
      %v3669 = vpop.permute.xlu0 %3668
      %3670 = vset.pattern.permute.xlu0 0
      %3671 = vperm.xlu0 %3670, %v3622
      %v3672 = vpop.permute.xlu0 %3671
      %3673 = vset.pattern.permute.xlu0 0
      %3674 = vperm.xlu0 %3673, %v3623
      %v3675 = vpop.permute.xlu0 %3674
      %3676 = vset.pattern.permute.xlu0 0
      %3677 = vperm.xlu0 %3676, %v3624
      %v3678 = vpop.permute.xlu0 %3677
      %3679 = vset.pattern.permute.xlu0 0
      %3680 = vperm.xlu0 %3679, %v3625
      %v3681 = vpop.permute.xlu0 %3680
      %3682 = vset.pattern.permute.xlu0 0
      %3683 = vperm.xlu0 %3682, %v3626
      %v3684 = vpop.permute.xlu0 %3683
      %3685 = vset.pattern.permute.xlu0 0
      %3686 = vperm.xlu0 %3685, %v3627
      %v3687 = vpop.permute.xlu0 %3686
      %3688 = vset.pattern.permute.xlu0 0
      %3689 = vperm.xlu0 %3688, %v3628
      %v3690 = vpop.permute.xlu0 %3689
      %3691 = vset.pattern.permute.xlu0 0
      %3692 = vperm.xlu0 %3691, %v3629
      %v3693 = vpop.permute.xlu0 %3692
      %3694 = vset.pattern.permute.xlu0 0
      %3695 = vperm.xlu0 %3694, %v3630
      %v3696 = vpop.permute.xlu0 %3695
      %3697 = vset.pattern.permute.xlu0 0
      %3698 = vperm.xlu0 %3697, %v3631
      %v3699 = vpop.permute.xlu0 %3698
      %3700 = vset.pattern.permute.xlu0 0
      %3701 = vperm.xlu0 %3700, %v3632
      %v3702 = vpop.permute.xlu0 %3701
      %3703 = vset.pattern.permute.xlu0 0
      %3704 = vperm.xlu0 %3703, %v3633
      %v3705 = vpop.permute.xlu0 %3704
      %3706 = vset.pattern.permute.xlu0 0
      %3707 = vperm.xlu0 %3706, %v3634
      %v3708 = vpop.permute.xlu0 %3707
      %3709 = vset.pattern.permute.xlu0 0
      %3710 = vperm.xlu0 %3709, %v3635
      %v3711 = vpop.permute.xlu0 %3710
      %3712 = vset.pattern.permute.xlu0 0
      %3713 = vperm.xlu0 %3712, %v3636
      %v3714 = vpop.permute.xlu0 %3713
      %3715 = vset.pattern.permute.xlu0 0
      %3716 = vperm.xlu0 %3715, %v3637
      %v3717 = vpop.permute.xlu0 %3716
      %3718 = vset.pattern.permute.xlu0 0
      %3719 = vperm.xlu0 %3718, %v3638
      %v3720 = vpop.permute.xlu0 %3719
      %3721 = vset.pattern.permute.xlu0 0
      %3722 = vperm.xlu0 %3721, %v3639
      %v3723 = vpop.permute.xlu0 %3722
      %3724 = vset.pattern.permute.xlu0 0
      %3725 = vperm.xlu0 %3724, %v3640
      %v3726 = vpop.permute.xlu0 %3725
      %3727 = vset.pattern.permute.xlu0 0
      %3728 = vperm.xlu0 %3727, %v3641
      %v3729 = vpop.permute.xlu0 %3728
      %3730 = vset.pattern.permute.xlu0 0
      %3731 = vperm.xlu0 %3730, %v3642
      %v3732 = vpop.permute.xlu0 %3731
      %3733 = vset.pattern.permute.xlu0 0
      %3734 = vperm.xlu0 %3733, %v3643
      %v3735 = vpop.permute.xlu0 %3734
      %3736 = vset.pattern.permute.xlu0 0
      %3737 = vperm.xlu0 %3736, %v3644
      %v3738 = vpop.permute.xlu0 %3737
      %3739 = vset.pattern.permute.xlu0 0
      %3740 = vperm.xlu0 %3739, %v3645
      %v3741 = vpop.permute.xlu0 %3740
      %vm3742 = vcmp.eq.s32.totalorder %v3648, 1
      %vm3743 = vcmp.eq.s32.totalorder %v3651, 1
      %vm3744 = vcmp.eq.s32.totalorder %v3654, 1
      %vm3745 = vcmp.eq.s32.totalorder %v3657, 1
      %vm3746 = vcmp.eq.s32.totalorder %v3660, 1
      %vm3747 = vcmp.eq.s32.totalorder %v3663, 1
      %vm3748 = vcmp.eq.s32.totalorder %v3666, 1
      %vm3749 = vcmp.eq.s32.totalorder %v3669, 1
      %vm3750 = vcmp.eq.s32.totalorder %v3672, 1
      %vm3751 = vcmp.eq.s32.totalorder %v3675, 1
      %vm3752 = vcmp.eq.s32.totalorder %v3678, 1
      %vm3753 = vcmp.eq.s32.totalorder %v3681, 1
      %vm3754 = vcmp.eq.s32.totalorder %v3684, 1
      %vm3755 = vcmp.eq.s32.totalorder %v3687, 1
      %vm3756 = vcmp.eq.s32.totalorder %v3690, 1
      %vm3757 = vcmp.eq.s32.totalorder %v3693, 1
      %vm3758 = vcmp.eq.s32.totalorder %v3696, 1
      %vm3759 = vcmp.eq.s32.totalorder %v3699, 1
      %vm3760 = vcmp.eq.s32.totalorder %v3702, 1
      %vm3761 = vcmp.eq.s32.totalorder %v3705, 1
      %vm3762 = vcmp.eq.s32.totalorder %v3708, 1
      %vm3763 = vcmp.eq.s32.totalorder %v3711, 1
      %vm3764 = vcmp.eq.s32.totalorder %v3714, 1
      %vm3765 = vcmp.eq.s32.totalorder %v3717, 1
      %vm3766 = vcmp.eq.s32.totalorder %v3720, 1
      %vm3767 = vcmp.eq.s32.totalorder %v3723, 1
      %vm3768 = vcmp.eq.s32.totalorder %v3726, 1
      %vm3769 = vcmp.eq.s32.totalorder %v3729, 1
      %vm3770 = vcmp.eq.s32.totalorder %v3732, 1
      %vm3771 = vcmp.eq.s32.totalorder %v3735, 1
      %vm3772 = vcmp.eq.s32.totalorder %v3738, 1
      %vm3773 = vcmp.eq.s32.totalorder %v3741, 1
      %v3774 = vsel %vm3742, %v853, 0.0
      %v3775 = vsel %vm3743, %v852, 0.0
      %v3776 = vsel %vm3744, %v851, 0.0
      %v3777 = vsel %vm3745, %v850, 0.0
      %v3778 = vsel %vm3746, %v849, 0.0
      %v3779 = vsel %vm3747, %v848, 0.0
      %v3780 = vsel %vm3748, %v847, 0.0
      %v3781 = vsel %vm3749, %v846, 0.0
      %v3782 = vsel %vm3750, %v845, 0.0
      %v3783 = vsel %vm3751, %v844, 0.0
      %v3784 = vsel %vm3752, %v843, 0.0
      %v3785 = vsel %vm3753, %v842, 0.0
      %v3786 = vsel %vm3754, %v841, 0.0
      %v3787 = vsel %vm3755, %v840, 0.0
      %v3788 = vsel %vm3756, %v839, 0.0
      %v3789 = vsel %vm3757, %v838, 0.0
      %v3790 = vsel %vm3758, %v837, 0.0
      %v3791 = vsel %vm3759, %v836, 0.0
      %v3792 = vsel %vm3760, %v835, 0.0
      %v3793 = vsel %vm3761, %v834, 0.0
      %v3794 = vsel %vm3762, %v833, 0.0
      %v3795 = vsel %vm3763, %v832, 0.0
      %v3796 = vsel %vm3764, %v831, 0.0
      %v3797 = vsel %vm3765, %v830, 0.0
      %v3798 = vsel %vm3766, %v829, 0.0
      %v3799 = vsel %vm3767, %v828, 0.0
      %v3800 = vsel %vm3768, %v827, 0.0
      %v3801 = vsel %vm3769, %v826, 0.0
      %v3802 = vsel %vm3770, %v825, 0.0
      %v3803 = vsel %vm3771, %v824, 0.0
      %v3804 = vsel %vm3772, %v855, 0.0
      %v3805 = vsel %vm3773, %v854, 0.0
      %v3806 = vpack.c.bf16 %v3775, %v3774
      %v3807 = vpack.c.bf16 %v3777, %v3776
      %v3808 = vpack.c.bf16 %v3779, %v3778
      %v3809 = vpack.c.bf16 %v3781, %v3780
      %v3810 = vpack.c.bf16 %v3783, %v3782
      %v3811 = vpack.c.bf16 %v3785, %v3784
      %v3812 = vpack.c.bf16 %v3787, %v3786
      %v3813 = vpack.c.bf16 %v3789, %v3788
      %v3814 = vpack.c.bf16 %v3791, %v3790
      %v3815 = vpack.c.bf16 %v3793, %v3792
      %v3816 = vpack.c.bf16 %v3795, %v3794
      %v3817 = vpack.c.bf16 %v3797, %v3796
      %v3818 = vpack.c.bf16 %v3799, %v3798
      %v3819 = vpack.c.bf16 %v3801, %v3800
      %v3820 = vpack.c.bf16 %v3803, %v3802
      %v3821 = vpack.c.bf16 %v3805, %v3804
      %s3822 = scalar_lea.vmem %s6, 12
      %v3823 = vld [vmem:[%s3822] sm:$0x3]
      %v3825 = vsel %vm1371, %v3806, 0
      %v3828 = vsel %vm1371, %v3807, 0
      %v3831 = vsel %vm1371, %v3808, 0
      %v3834 = vsel %vm1371, %v3809, 0
      %v3837 = vsel %vm1371, %v3810, 0
      %v3840 = vsel %vm1371, %v3811, 0
      %v3843 = vsel %vm1371, %v3812, 0
      %v3846 = vsel %vm1371, %v3813, 0
      %v3849 = vsel %vm1371, %v3814, 0
      %v3852 = vsel %vm1371, %v3815, 0
      %v3855 = vsel %vm1371, %v3816, 0
      %v3858 = vsel %vm1371, %v3817, 0
      %v3861 = vsel %vm1371, %v3818, 0
      %v3864 = vsel %vm1371, %v3819, 0
      %v3867 = vsel %vm1371, %v3820, 0
      %v3870 = vsel %vm1371, %v3821, 0
      %v3873 = vsel %vm1420, %v3823, 0
      %3875 = vmatprep.subr.bf16.mxu0 0
      %3876 = vmatpush1.bf16.msra.mxu0 %v3873
      %3877 = vmatprep.subr.bf16.mxu0 0
      %3878 = vmatpush1.bf16.msra.mxu0 0
      %3879 = vmatprep.subr.bf16.mxu0 0
      %3880 = vmatpush1.bf16.msra.mxu0 0
      %3881 = vmatprep.subr.bf16.mxu0 0
      %3882 = vmatpush1.bf16.msra.mxu0 0
      %3883 = vmatprep.subr.bf16.mxu0 0
      %3884 = vmatpush1.bf16.msra.mxu0 0
      %3885 = vmatprep.subr.bf16.mxu0 0
      %3886 = vmatpush1.bf16.msra.mxu0 0
      %3887 = vmatprep.subr.bf16.mxu0 0
      %3888 = vmatpush1.bf16.msra.mxu0 0
      %3889 = vmatprep.subr.bf16.mxu0 0
      %3890 = vmatpush1.bf16.msra.mxu0 0
      %3891 = vmatprep.subr.bf16.mxu0 0
      %3892 = vmatpush1.bf16.msra.mxu0 0
      %3893 = vmatprep.subr.bf16.mxu0 0
      %3894 = vmatpush1.bf16.msra.mxu0 0
      %3895 = vmatprep.subr.bf16.mxu0 0
      %3896 = vmatpush1.bf16.msra.mxu0 0
      %3897 = vmatprep.subr.bf16.mxu0 0
      %3898 = vmatpush1.bf16.msra.mxu0 0
      %3899 = vmatprep.subr.bf16.mxu0 0
      %3900 = vmatpush1.bf16.msra.mxu0 0
      %3901 = vmatprep.subr.bf16.mxu0 0
      %3902 = vmatpush1.bf16.msra.mxu0 0
      %3903 = vmatprep.subr.bf16.mxu0 0
      %3904 = vmatpush1.bf16.msra.mxu0 0
      %3905 = vmatprep.subr.bf16.mxu0 0
      %3906 = vmatpush1.bf16.msra.mxu0 0
      %3907 = vmatprep.mubr.bf16.mxu0 0
      %3908 = vmatmul.mubr.bf16.gmra.mrb[0].mxu0 %v3825
      %v3909 = vpop.f32.mrb[0].mxu0
      %v3910 = vadd.f32 0.0, %v3909
      %v3911 = vpop.f32.mrb[0].mxu0
      %v3912 = vpop.f32.mrb[0].mxu0
      %v3913 = vadd.f32 0.0, %v3912
      %v3914 = vpop.f32.mrb[0].mxu0
      %3915 = vmatprep.mubr.bf16.mxu0 0
      %3916 = vmatmul.mubr.bf16.gmra.mrb[0].mxu0 %v3828
      %v3917 = vpop.f32.mrb[0].mxu0
      %v3918 = vadd.f32 0.0, %v3917
      %v3919 = vpop.f32.mrb[0].mxu0
      %v3920 = vpop.f32.mrb[0].mxu0
      %v3921 = vadd.f32 0.0, %v3920
      %v3922 = vpop.f32.mrb[0].mxu0
      %3923 = vmatprep.mubr.bf16.mxu0 0
      %3924 = vmatmul.mubr.bf16.gmra.mrb[0].mxu0 %v3831
      %v3925 = vpop.f32.mrb[0].mxu0
      %v3926 = vadd.f32 0.0, %v3925
      %v3927 = vpop.f32.mrb[0].mxu0
      %v3928 = vpop.f32.mrb[0].mxu0
      %v3929 = vadd.f32 0.0, %v3928
      %v3930 = vpop.f32.mrb[0].mxu0
      %3931 = vmatprep.mubr.bf16.mxu0 0
      %3932 = vmatmul.mubr.bf16.gmra.mrb[0].mxu0 %v3834
      %v3933 = vpop.f32.mrb[0].mxu0
      %v3934 = vadd.f32 0.0, %v3933
      %v3935 = vpop.f32.mrb[0].mxu0
      %v3936 = vpop.f32.mrb[0].mxu0
      %v3937 = vadd.f32 0.0, %v3936
      %v3938 = vpop.f32.mrb[0].mxu0
      %3939 = vmatprep.mubr.bf16.mxu0 0
      %3940 = vmatmul.mubr.bf16.gmra.mrb[0].mxu0 %v3837
      %v3941 = vpop.f32.mrb[0].mxu0
      %v3942 = vadd.f32 0.0, %v3941
      %v3943 = vpop.f32.mrb[0].mxu0
      %v3944 = vpop.f32.mrb[0].mxu0
      %v3945 = vadd.f32 0.0, %v3944
      %v3946 = vpop.f32.mrb[0].mxu0
      %3947 = vmatprep.mubr.bf16.mxu0 0
      %3948 = vmatmul.mubr.bf16.gmra.mrb[0].mxu0 %v3840
      %v3949 = vpop.f32.mrb[0].mxu0
      %v3950 = vadd.f32 0.0, %v3949
      %v3951 = vpop.f32.mrb[0].mxu0
      %v3952 = vpop.f32.mrb[0].mxu0
      %v3953 = vadd.f32 0.0, %v3952
      %v3954 = vpop.f32.mrb[0].mxu0
      %3955 = vmatprep.mubr.bf16.mxu0 0
      %3956 = vmatmul.mubr.bf16.gmra.mrb[0].mxu0 %v3843
      %v3957 = vpop.f32.mrb[0].mxu0
      %v3958 = vadd.f32 0.0, %v3957
      %v3959 = vpop.f32.mrb[0].mxu0
      %v3960 = vpop.f32.mrb[0].mxu0
      %v3961 = vadd.f32 0.0, %v3960
      %v3962 = vpop.f32.mrb[0].mxu0
      %3963 = vmatprep.mubr.bf16.mxu0 0
      %3964 = vmatmul.mubr.bf16.gmra.mrb[0].mxu0 %v3846
      %v3965 = vpop.f32.mrb[0].mxu0
      %v3966 = vadd.f32 0.0, %v3965
      %v3967 = vpop.f32.mrb[0].mxu0
      %v3968 = vpop.f32.mrb[0].mxu0
      %v3969 = vadd.f32 0.0, %v3968
      %v3970 = vpop.f32.mrb[0].mxu0
      %3971 = vmatprep.mubr.bf16.mxu0 0
      %3972 = vmatmul.mubr.bf16.gmra.mrb[0].mxu0 %v3849
      %v3973 = vpop.f32.mrb[0].mxu0
      %v3974 = vadd.f32 0.0, %v3973
      %v3975 = vpop.f32.mrb[0].mxu0
      %v3976 = vpop.f32.mrb[0].mxu0
      %v3977 = vadd.f32 0.0, %v3976
      %v3978 = vpop.f32.mrb[0].mxu0
      %3979 = vmatprep.mubr.bf16.mxu0 0
      %3980 = vmatmul.mubr.bf16.gmra.mrb[0].mxu0 %v3852
      %v3981 = vpop.f32.mrb[0].mxu0
      %v3982 = vadd.f32 0.0, %v3981
      %v3983 = vpop.f32.mrb[0].mxu0
      %v3984 = vpop.f32.mrb[0].mxu0
      %v3985 = vadd.f32 0.0, %v3984
      %v3986 = vpop.f32.mrb[0].mxu0
      %3987 = vmatprep.mubr.bf16.mxu0 0
      %3988 = vmatmul.mubr.bf16.gmra.mrb[0].mxu0 %v3855
      %v3989 = vpop.f32.mrb[0].mxu0
      %v3990 = vadd.f32 0.0, %v3989
      %v3991 = vpop.f32.mrb[0].mxu0
      %v3992 = vpop.f32.mrb[0].mxu0
      %v3993 = vadd.f32 0.0, %v3992
      %v3994 = vpop.f32.mrb[0].mxu0
      %3995 = vmatprep.mubr.bf16.mxu0 0
      %3996 = vmatmul.mubr.bf16.gmra.mrb[0].mxu0 %v3858
      %v3997 = vpop.f32.mrb[0].mxu0
      %v3998 = vadd.f32 0.0, %v3997
      %v3999 = vpop.f32.mrb[0].mxu0
      %v4000 = vpop.f32.mrb[0].mxu0
      %v4001 = vadd.f32 0.0, %v4000
      %v4002 = vpop.f32.mrb[0].mxu0
      %4003 = vmatprep.mubr.bf16.mxu0 0
      %4004 = vmatmul.mubr.bf16.gmra.mrb[0].mxu0 %v3861
      %v4005 = vpop.f32.mrb[0].mxu0
      %v4006 = vadd.f32 0.0, %v4005
      %v4007 = vpop.f32.mrb[0].mxu0
      %v4008 = vpop.f32.mrb[0].mxu0
      %v4009 = vadd.f32 0.0, %v4008
      %v4010 = vpop.f32.mrb[0].mxu0
      %4011 = vmatprep.mubr.bf16.mxu0 0
      %4012 = vmatmul.mubr.bf16.gmra.mrb[0].mxu0 %v3864
      %v4013 = vpop.f32.mrb[0].mxu0
      %v4014 = vadd.f32 0.0, %v4013
      %v4015 = vpop.f32.mrb[0].mxu0
      %v4016 = vpop.f32.mrb[0].mxu0
      %v4017 = vadd.f32 0.0, %v4016
      %v4018 = vpop.f32.mrb[0].mxu0
      %4019 = vmatprep.mubr.bf16.mxu0 0
      %4020 = vmatmul.mubr.bf16.gmra.mrb[0].mxu0 %v3867
      %v4021 = vpop.f32.mrb[0].mxu0
      %v4022 = vadd.f32 0.0, %v4021
      %v4023 = vpop.f32.mrb[0].mxu0
      %v4024 = vpop.f32.mrb[0].mxu0
      %v4025 = vadd.f32 0.0, %v4024
      %v4026 = vpop.f32.mrb[0].mxu0
      %4027 = vmatprep.mubr.bf16.mxu0 0
      %4028 = vmatmul.mubr.bf16.gmra.mrb[0].mxu0 %v3870
      %v4029 = vpop.f32.mrb[0].mxu0
      %v4030 = vadd.f32 0.0, %v4029
      %v4031 = vpop.f32.mrb[0].mxu0
      %v4032 = vpop.f32.mrb[0].mxu0
      %v4033 = vadd.f32 0.0, %v4032
      %v4034 = vpop.f32.mrb[0].mxu0
      %4035 = vdwg.mxu0
      %v4036 = vadd.f32 %v3518, %v3910
      %v4037 = vadd.f32 %v3519, %v3913
      %v4038 = vadd.f32 %v3520, %v3918
      %v4039 = vadd.f32 %v3521, %v3921
      %v4040 = vadd.f32 %v3522, %v3926
      %v4041 = vadd.f32 %v3523, %v3929
      %v4042 = vadd.f32 %v3524, %v3934
      %v4043 = vadd.f32 %v3525, %v3937
      %v4044 = vadd.f32 %v3526, %v3942
      %v4045 = vadd.f32 %v3527, %v3945
      %v4046 = vadd.f32 %v3528, %v3950
      %v4047 = vadd.f32 %v3529, %v3953
      %v4048 = vadd.f32 %v3530, %v3958
      %v4049 = vadd.f32 %v3531, %v3961
      %v4050 = vadd.f32 %v3532, %v3966
      %v4051 = vadd.f32 %v3533, %v3969
      %v4052 = vadd.f32 %v3534, %v3974
      %v4053 = vadd.f32 %v3535, %v3977
      %v4054 = vadd.f32 %v3536, %v3982
      %v4055 = vadd.f32 %v3537, %v3985
      %v4056 = vadd.f32 %v3538, %v3990
      %v4057 = vadd.f32 %v3539, %v3993
      %v4058 = vadd.f32 %v3540, %v3998
      %v4059 = vadd.f32 %v3541, %v4001
      %v4060 = vadd.f32 %v3542, %v4006
      %v4061 = vadd.f32 %v3543, %v4009
      %v4062 = vadd.f32 %v3544, %v4014
      %v4063 = vadd.f32 %v3545, %v4017
      %v4064 = vadd.f32 %v3546, %v4022
      %v4065 = vadd.f32 %v3547, %v4025
      %v4066 = vadd.f32 %v3548, %v4030
      %v4067 = vadd.f32 %v3549, %v4033
      %v4068 = vsel %vm3550, 1, 0
      %v4069 = vsel %vm3551, 1, 0
      %v4070 = vsel %vm3552, 1, 0
      %v4071 = vsel %vm3553, 1, 0
      %v4072 = vsel %vm3554, 1, 0
      %v4073 = vsel %vm3555, 1, 0
      %v4074 = vsel %vm3556, 1, 0
      %v4075 = vsel %vm3557, 1, 0
      %v4076 = vsel %vm3558, 1, 0
      %v4077 = vsel %vm3559, 1, 0
      %v4078 = vsel %vm3560, 1, 0
      %v4079 = vsel %vm3561, 1, 0
      %v4080 = vsel %vm3562, 1, 0
      %v4081 = vsel %vm3563, 1, 0
      %v4082 = vsel %vm3564, 1, 0
      %v4083 = vsel %vm3565, 1, 0
      %v4084 = vsel %vm3566, 1, 0
      %v4085 = vsel %vm3567, 1, 0
      %v4086 = vsel %vm3568, 1, 0
      %v4087 = vsel %vm3569, 1, 0
      %v4088 = vsel %vm3570, 1, 0
      %v4089 = vsel %vm3571, 1, 0
      %v4090 = vsel %vm3572, 1, 0
      %v4091 = vsel %vm3573, 1, 0
      %v4092 = vsel %vm3574, 1, 0
      %v4093 = vsel %vm3575, 1, 0
      %v4094 = vsel %vm3576, 1, 0
      %v4095 = vsel %vm3577, 1, 0
      %v4096 = vsel %vm3578, 1, 0
      %v4097 = vsel %vm3579, 1, 0
      %v4098 = vsel %vm3580, 1, 0
      %v4099 = vsel %vm3581, 1, 0
      %4100 = vset.pattern.permute.xlu0 0
      %4101 = vperm.xlu0 %4100, %v4068
      %v4102 = vpop.permute.xlu0 %4101
      %4103 = vset.pattern.permute.xlu0 0
      %4104 = vperm.xlu0 %4103, %v4069
      %v4105 = vpop.permute.xlu0 %4104
      %4106 = vset.pattern.permute.xlu0 0
      %4107 = vperm.xlu0 %4106, %v4070
      %v4108 = vpop.permute.xlu0 %4107
      %4109 = vset.pattern.permute.xlu0 0
      %4110 = vperm.xlu0 %4109, %v4071
      %v4111 = vpop.permute.xlu0 %4110
      %4112 = vset.pattern.permute.xlu0 0
      %4113 = vperm.xlu0 %4112, %v4072
      %v4114 = vpop.permute.xlu0 %4113
      %4115 = vset.pattern.permute.xlu0 0
      %4116 = vperm.xlu0 %4115, %v4073
      %v4117 = vpop.permute.xlu0 %4116
      %4118 = vset.pattern.permute.xlu0 0
      %4119 = vperm.xlu0 %4118, %v4074
      %v4120 = vpop.permute.xlu0 %4119
      %4121 = vset.pattern.permute.xlu0 0
      %4122 = vperm.xlu0 %4121, %v4075
      %v4123 = vpop.permute.xlu0 %4122
      %4124 = vset.pattern.permute.xlu0 0
      %4125 = vperm.xlu0 %4124, %v4076
      %v4126 = vpop.permute.xlu0 %4125
      %4127 = vset.pattern.permute.xlu0 0
      %4128 = vperm.xlu0 %4127, %v4077
      %v4129 = vpop.permute.xlu0 %4128
      %4130 = vset.pattern.permute.xlu0 0
      %4131 = vperm.xlu0 %4130, %v4078
      %v4132 = vpop.permute.xlu0 %4131
      %4133 = vset.pattern.permute.xlu0 0
      %4134 = vperm.xlu0 %4133, %v4079
      %v4135 = vpop.permute.xlu0 %4134
      %4136 = vset.pattern.permute.xlu0 0
      %4137 = vperm.xlu0 %4136, %v4080
      %v4138 = vpop.permute.xlu0 %4137
      %4139 = vset.pattern.permute.xlu0 0
      %4140 = vperm.xlu0 %4139, %v4081
      %v4141 = vpop.permute.xlu0 %4140
      %4142 = vset.pattern.permute.xlu0 0
      %4143 = vperm.xlu0 %4142, %v4082
      %v4144 = vpop.permute.xlu0 %4143
      %4145 = vset.pattern.permute.xlu0 0
      %4146 = vperm.xlu0 %4145, %v4083
      %v4147 = vpop.permute.xlu0 %4146
      %4148 = vset.pattern.permute.xlu0 0
      %4149 = vperm.xlu0 %4148, %v4084
      %v4150 = vpop.permute.xlu0 %4149
      %4151 = vset.pattern.permute.xlu0 0
      %4152 = vperm.xlu0 %4151, %v4085
      %v4153 = vpop.permute.xlu0 %4152
      %4154 = vset.pattern.permute.xlu0 0
      %4155 = vperm.xlu0 %4154, %v4086
      %v4156 = vpop.permute.xlu0 %4155
      %4157 = vset.pattern.permute.xlu0 0
      %4158 = vperm.xlu0 %4157, %v4087
      %v4159 = vpop.permute.xlu0 %4158
      %4160 = vset.pattern.permute.xlu0 0
      %4161 = vperm.xlu0 %4160, %v4088
      %v4162 = vpop.permute.xlu0 %4161
      %4163 = vset.pattern.permute.xlu0 0
      %4164 = vperm.xlu0 %4163, %v4089
      %v4165 = vpop.permute.xlu0 %4164
      %4166 = vset.pattern.permute.xlu0 0
      %4167 = vperm.xlu0 %4166, %v4090
      %v4168 = vpop.permute.xlu0 %4167
      %4169 = vset.pattern.permute.xlu0 0
      %4170 = vperm.xlu0 %4169, %v4091
      %v4171 = vpop.permute.xlu0 %4170
      %4172 = vset.pattern.permute.xlu0 0
      %4173 = vperm.xlu0 %4172, %v4092
      %v4174 = vpop.permute.xlu0 %4173
      %4175 = vset.pattern.permute.xlu0 0
      %4176 = vperm.xlu0 %4175, %v4093
      %v4177 = vpop.permute.xlu0 %4176
      %4178 = vset.pattern.permute.xlu0 0
      %4179 = vperm.xlu0 %4178, %v4094
      %v4180 = vpop.permute.xlu0 %4179
      %4181 = vset.pattern.permute.xlu0 0
      %4182 = vperm.xlu0 %4181, %v4095
      %v4183 = vpop.permute.xlu0 %4182
      %4184 = vset.pattern.permute.xlu0 0
      %4185 = vperm.xlu0 %4184, %v4096
      %v4186 = vpop.permute.xlu0 %4185
      %4187 = vset.pattern.permute.xlu0 0
      %4188 = vperm.xlu0 %4187, %v4097
      %v4189 = vpop.permute.xlu0 %4188
      %4190 = vset.pattern.permute.xlu0 0
      %4191 = vperm.xlu0 %4190, %v4098
      %v4192 = vpop.permute.xlu0 %4191
      %4193 = vset.pattern.permute.xlu0 0
      %4194 = vperm.xlu0 %4193, %v4099
      %v4195 = vpop.permute.xlu0 %4194
      %vm4196 = vcmp.eq.s32.totalorder %v4102, 1
      %vm4197 = vcmp.eq.s32.totalorder %v4105, 1
      %vm4198 = vcmp.eq.s32.totalorder %v4108, 1
      %vm4199 = vcmp.eq.s32.totalorder %v4111, 1
      %vm4200 = vcmp.eq.s32.totalorder %v4114, 1
      %vm4201 = vcmp.eq.s32.totalorder %v4117, 1
      %vm4202 = vcmp.eq.s32.totalorder %v4120, 1
      %vm4203 = vcmp.eq.s32.totalorder %v4123, 1
      %vm4204 = vcmp.eq.s32.totalorder %v4126, 1
      %vm4205 = vcmp.eq.s32.totalorder %v4129, 1
      %vm4206 = vcmp.eq.s32.totalorder %v4132, 1
      %vm4207 = vcmp.eq.s32.totalorder %v4135, 1
      %vm4208 = vcmp.eq.s32.totalorder %v4138, 1
      %vm4209 = vcmp.eq.s32.totalorder %v4141, 1
      %vm4210 = vcmp.eq.s32.totalorder %v4144, 1
      %vm4211 = vcmp.eq.s32.totalorder %v4147, 1
      %vm4212 = vcmp.eq.s32.totalorder %v4150, 1
      %vm4213 = vcmp.eq.s32.totalorder %v4153, 1
      %vm4214 = vcmp.eq.s32.totalorder %v4156, 1
      %vm4215 = vcmp.eq.s32.totalorder %v4159, 1
      %vm4216 = vcmp.eq.s32.totalorder %v4162, 1
      %vm4217 = vcmp.eq.s32.totalorder %v4165, 1
      %vm4218 = vcmp.eq.s32.totalorder %v4168, 1
      %vm4219 = vcmp.eq.s32.totalorder %v4171, 1
      %vm4220 = vcmp.eq.s32.totalorder %v4174, 1
      %vm4221 = vcmp.eq.s32.totalorder %v4177, 1
      %vm4222 = vcmp.eq.s32.totalorder %v4180, 1
      %vm4223 = vcmp.eq.s32.totalorder %v4183, 1
      %vm4224 = vcmp.eq.s32.totalorder %v4186, 1
      %vm4225 = vcmp.eq.s32.totalorder %v4189, 1
      %vm4226 = vcmp.eq.s32.totalorder %v4192, 1
      %vm4227 = vcmp.eq.s32.totalorder %v4195, 1
      %v4228 = vsel %vm4196, %v695, 0.0
      %v4229 = vsel %vm4197, %v696, 0.0
      %v4230 = vsel %vm4198, %v697, 0.0
      %v4231 = vsel %vm4199, %v698, 0.0
      %v4232 = vsel %vm4200, %v699, 0.0
      %v4233 = vsel %vm4201, %v700, 0.0
      %v4234 = vsel %vm4202, %v701, 0.0
      %v4235 = vsel %vm4203, %v702, 0.0
      %v4236 = vsel %vm4204, %v703, 0.0
      %v4237 = vsel %vm4205, %v704, 0.0
      %v4238 = vsel %vm4206, %v705, 0.0
      %v4239 = vsel %vm4207, %v706, 0.0
      %v4240 = vsel %vm4208, %v707, 0.0
      %v4241 = vsel %vm4209, %v708, 0.0
      %v4242 = vsel %vm4210, %v709, 0.0
      %v4243 = vsel %vm4211, %v710, 0.0
      %v4244 = vsel %vm4212, %v711, 0.0
      %v4245 = vsel %vm4213, %v712, 0.0
      %v4246 = vsel %vm4214, %v713, 0.0
      %v4247 = vsel %vm4215, %v714, 0.0
      %v4248 = vsel %vm4216, %v715, 0.0
      %v4249 = vsel %vm4217, %v716, 0.0
      %v4250 = vsel %vm4218, %v717, 0.0
      %v4251 = vsel %vm4219, %v718, 0.0
      %v4252 = vsel %vm4220, %v719, 0.0
      %v4253 = vsel %vm4221, %v720, 0.0
      %v4254 = vsel %vm4222, %v721, 0.0
      %v4255 = vsel %vm4223, %v722, 0.0
      %v4256 = vsel %vm4224, %v723, 0.0
      %v4257 = vsel %vm4225, %v724, 0.0
      %v4258 = vsel %vm4226, %v693, 0.0
      %v4259 = vsel %vm4227, %v694, 0.0
      %v4260 = vpack.c.bf16 %v4229, %v4228
      %v4261 = vpack.c.bf16 %v4231, %v4230
      %v4262 = vpack.c.bf16 %v4233, %v4232
      %v4263 = vpack.c.bf16 %v4235, %v4234
      %v4264 = vpack.c.bf16 %v4237, %v4236
      %v4265 = vpack.c.bf16 %v4239, %v4238
      %v4266 = vpack.c.bf16 %v4241, %v4240
      %v4267 = vpack.c.bf16 %v4243, %v4242
      %v4268 = vpack.c.bf16 %v4245, %v4244
      %v4269 = vpack.c.bf16 %v4247, %v4246
      %v4270 = vpack.c.bf16 %v4249, %v4248
      %v4271 = vpack.c.bf16 %v4251, %v4250
      %v4272 = vpack.c.bf16 %v4253, %v4252
      %v4273 = vpack.c.bf16 %v4255, %v4254
      %v4274 = vpack.c.bf16 %v4257, %v4256
      %v4275 = vpack.c.bf16 %v4259, %v4258
      %s4276 = scalar_lea.vmem %s6, 14
      %v4277 = vld [vmem:[%s4276] sm:$0x3]
      %v4279 = vsel %vm1371, %v4260, 0
      %v4282 = vsel %vm1371, %v4261, 0
      %v4285 = vsel %vm1371, %v4262, 0
      %v4288 = vsel %vm1371, %v4263, 0
      %v4291 = vsel %vm1371, %v4264, 0
      %v4294 = vsel %vm1371, %v4265, 0
      %v4297 = vsel %vm1371, %v4266, 0
      %v4300 = vsel %vm1371, %v4267, 0
      %v4303 = vsel %vm1371, %v4268, 0
      %v4306 = vsel %vm1371, %v4269, 0
      %v4309 = vsel %vm1371, %v4270, 0
      %v4312 = vsel %vm1371, %v4271, 0
      %v4315 = vsel %vm1371, %v4272, 0
      %v4318 = vsel %vm1371, %v4273, 0
      %v4321 = vsel %vm1371, %v4274, 0
      %v4324 = vsel %vm1371, %v4275, 0
      %v4327 = vsel %vm1420, %v4277, 0
      %4329 = vmatprep.subr.bf16.mxu0 0
      %4330 = vmatpush1.bf16.msra.mxu0 %v4327
      %4331 = vmatprep.subr.bf16.mxu0 0
      %4332 = vmatpush1.bf16.msra.mxu0 0
      %4333 = vmatprep.subr.bf16.mxu0 0
      %4334 = vmatpush1.bf16.msra.mxu0 0
      %4335 = vmatprep.subr.bf16.mxu0 0
      %4336 = vmatpush1.bf16.msra.mxu0 0
      %4337 = vmatprep.subr.bf16.mxu0 0
      %4338 = vmatpush1.bf16.msra.mxu0 0
      %4339 = vmatprep.subr.bf16.mxu0 0
      %4340 = vmatpush1.bf16.msra.mxu0 0
      %4341 = vmatprep.subr.bf16.mxu0 0
      %4342 = vmatpush1.bf16.msra.mxu0 0
      %4343 = vmatprep.subr.bf16.mxu0 0
      %4344 = vmatpush1.bf16.msra.mxu0 0
      %4345 = vmatprep.subr.bf16.mxu0 0
      %4346 = vmatpush1.bf16.msra.mxu0 0
      %4347 = vmatprep.subr.bf16.mxu0 0
      %4348 = vmatpush1.bf16.msra.mxu0 0
      %4349 = vmatprep.subr.bf16.mxu0 0
      %4350 = vmatpush1.bf16.msra.mxu0 0
      %4351 = vmatprep.subr.bf16.mxu0 0
      %4352 = vmatpush1.bf16.msra.mxu0 0
      %4353 = vmatprep.subr.bf16.mxu0 0
      %4354 = vmatpush1.bf16.msra.mxu0 0
      %4355 = vmatprep.subr.bf16.mxu0 0
      %4356 = vmatpush1.bf16.msra.mxu0 0
      %4357 = vmatprep.subr.bf16.mxu0 0
      %4358 = vmatpush1.bf16.msra.mxu0 0
      %4359 = vmatprep.subr.bf16.mxu0 0
      %4360 = vmatpush1.bf16.msra.mxu0 0
      %4361 = vmatprep.mubr.bf16.mxu0 0
      %4362 = vmatmul.mubr.bf16.gmra.mrb[0].mxu0 %v4279
      %v4363 = vpop.f32.mrb[0].mxu0
      %v4364 = vadd.f32 0.0, %v4363
      %v4365 = vpop.f32.mrb[0].mxu0
      %v4366 = vpop.f32.mrb[0].mxu0
      %v4367 = vadd.f32 0.0, %v4366
      %v4368 = vpop.f32.mrb[0].mxu0
      %4369 = vmatprep.mubr.bf16.mxu0 0
      %4370 = vmatmul.mubr.bf16.gmra.mrb[0].mxu0 %v4282
      %v4371 = vpop.f32.mrb[0].mxu0
      %v4372 = vadd.f32 0.0, %v4371
      %v4373 = vpop.f32.mrb[0].mxu0
      %v4374 = vpop.f32.mrb[0].mxu0
      %v4375 = vadd.f32 0.0, %v4374
      %v4376 = vpop.f32.mrb[0].mxu0
      %4377 = vmatprep.mubr.bf16.mxu0 0
      %4378 = vmatmul.mubr.bf16.gmra.mrb[0].mxu0 %v4285
      %v4379 = vpop.f32.mrb[0].mxu0
      %v4380 = vadd.f32 0.0, %v4379
      %v4381 = vpop.f32.mrb[0].mxu0
      %v4382 = vpop.f32.mrb[0].mxu0
      %v4383 = vadd.f32 0.0, %v4382
      %v4384 = vpop.f32.mrb[0].mxu0
      %4385 = vmatprep.mubr.bf16.mxu0 0
      %4386 = vmatmul.mubr.bf16.gmra.mrb[0].mxu0 %v4288
      %v4387 = vpop.f32.mrb[0].mxu0
      %v4388 = vadd.f32 0.0, %v4387
      %v4389 = vpop.f32.mrb[0].mxu0
      %v4390 = vpop.f32.mrb[0].mxu0
      %v4391 = vadd.f32 0.0, %v4390
      %v4392 = vpop.f32.mrb[0].mxu0
      %4393 = vmatprep.mubr.bf16.mxu0 0
      %4394 = vmatmul.mubr.bf16.gmra.mrb[0].mxu0 %v4291
      %v4395 = vpop.f32.mrb[0].mxu0
      %v4396 = vadd.f32 0.0, %v4395
      %v4397 = vpop.f32.mrb[0].mxu0
      %v4398 = vpop.f32.mrb[0].mxu0
      %v4399 = vadd.f32 0.0, %v4398
      %v4400 = vpop.f32.mrb[0].mxu0
      %4401 = vmatprep.mubr.bf16.mxu0 0
      %4402 = vmatmul.mubr.bf16.gmra.mrb[0].mxu0 %v4294
      %v4403 = vpop.f32.mrb[0].mxu0
      %v4404 = vadd.f32 0.0, %v4403
      %v4405 = vpop.f32.mrb[0].mxu0
      %v4406 = vpop.f32.mrb[0].mxu0
      %v4407 = vadd.f32 0.0, %v4406
      %v4408 = vpop.f32.mrb[0].mxu0
      %4409 = vmatprep.mubr.bf16.mxu0 0
      %4410 = vmatmul.mubr.bf16.gmra.mrb[0].mxu0 %v4297
      %v4411 = vpop.f32.mrb[0].mxu0
      %v4412 = vadd.f32 0.0, %v4411
      %v4413 = vpop.f32.mrb[0].mxu0
      %v4414 = vpop.f32.mrb[0].mxu0
      %v4415 = vadd.f32 0.0, %v4414
      %v4416 = vpop.f32.mrb[0].mxu0
      %4417 = vmatprep.mubr.bf16.mxu0 0
      %4418 = vmatmul.mubr.bf16.gmra.mrb[0].mxu0 %v4300
      %v4419 = vpop.f32.mrb[0].mxu0
      %v4420 = vadd.f32 0.0, %v4419
      %v4421 = vpop.f32.mrb[0].mxu0
      %v4422 = vpop.f32.mrb[0].mxu0
      %v4423 = vadd.f32 0.0, %v4422
      %v4424 = vpop.f32.mrb[0].mxu0
      %4425 = vmatprep.mubr.bf16.mxu0 0
      %4426 = vmatmul.mubr.bf16.gmra.mrb[0].mxu0 %v4303
      %v4427 = vpop.f32.mrb[0].mxu0
      %v4428 = vadd.f32 0.0, %v4427
      %v4429 = vpop.f32.mrb[0].mxu0
      %v4430 = vpop.f32.mrb[0].mxu0
      %v4431 = vadd.f32 0.0, %v4430
      %v4432 = vpop.f32.mrb[0].mxu0
      %4433 = vmatprep.mubr.bf16.mxu0 0
      %4434 = vmatmul.mubr.bf16.gmra.mrb[0].mxu0 %v4306
      %v4435 = vpop.f32.mrb[0].mxu0
      %v4436 = vadd.f32 0.0, %v4435
      %v4437 = vpop.f32.mrb[0].mxu0
      %v4438 = vpop.f32.mrb[0].mxu0
      %v4439 = vadd.f32 0.0, %v4438
      %v4440 = vpop.f32.mrb[0].mxu0
      %4441 = vmatprep.mubr.bf16.mxu0 0
      %4442 = vmatmul.mubr.bf16.gmra.mrb[0].mxu0 %v4309
      %v4443 = vpop.f32.mrb[0].mxu0
      %v4444 = vadd.f32 0.0, %v4443
      %v4445 = vpop.f32.mrb[0].mxu0
      %v4446 = vpop.f32.mrb[0].mxu0
      %v4447 = vadd.f32 0.0, %v4446
      %v4448 = vpop.f32.mrb[0].mxu0
      %4449 = vmatprep.mubr.bf16.mxu0 0
      %4450 = vmatmul.mubr.bf16.gmra.mrb[0].mxu0 %v4312
      %v4451 = vpop.f32.mrb[0].mxu0
      %v4452 = vadd.f32 0.0, %v4451
      %v4453 = vpop.f32.mrb[0].mxu0
      %v4454 = vpop.f32.mrb[0].mxu0
      %v4455 = vadd.f32 0.0, %v4454
      %v4456 = vpop.f32.mrb[0].mxu0
      %4457 = vmatprep.mubr.bf16.mxu0 0
      %4458 = vmatmul.mubr.bf16.gmra.mrb[0].mxu0 %v4315
      %v4459 = vpop.f32.mrb[0].mxu0
      %v4460 = vadd.f32 0.0, %v4459
      %v4461 = vpop.f32.mrb[0].mxu0
      %v4462 = vpop.f32.mrb[0].mxu0
      %v4463 = vadd.f32 0.0, %v4462
      %v4464 = vpop.f32.mrb[0].mxu0
      %4465 = vmatprep.mubr.bf16.mxu0 0
      %4466 = vmatmul.mubr.bf16.gmra.mrb[0].mxu0 %v4318
      %v4467 = vpop.f32.mrb[0].mxu0
      %v4468 = vadd.f32 0.0, %v4467
      %v4469 = vpop.f32.mrb[0].mxu0
      %v4470 = vpop.f32.mrb[0].mxu0
      %v4471 = vadd.f32 0.0, %v4470
      %v4472 = vpop.f32.mrb[0].mxu0
      %4473 = vmatprep.mubr.bf16.mxu0 0
      %4474 = vmatmul.mubr.bf16.gmra.mrb[0].mxu0 %v4321
      %v4475 = vpop.f32.mrb[0].mxu0
      %v4476 = vadd.f32 0.0, %v4475
      %v4477 = vpop.f32.mrb[0].mxu0
      %v4478 = vpop.f32.mrb[0].mxu0
      %v4479 = vadd.f32 0.0, %v4478
      %v4480 = vpop.f32.mrb[0].mxu0
      %4481 = vmatprep.mubr.bf16.mxu0 0
      %4482 = vmatmul.mubr.bf16.gmra.mrb[0].mxu0 %v4324
      %v4483 = vpop.f32.mrb[0].mxu0
      %v4484 = vadd.f32 0.0, %v4483
      %v4485 = vpop.f32.mrb[0].mxu0
      %v4486 = vpop.f32.mrb[0].mxu0
      %v4487 = vadd.f32 0.0, %v4486
      %v4488 = vpop.f32.mrb[0].mxu0
      %4489 = vdwg.mxu0
      %v4490 = vadd.f32 %v4036, %v4364
      %v4491 = vadd.f32 %v4037, %v4367
      %v4492 = vadd.f32 %v4038, %v4372
      %v4493 = vadd.f32 %v4039, %v4375
      %v4494 = vadd.f32 %v4040, %v4380
      %v4495 = vadd.f32 %v4041, %v4383
      %v4496 = vadd.f32 %v4042, %v4388
      %v4497 = vadd.f32 %v4043, %v4391
      %v4498 = vadd.f32 %v4044, %v4396
      %v4499 = vadd.f32 %v4045, %v4399
      %v4500 = vadd.f32 %v4046, %v4404
      %v4501 = vadd.f32 %v4047, %v4407
      %v4502 = vadd.f32 %v4048, %v4412
      %v4503 = vadd.f32 %v4049, %v4415
      %v4504 = vadd.f32 %v4050, %v4420
      %v4505 = vadd.f32 %v4051, %v4423
      %v4506 = vadd.f32 %v4052, %v4428
      %v4507 = vadd.f32 %v4053, %v4431
      %v4508 = vadd.f32 %v4054, %v4436
      %v4509 = vadd.f32 %v4055, %v4439
      %v4510 = vadd.f32 %v4056, %v4444
      %v4511 = vadd.f32 %v4057, %v4447
      %v4512 = vadd.f32 %v4058, %v4452
      %v4513 = vadd.f32 %v4059, %v4455
      %v4514 = vadd.f32 %v4060, %v4460
      %v4515 = vadd.f32 %v4061, %v4463
      %v4516 = vadd.f32 %v4062, %v4468
      %v4517 = vadd.f32 %v4063, %v4471
      %v4518 = vadd.f32 %v4064, %v4476
      %v4519 = vadd.f32 %v4065, %v4479
      %v4520 = vadd.f32 %v4066, %v4484
      %v4521 = vadd.f32 %v4067, %v4487
      %vm4522 = vmand %vm3550, %vm1862
      %vm4523 = vmand %vm3551, %vm1863
      %vm4524 = vmand %vm3552, %vm1864
      %vm4525 = vmand %vm3553, %vm1865
      %vm4526 = vmand %vm3554, %vm1866
      %vm4527 = vmand %vm3555, %vm1867
      %vm4528 = vmand %vm3556, %vm1868
      %vm4529 = vmand %vm3557, %vm1869
      %vm4530 = vmand %vm3558, %vm1870
      %vm4531 = vmand %vm3559, %vm1871
      %vm4532 = vmand %vm3560, %vm1872
      %vm4533 = vmand %vm3561, %vm1873
      %vm4534 = vmand %vm3562, %vm1874
      %vm4535 = vmand %vm3563, %vm1875
      %vm4536 = vmand %vm3564, %vm1876
      %vm4537 = vmand %vm3565, %vm1877
      %vm4538 = vmand %vm3566, %vm1878
      %vm4539 = vmand %vm3567, %vm1879
      %vm4540 = vmand %vm3568, %vm1880
      %vm4541 = vmand %vm3569, %vm1881
      %vm4542 = vmand %vm3570, %vm1882
      %vm4543 = vmand %vm3571, %vm1883
      %vm4544 = vmand %vm3572, %vm1884
      %vm4545 = vmand %vm3573, %vm1885
      %vm4546 = vmand %vm3574, %vm1886
      %vm4547 = vmand %vm3575, %vm1887
      %vm4548 = vmand %vm3576, %vm1888
      %vm4549 = vmand %vm3577, %vm1889
      %vm4550 = vmand %vm3578, %vm1890
      %vm4551 = vmand %vm3579, %vm1891
      %vm4552 = vmand %vm3580, %vm1892
      %vm4553 = vmand %vm3581, %vm1893
      %v4554 = vsel %vm4522, 1, 0
      %v4555 = vsel %vm4523, 1, 0
      %v4556 = vsel %vm4524, 1, 0
      %v4557 = vsel %vm4525, 1, 0
      %v4558 = vsel %vm4526, 1, 0
      %v4559 = vsel %vm4527, 1, 0
      %v4560 = vsel %vm4528, 1, 0
      %v4561 = vsel %vm4529, 1, 0
      %v4562 = vsel %vm4530, 1, 0
      %v4563 = vsel %vm4531, 1, 0
      %v4564 = vsel %vm4532, 1, 0
      %v4565 = vsel %vm4533, 1, 0
      %v4566 = vsel %vm4534, 1, 0
      %v4567 = vsel %vm4535, 1, 0
      %v4568 = vsel %vm4536, 1, 0
      %v4569 = vsel %vm4537, 1, 0
      %v4570 = vsel %vm4538, 1, 0
      %v4571 = vsel %vm4539, 1, 0
      %v4572 = vsel %vm4540, 1, 0
      %v4573 = vsel %vm4541, 1, 0
      %v4574 = vsel %vm4542, 1, 0
      %v4575 = vsel %vm4543, 1, 0
      %v4576 = vsel %vm4544, 1, 0
      %v4577 = vsel %vm4545, 1, 0
      %v4578 = vsel %vm4546, 1, 0
      %v4579 = vsel %vm4547, 1, 0
      %v4580 = vsel %vm4548, 1, 0
      %v4581 = vsel %vm4549, 1, 0
      %v4582 = vsel %vm4550, 1, 0
      %v4583 = vsel %vm4551, 1, 0
      %v4584 = vsel %vm4552, 1, 0
      %v4585 = vsel %vm4553, 1, 0
      %4586 = vset.pattern.permute.xlu0 0
      %4587 = vperm.xlu0 %4586, %v4554
      %v4588 = vpop.permute.xlu0 %4587
      %4589 = vset.pattern.permute.xlu0 0
      %4590 = vperm.xlu0 %4589, %v4555
      %v4591 = vpop.permute.xlu0 %4590
      %4592 = vset.pattern.permute.xlu0 0
      %4593 = vperm.xlu0 %4592, %v4556
      %v4594 = vpop.permute.xlu0 %4593
      %4595 = vset.pattern.permute.xlu0 0
      %4596 = vperm.xlu0 %4595, %v4557
      %v4597 = vpop.permute.xlu0 %4596
      %4598 = vset.pattern.permute.xlu0 0
      %4599 = vperm.xlu0 %4598, %v4558
      %v4600 = vpop.permute.xlu0 %4599
      %4601 = vset.pattern.permute.xlu0 0
      %4602 = vperm.xlu0 %4601, %v4559
      %v4603 = vpop.permute.xlu0 %4602
      %4604 = vset.pattern.permute.xlu0 0
      %4605 = vperm.xlu0 %4604, %v4560
      %v4606 = vpop.permute.xlu0 %4605
      %4607 = vset.pattern.permute.xlu0 0
      %4608 = vperm.xlu0 %4607, %v4561
      %v4609 = vpop.permute.xlu0 %4608
      %4610 = vset.pattern.permute.xlu0 0
      %4611 = vperm.xlu0 %4610, %v4562
      %v4612 = vpop.permute.xlu0 %4611
      %4613 = vset.pattern.permute.xlu0 0
      %4614 = vperm.xlu0 %4613, %v4563
      %v4615 = vpop.permute.xlu0 %4614
      %4616 = vset.pattern.permute.xlu0 0
      %4617 = vperm.xlu0 %4616, %v4564
      %v4618 = vpop.permute.xlu0 %4617
      %4619 = vset.pattern.permute.xlu0 0
      %4620 = vperm.xlu0 %4619, %v4565
      %v4621 = vpop.permute.xlu0 %4620
      %4622 = vset.pattern.permute.xlu0 0
      %4623 = vperm.xlu0 %4622, %v4566
      %v4624 = vpop.permute.xlu0 %4623
      %4625 = vset.pattern.permute.xlu0 0
      %4626 = vperm.xlu0 %4625, %v4567
      %v4627 = vpop.permute.xlu0 %4626
      %4628 = vset.pattern.permute.xlu0 0
      %4629 = vperm.xlu0 %4628, %v4568
      %v4630 = vpop.permute.xlu0 %4629
      %4631 = vset.pattern.permute.xlu0 0
      %4632 = vperm.xlu0 %4631, %v4569
      %v4633 = vpop.permute.xlu0 %4632
      %4634 = vset.pattern.permute.xlu0 0
      %4635 = vperm.xlu0 %4634, %v4570
      %v4636 = vpop.permute.xlu0 %4635
      %4637 = vset.pattern.permute.xlu0 0
      %4638 = vperm.xlu0 %4637, %v4571
      %v4639 = vpop.permute.xlu0 %4638
      %4640 = vset.pattern.permute.xlu0 0
      %4641 = vperm.xlu0 %4640, %v4572
      %v4642 = vpop.permute.xlu0 %4641
      %4643 = vset.pattern.permute.xlu0 0
      %4644 = vperm.xlu0 %4643, %v4573
      %v4645 = vpop.permute.xlu0 %4644
      %4646 = vset.pattern.permute.xlu0 0
      %4647 = vperm.xlu0 %4646, %v4574
      %v4648 = vpop.permute.xlu0 %4647
      %4649 = vset.pattern.permute.xlu0 0
      %4650 = vperm.xlu0 %4649, %v4575
      %v4651 = vpop.permute.xlu0 %4650
      %4652 = vset.pattern.permute.xlu0 0
      %4653 = vperm.xlu0 %4652, %v4576
      %v4654 = vpop.permute.xlu0 %4653
      %4655 = vset.pattern.permute.xlu0 0
      %4656 = vperm.xlu0 %4655, %v4577
      %v4657 = vpop.permute.xlu0 %4656
      %4658 = vset.pattern.permute.xlu0 0
      %4659 = vperm.xlu0 %4658, %v4578
      %v4660 = vpop.permute.xlu0 %4659
      %4661 = vset.pattern.permute.xlu0 0
      %4662 = vperm.xlu0 %4661, %v4579
      %v4663 = vpop.permute.xlu0 %4662
      %4664 = vset.pattern.permute.xlu0 0
      %4665 = vperm.xlu0 %4664, %v4580
      %v4666 = vpop.permute.xlu0 %4665
      %4667 = vset.pattern.permute.xlu0 0
      %4668 = vperm.xlu0 %4667, %v4581
      %v4669 = vpop.permute.xlu0 %4668
      %4670 = vset.pattern.permute.xlu0 0
      %4671 = vperm.xlu0 %4670, %v4582
      %v4672 = vpop.permute.xlu0 %4671
      %4673 = vset.pattern.permute.xlu0 0
      %4674 = vperm.xlu0 %4673, %v4583
      %v4675 = vpop.permute.xlu0 %4674
      %4676 = vset.pattern.permute.xlu0 0
      %4677 = vperm.xlu0 %4676, %v4584
      %v4678 = vpop.permute.xlu0 %4677
      %4679 = vset.pattern.permute.xlu0 0
      %4680 = vperm.xlu0 %4679, %v4585
      %v4681 = vpop.permute.xlu0 %4680
      %vm4682 = vcmp.eq.s32.totalorder %v4588, 1
      %vm4683 = vcmp.eq.s32.totalorder %v4591, 1
      %vm4684 = vcmp.eq.s32.totalorder %v4594, 1
      %vm4685 = vcmp.eq.s32.totalorder %v4597, 1
      %vm4686 = vcmp.eq.s32.totalorder %v4600, 1
      %vm4687 = vcmp.eq.s32.totalorder %v4603, 1
      %vm4688 = vcmp.eq.s32.totalorder %v4606, 1
      %vm4689 = vcmp.eq.s32.totalorder %v4609, 1
      %vm4690 = vcmp.eq.s32.totalorder %v4612, 1
      %vm4691 = vcmp.eq.s32.totalorder %v4615, 1
      %vm4692 = vcmp.eq.s32.totalorder %v4618, 1
      %vm4693 = vcmp.eq.s32.totalorder %v4621, 1
      %vm4694 = vcmp.eq.s32.totalorder %v4624, 1
      %vm4695 = vcmp.eq.s32.totalorder %v4627, 1
      %vm4696 = vcmp.eq.s32.totalorder %v4630, 1
      %vm4697 = vcmp.eq.s32.totalorder %v4633, 1
      %vm4698 = vcmp.eq.s32.totalorder %v4636, 1
      %vm4699 = vcmp.eq.s32.totalorder %v4639, 1
      %vm4700 = vcmp.eq.s32.totalorder %v4642, 1
      %vm4701 = vcmp.eq.s32.totalorder %v4645, 1
      %vm4702 = vcmp.eq.s32.totalorder %v4648, 1
      %vm4703 = vcmp.eq.s32.totalorder %v4651, 1
      %vm4704 = vcmp.eq.s32.totalorder %v4654, 1
      %vm4705 = vcmp.eq.s32.totalorder %v4657, 1
      %vm4706 = vcmp.eq.s32.totalorder %v4660, 1
      %vm4707 = vcmp.eq.s32.totalorder %v4663, 1
      %vm4708 = vcmp.eq.s32.totalorder %v4666, 1
      %vm4709 = vcmp.eq.s32.totalorder %v4669, 1
      %vm4710 = vcmp.eq.s32.totalorder %v4672, 1
      %vm4711 = vcmp.eq.s32.totalorder %v4675, 1
      %vm4712 = vcmp.eq.s32.totalorder %v4678, 1
      %vm4713 = vcmp.eq.s32.totalorder %v4681, 1
      %v4714 = vsel %vm4682, %v1858, 0.0
      %v4715 = vsel %vm4683, %v1857, 0.0
      %v4716 = vsel %vm4684, %v1856, 0.0
      %v4717 = vsel %vm4685, %v1855, 0.0
      %v4718 = vsel %vm4686, %v1854, 0.0
      %v4719 = vsel %vm4687, %v1853, 0.0
      %v4720 = vsel %vm4688, %v1852, 0.0
      %v4721 = vsel %vm4689, %v1851, 0.0
      %v4722 = vsel %vm4690, %v1850, 0.0
      %v4723 = vsel %vm4691, %v1849, 0.0
      %v4724 = vsel %vm4692, %v1848, 0.0
      %v4725 = vsel %vm4693, %v1847, 0.0
      %v4726 = vsel %vm4694, %v1846, 0.0
      %v4727 = vsel %vm4695, %v1845, 0.0
      %v4728 = vsel %vm4696, %v1844, 0.0
      %v4729 = vsel %vm4697, %v1843, 0.0
      %v4730 = vsel %vm4698, %v1842, 0.0
      %v4731 = vsel %vm4699, %v1841, 0.0
      %v4732 = vsel %vm4700, %v1840, 0.0
      %v4733 = vsel %vm4701, %v1839, 0.0
      %v4734 = vsel %vm4702, %v1838, 0.0
      %v4735 = vsel %vm4703, %v1837, 0.0
      %v4736 = vsel %vm4704, %v1836, 0.0
      %v4737 = vsel %vm4705, %v1835, 0.0
      %v4738 = vsel %vm4706, %v1834, 0.0
      %v4739 = vsel %vm4707, %v1833, 0.0
      %v4740 = vsel %vm4708, %v1832, 0.0
      %v4741 = vsel %vm4709, %v1831, 0.0
      %v4742 = vsel %vm4710, %v1830, 0.0
      %v4743 = vsel %vm4711, %v1861, 0.0
      %v4744 = vsel %vm4712, %v1860, 0.0
      %v4745 = vsel %vm4713, %v1859, 0.0
      %v4746 = vpack.c.bf16 %v4715, %v4714
      %v4747 = vpack.c.bf16 %v4717, %v4716
      %v4748 = vpack.c.bf16 %v4719, %v4718
      %v4749 = vpack.c.bf16 %v4721, %v4720
      %v4750 = vpack.c.bf16 %v4723, %v4722
      %v4751 = vpack.c.bf16 %v4725, %v4724
      %v4752 = vpack.c.bf16 %v4727, %v4726
      %v4753 = vpack.c.bf16 %v4729, %v4728
      %v4754 = vpack.c.bf16 %v4731, %v4730
      %v4755 = vpack.c.bf16 %v4733, %v4732
      %v4756 = vpack.c.bf16 %v4735, %v4734
      %v4757 = vpack.c.bf16 %v4737, %v4736
      %v4758 = vpack.c.bf16 %v4739, %v4738
      %v4759 = vpack.c.bf16 %v4741, %v4740
      %v4760 = vpack.c.bf16 %v4743, %v4742
      %v4761 = vpack.c.bf16 %v4745, %v4744
      %s4762 = scalar_lea.vmem %s6, 16
      %v4763 = vld [vmem:[%s4762] sm:$0x3]
      %v4765 = vsel %vm1371, %v4746, 0
      %v4768 = vsel %vm1371, %v4747, 0
      %v4771 = vsel %vm1371, %v4748, 0
      %v4774 = vsel %vm1371, %v4749, 0
      %v4777 = vsel %vm1371, %v4750, 0
      %v4780 = vsel %vm1371, %v4751, 0
      %v4783 = vsel %vm1371, %v4752, 0
      %v4786 = vsel %vm1371, %v4753, 0
      %v4789 = vsel %vm1371, %v4754, 0
      %v4792 = vsel %vm1371, %v4755, 0
      %v4795 = vsel %vm1371, %v4756, 0
      %v4798 = vsel %vm1371, %v4757, 0
      %v4801 = vsel %vm1371, %v4758, 0
      %v4804 = vsel %vm1371, %v4759, 0
      %v4807 = vsel %vm1371, %v4760, 0
      %v4810 = vsel %vm1371, %v4761, 0
      %v4813 = vsel %vm1420, %v4763, 0
      %4815 = vmatprep.subr.bf16.mxu0 0
      %4816 = vmatpush1.bf16.msra.mxu0 %v4813
      %4817 = vmatprep.subr.bf16.mxu0 0
      %4818 = vmatpush1.bf16.msra.mxu0 0
      %4819 = vmatprep.subr.bf16.mxu0 0
      %4820 = vmatpush1.bf16.msra.mxu0 0
      %4821 = vmatprep.subr.bf16.mxu0 0
      %4822 = vmatpush1.bf16.msra.mxu0 0
      %4823 = vmatprep.subr.bf16.mxu0 0
      %4824 = vmatpush1.bf16.msra.mxu0 0
      %4825 = vmatprep.subr.bf16.mxu0 0
      %4826 = vmatpush1.bf16.msra.mxu0 0
      %4827 = vmatprep.subr.bf16.mxu0 0
      %4828 = vmatpush1.bf16.msra.mxu0 0
      %4829 = vmatprep.subr.bf16.mxu0 0
      %4830 = vmatpush1.bf16.msra.mxu0 0
      %4831 = vmatprep.subr.bf16.mxu0 0
      %4832 = vmatpush1.bf16.msra.mxu0 0
      %4833 = vmatprep.subr.bf16.mxu0 0
      %4834 = vmatpush1.bf16.msra.mxu0 0
      %4835 = vmatprep.subr.bf16.mxu0 0
      %4836 = vmatpush1.bf16.msra.mxu0 0
      %4837 = vmatprep.subr.bf16.mxu0 0
      %4838 = vmatpush1.bf16.msra.mxu0 0
      %4839 = vmatprep.subr.bf16.mxu0 0
      %4840 = vmatpush1.bf16.msra.mxu0 0
      %4841 = vmatprep.subr.bf16.mxu0 0
      %4842 = vmatpush1.bf16.msra.mxu0 0
      %4843 = vmatprep.subr.bf16.mxu0 0
      %4844 = vmatpush1.bf16.msra.mxu0 0
      %4845 = vmatprep.subr.bf16.mxu0 0
      %4846 = vmatpush1.bf16.msra.mxu0 0
      %4847 = vmatprep.mubr.bf16.mxu0 0
      %4848 = vmatmul.mubr.bf16.gmra.mrb[0].mxu0 %v4765
      %v4849 = vpop.f32.mrb[0].mxu0
      %v4850 = vadd.f32 0.0, %v4849
      %v4851 = vpop.f32.mrb[0].mxu0
      %v4852 = vpop.f32.mrb[0].mxu0
      %v4853 = vadd.f32 0.0, %v4852
      %v4854 = vpop.f32.mrb[0].mxu0
      %4855 = vmatprep.mubr.bf16.mxu0 0
      %4856 = vmatmul.mubr.bf16.gmra.mrb[0].mxu0 %v4768
      %v4857 = vpop.f32.mrb[0].mxu0
      %v4858 = vadd.f32 0.0, %v4857
      %v4859 = vpop.f32.mrb[0].mxu0
      %v4860 = vpop.f32.mrb[0].mxu0
      %v4861 = vadd.f32 0.0, %v4860
      %v4862 = vpop.f32.mrb[0].mxu0
      %4863 = vmatprep.mubr.bf16.mxu0 0
      %4864 = vmatmul.mubr.bf16.gmra.mrb[0].mxu0 %v4771
      %v4865 = vpop.f32.mrb[0].mxu0
      %v4866 = vadd.f32 0.0, %v4865
      %v4867 = vpop.f32.mrb[0].mxu0
      %v4868 = vpop.f32.mrb[0].mxu0
      %v4869 = vadd.f32 0.0, %v4868
      %v4870 = vpop.f32.mrb[0].mxu0
      %4871 = vmatprep.mubr.bf16.mxu0 0
      %4872 = vmatmul.mubr.bf16.gmra.mrb[0].mxu0 %v4774
      %v4873 = vpop.f32.mrb[0].mxu0
      %v4874 = vadd.f32 0.0, %v4873
      %v4875 = vpop.f32.mrb[0].mxu0
      %v4876 = vpop.f32.mrb[0].mxu0
      %v4877 = vadd.f32 0.0, %v4876
      %v4878 = vpop.f32.mrb[0].mxu0
      %4879 = vmatprep.mubr.bf16.mxu0 0
      %4880 = vmatmul.mubr.bf16.gmra.mrb[0].mxu0 %v4777
      %v4881 = vpop.f32.mrb[0].mxu0
      %v4882 = vadd.f32 0.0, %v4881
      %v4883 = vpop.f32.mrb[0].mxu0
      %v4884 = vpop.f32.mrb[0].mxu0
      %v4885 = vadd.f32 0.0, %v4884
      %v4886 = vpop.f32.mrb[0].mxu0
      %4887 = vmatprep.mubr.bf16.mxu0 0
      %4888 = vmatmul.mubr.bf16.gmra.mrb[0].mxu0 %v4780
      %v4889 = vpop.f32.mrb[0].mxu0
      %v4890 = vadd.f32 0.0, %v4889
      %v4891 = vpop.f32.mrb[0].mxu0
      %v4892 = vpop.f32.mrb[0].mxu0
      %v4893 = vadd.f32 0.0, %v4892
      %v4894 = vpop.f32.mrb[0].mxu0
      %4895 = vmatprep.mubr.bf16.mxu0 0
      %4896 = vmatmul.mubr.bf16.gmra.mrb[0].mxu0 %v4783
      %v4897 = vpop.f32.mrb[0].mxu0
      %v4898 = vadd.f32 0.0, %v4897
      %v4899 = vpop.f32.mrb[0].mxu0
      %v4900 = vpop.f32.mrb[0].mxu0
      %v4901 = vadd.f32 0.0, %v4900
      %v4902 = vpop.f32.mrb[0].mxu0
      %4903 = vmatprep.mubr.bf16.mxu0 0
      %4904 = vmatmul.mubr.bf16.gmra.mrb[0].mxu0 %v4786
      %v4905 = vpop.f32.mrb[0].mxu0
      %v4906 = vadd.f32 0.0, %v4905
      %v4907 = vpop.f32.mrb[0].mxu0
      %v4908 = vpop.f32.mrb[0].mxu0
      %v4909 = vadd.f32 0.0, %v4908
      %v4910 = vpop.f32.mrb[0].mxu0
      %4911 = vmatprep.mubr.bf16.mxu0 0
      %4912 = vmatmul.mubr.bf16.gmra.mrb[0].mxu0 %v4789
      %v4913 = vpop.f32.mrb[0].mxu0
      %v4914 = vadd.f32 0.0, %v4913
      %v4915 = vpop.f32.mrb[0].mxu0
      %v4916 = vpop.f32.mrb[0].mxu0
      %v4917 = vadd.f32 0.0, %v4916
      %v4918 = vpop.f32.mrb[0].mxu0
      %4919 = vmatprep.mubr.bf16.mxu0 0
      %4920 = vmatmul.mubr.bf16.gmra.mrb[0].mxu0 %v4792
      %v4921 = vpop.f32.mrb[0].mxu0
      %v4922 = vadd.f32 0.0, %v4921
      %v4923 = vpop.f32.mrb[0].mxu0
      %v4924 = vpop.f32.mrb[0].mxu0
      %v4925 = vadd.f32 0.0, %v4924
      %v4926 = vpop.f32.mrb[0].mxu0
      %4927 = vmatprep.mubr.bf16.mxu0 0
      %4928 = vmatmul.mubr.bf16.gmra.mrb[0].mxu0 %v4795
      %v4929 = vpop.f32.mrb[0].mxu0
      %v4930 = vadd.f32 0.0, %v4929
      %v4931 = vpop.f32.mrb[0].mxu0
      %v4932 = vpop.f32.mrb[0].mxu0
      %v4933 = vadd.f32 0.0, %v4932
      %v4934 = vpop.f32.mrb[0].mxu0
      %4935 = vmatprep.mubr.bf16.mxu0 0
      %4936 = vmatmul.mubr.bf16.gmra.mrb[0].mxu0 %v4798
      %v4937 = vpop.f32.mrb[0].mxu0
      %v4938 = vadd.f32 0.0, %v4937
      %v4939 = vpop.f32.mrb[0].mxu0
      %v4940 = vpop.f32.mrb[0].mxu0
      %v4941 = vadd.f32 0.0, %v4940
      %v4942 = vpop.f32.mrb[0].mxu0
      %4943 = vmatprep.mubr.bf16.mxu0 0
      %4944 = vmatmul.mubr.bf16.gmra.mrb[0].mxu0 %v4801
      %v4945 = vpop.f32.mrb[0].mxu0
      %v4946 = vadd.f32 0.0, %v4945
      %v4947 = vpop.f32.mrb[0].mxu0
      %v4948 = vpop.f32.mrb[0].mxu0
      %v4949 = vadd.f32 0.0, %v4948
      %v4950 = vpop.f32.mrb[0].mxu0
      %4951 = vmatprep.mubr.bf16.mxu0 0
      %4952 = vmatmul.mubr.bf16.gmra.mrb[0].mxu0 %v4804
      %v4953 = vpop.f32.mrb[0].mxu0
      %v4954 = vadd.f32 0.0, %v4953
      %v4955 = vpop.f32.mrb[0].mxu0
      %v4956 = vpop.f32.mrb[0].mxu0
      %v4957 = vadd.f32 0.0, %v4956
      %v4958 = vpop.f32.mrb[0].mxu0
      %4959 = vmatprep.mubr.bf16.mxu0 0
      %4960 = vmatmul.mubr.bf16.gmra.mrb[0].mxu0 %v4807
      %v4961 = vpop.f32.mrb[0].mxu0
      %v4962 = vadd.f32 0.0, %v4961
      %v4963 = vpop.f32.mrb[0].mxu0
      %v4964 = vpop.f32.mrb[0].mxu0
      %v4965 = vadd.f32 0.0, %v4964
      %v4966 = vpop.f32.mrb[0].mxu0
      %4967 = vmatprep.mubr.bf16.mxu0 0
      %4968 = vmatmul.mubr.bf16.gmra.mrb[0].mxu0 %v4810
      %v4969 = vpop.f32.mrb[0].mxu0
      %v4970 = vadd.f32 0.0, %v4969
      %v4971 = vpop.f32.mrb[0].mxu0
      %v4972 = vpop.f32.mrb[0].mxu0
      %v4973 = vadd.f32 0.0, %v4972
      %v4974 = vpop.f32.mrb[0].mxu0
      %4975 = vdwg.mxu0
      %v4976 = vadd.f32 %v4490, %v4850
      %v4977 = vadd.f32 %v4491, %v4853
      %v4978 = vadd.f32 %v4492, %v4858
      %v4979 = vadd.f32 %v4493, %v4861
      %v4980 = vadd.f32 %v4494, %v4866
      %v4981 = vadd.f32 %v4495, %v4869
      %v4982 = vadd.f32 %v4496, %v4874
      %v4983 = vadd.f32 %v4497, %v4877
      %v4984 = vadd.f32 %v4498, %v4882
      %v4985 = vadd.f32 %v4499, %v4885
      %v4986 = vadd.f32 %v4500, %v4890
      %v4987 = vadd.f32 %v4501, %v4893
      %v4988 = vadd.f32 %v4502, %v4898
      %v4989 = vadd.f32 %v4503, %v4901
      %v4990 = vadd.f32 %v4504, %v4906
      %v4991 = vadd.f32 %v4505, %v4909
      %v4992 = vadd.f32 %v4506, %v4914
      %v4993 = vadd.f32 %v4507, %v4917
      %v4994 = vadd.f32 %v4508, %v4922
      %v4995 = vadd.f32 %v4509, %v4925
      %v4996 = vadd.f32 %v4510, %v4930
      %v4997 = vadd.f32 %v4511, %v4933
      %v4998 = vadd.f32 %v4512, %v4938
      %v4999 = vadd.f32 %v4513, %v4941
      %v5000 = vadd.f32 %v4514, %v4946
      %v5001 = vadd.f32 %v4515, %v4949
      %v5002 = vadd.f32 %v4516, %v4954
      %v5003 = vadd.f32 %v4517, %v4957
      %v5004 = vadd.f32 %v4518, %v4962
      %v5005 = vadd.f32 %v4519, %v4965
      %v5006 = vadd.f32 %v4520, %v4970
      %v5007 = vadd.f32 %v4521, %v4973
      %v5008 = vld [vmem:[%s7] sm:$0x1]
      %v5010 = vlaneseq
      %v5011 = vshrl.u32 %v5010, 7
      %v5012 = vsub.s32 0, %v5011
      %v5013 = vrot.slane %v5008, %v5012
      %v5015 = vadd.f32 %v4976, %v5013
      %v5016 = vadd.f32 %v4977, %v5013
      %v5017 = vadd.f32 %v4978, %v5013
      %v5018 = vadd.f32 %v4979, %v5013
      %v5019 = vadd.f32 %v4980, %v5013
      %v5020 = vadd.f32 %v4981, %v5013
      %v5021 = vadd.f32 %v4982, %v5013
      %v5022 = vadd.f32 %v4983, %v5013
      %v5023 = vadd.f32 %v4984, %v5013
      %v5024 = vadd.f32 %v4985, %v5013
      %v5025 = vadd.f32 %v4986, %v5013
      %v5026 = vadd.f32 %v4987, %v5013
      %v5027 = vadd.f32 %v4988, %v5013
      %v5028 = vadd.f32 %v4989, %v5013
      %v5029 = vadd.f32 %v4990, %v5013
      %v5030 = vadd.f32 %v4991, %v5013
      %v5031 = vadd.f32 %v4992, %v5013
      %v5032 = vadd.f32 %v4993, %v5013
      %v5033 = vadd.f32 %v4994, %v5013
      %v5034 = vadd.f32 %v4995, %v5013
      %v5035 = vadd.f32 %v4996, %v5013
      %v5036 = vadd.f32 %v4997, %v5013
      %v5037 = vadd.f32 %v4998, %v5013
      %v5038 = vadd.f32 %v4999, %v5013
      %v5039 = vadd.f32 %v5000, %v5013
      %v5040 = vadd.f32 %v5001, %v5013
      %v5041 = vadd.f32 %v5002, %v5013
      %v5042 = vadd.f32 %v5003, %v5013
      %v5043 = vadd.f32 %v5004, %v5013
      %v5044 = vadd.f32 %v5005, %v5013
      %v5045 = vadd.f32 %v5006, %v5013
      %v5046 = vadd.f32 %v5007, %v5013
      %5047 = vst.msk [vmem:[%s325] sm:$0xff] %vm447, %v5015
      %5048 = vst.msk [vmem:[%s325 + $0x8] sm:$0xff] %vm447, %v5016
      %5049 = vst.msk [vmem:[%s325 + $0x10] sm:$0xff] %vm447, %v5017
      %5050 = vst.msk [vmem:[%s325 + $0x18] sm:$0xff] %vm447, %v5018
      %5051 = vst.msk [vmem:[%s325 + $0x20] sm:$0xff] %vm447, %v5019
      %5052 = vst.msk [vmem:[%s325 + $0x28] sm:$0xff] %vm447, %v5020
      %5053 = vst.msk [vmem:[%s325 + $0x30] sm:$0xff] %vm447, %v5021
      %5054 = vst.msk [vmem:[%s325 + $0x38] sm:$0xff] %vm447, %v5022
      %5055 = vst.msk [vmem:[%s325 + $0x40] sm:$0xff] %vm447, %v5023
      %5056 = vst.msk [vmem:[%s325 + $0x48] sm:$0xff] %vm447, %v5024
      %5057 = vst.msk [vmem:[%s325 + $0x50] sm:$0xff] %vm447, %v5025
      %5058 = vst.msk [vmem:[%s325 + $0x58] sm:$0xff] %vm447, %v5026
      %5059 = vst.msk [vmem:[%s325 + $0x60] sm:$0xff] %vm447, %v5027
      %5060 = vst.msk [vmem:[%s325 + $0x68] sm:$0xff] %vm447, %v5028
      %5061 = vst.msk [vmem:[%s325 + $0x70] sm:$0xff] %vm447, %v5029
      %5062 = vst.msk [vmem:[%s325 + $0x78] sm:$0xff] %vm447, %v5030
      %5063 = vst.msk [vmem:[%s325 + $0x80] sm:$0xff] %vm447, %v5031
      %5064 = vst.msk [vmem:[%s325 + $0x88] sm:$0xff] %vm447, %v5032
      %5065 = vst.msk [vmem:[%s325 + $0x90] sm:$0xff] %vm447, %v5033
      %5066 = vst.msk [vmem:[%s325 + $0x98] sm:$0xff] %vm447, %v5034
      %5067 = vst.msk [vmem:[%s325 + $0xa0] sm:$0xff] %vm447, %v5035
      %5068 = vst.msk [vmem:[%s325 + $0xa8] sm:$0xff] %vm447, %v5036
      %5069 = vst.msk [vmem:[%s325 + $0xb0] sm:$0xff] %vm447, %v5037
      %5070 = vst.msk [vmem:[%s325 + $0xb8] sm:$0xff] %vm447, %v5038
      %5071 = vst.msk [vmem:[%s325 + $0xc0] sm:$0xff] %vm447, %v5039
      %5072 = vst.msk [vmem:[%s325 + $0xc8] sm:$0xff] %vm447, %v5040
      %5073 = vst.msk [vmem:[%s325 + $0xd0] sm:$0xff] %vm447, %v5041
      %5074 = vst.msk [vmem:[%s325 + $0xd8] sm:$0xff] %vm447, %v5042
      %5075 = vst.msk [vmem:[%s325 + $0xe0] sm:$0xff] %vm447, %v5043
      %5076 = vst.msk [vmem:[%s325 + $0xe8] sm:$0xff] %vm447, %v5044
      %5077 = vst.msk [vmem:[%s325 + $0xf0] sm:$0xff] %vm447, %v5045
      %5078 = vst.msk [vmem:[%s325 + $0xf8] sm:$0xff] %vm447, %v5046
      %p5079 = scmp.lt.s32.totalorder %s19, 1
      %s5080 = scalar_select %p5079, %s19, 1
      %s5081 = smul.addr %s5080, 32
      %s5082 = smul.addr %s5081, 8
      %s5083 = scalar_lea.vmem %s8, %s5082
      // Predicated region
      $region53: #{simple_fpn_forward.7} parent=51 // pred_check
        %p5084 = pneg %p215
      $region54: #{simple_fpn_forward.7} parent=51 // pred_check_branch
        %5086 = sbr.rel (%p5084) target = $region56
      $region55: #{simple_fpn_forward.7} parent=51 // pred_region
        _
      $region56: #{simple_fpn_forward.7} parent=51 // pred_fallthru
        _
    $region52: #{simple_fpn_forward.7} parent=5 // pred_fallthru
      _
    %p5087 = scmp.le.s32.totalorder 2, %s14
    // Predicated region
    $region57: #{simple_fpn_forward.7} parent=5 // pred_check
      %p5088 = pneg %p5087
    $region58: #{simple_fpn_forward.7} parent=5 // pred_check_branch
      %5090 = sbr.rel (%p5088) target = $region60
    $region59: #{simple_fpn_forward.7} parent=5 // pred_region
      %s5091 = ssub.s32 %s14, 2
      // Predicated region
      $region61: #{simple_fpn_forward.7} parent=59 // pred_check
        %p5092 = pneg %p221
      $region62: #{simple_fpn_forward.7} parent=59 // pred_check_branch
        %5094 = sbr.rel (%p5092) target = $region64
      $region63: #{simple_fpn_forward.7} parent=59 // pred_region
        %p5095 = scmp.lt.s32.totalorder %s20, 1
        %s5096 = scalar_select %p5095, %s20, 1
        %s5097 = smul.addr %s5096, 32
        %s5098 = smul.addr %s5097, 8
        %s5099 = scalar_lea.vmem %s8, %s5098
      $region64: #{simple_fpn_forward.7} parent=59 // pred_fallthru
        _
    $region60: #{simple_fpn_forward.7} parent=5 // pred_fallthru
      _
  $region6: #{simple_fpn_forward.7} parent=0 // loop_footer
    %s18 = sadd.s32 1, %s14
  $region7: #{simple_fpn_forward.7} parent=0 // loop_footer_branch
    %13 = sbr.rel target = $region3
  $region8: #{simple_fpn_forward.7} parent=0 // loop_exit
    _

</llo_original>
